<compile_context>
chip_gen: v7x
topology: tpu7x:2x2x1
jax: 0.10.0
libtpu: 0.0.40
codegen_flags: <defaults>
</compile_context>

<pallas_src>
import jax
import jax.numpy as jnp
from jax.experimental import pallas as pl
from jax.experimental.pallas import tpu as pltpu

# Dims implied by the PyTorch module
TEXT_FEAT_DIM = 768    # bart-base d_model
IMAGE_FEAT_DIM = 512   # resnet18 fc.in_features
AUDIO_FEAT_DIM = 128
NUM_CLASSES = 8        # len(label_list)
HIDDEN_DIM = 32
LANE = 128


def _round_up(x, m):
    return ((x + m - 1) // m) * m


def _pick_batch_tile(B, bytes_per_row, vmem_budget, batch_block):
    """Choose the batch tile: big enough to amortize per-step overhead, small
    enough that double-buffered blocks fit the scoped-VMEM default on every
    TPU generation (incl. v7x's 64 MiB), with an even step count when it
    matters so v7x can split the 'parallel' batch axis across both cores."""
    if batch_block is not None:
        tb = min(batch_block, B)
    else:
        budget_rows = max(8, vmem_budget // max(bytes_per_row, 1))
        tb_budget = max(8, min(512, (budget_rows // 8) * 8))
        if B <= tb_budget:
            # Whole batch fits one step; split in two for v7x's 2nd core when
            # each half is still a decent tile.
            tb = _round_up(-(-B // 2), 8) if B >= 64 else B
        else:
            n = -(-B // tb_budget)
            if n % 2:                       # even step count for v7x megacore
                n += 1
            tb = _round_up(-(-B // n), 8)
    # block dim must be a multiple of 8 or equal the full batch dim
    if tb != B and tb % 8 != 0:
        tb = min(_round_up(tb, 8), max(B, 8))
    return max(1, tb)


def _mm_head_kernel(text_ref, img_ref, aud_ref, wt_ref, wi_ref, wa_ref,
                    b_ref, out_ref):
    """One (batch tile, seq tile) step: three MXU dots, f32 accumulation in
    the resident output block. No pooling / concat / casts on the VPU."""
    s = pl.program_id(1)

    @pl.when(s == 0)
    def _():
        out_ref[...] = (
            b_ref[...]
            + jnp.dot(img_ref[...], wi_ref[...],
                      preferred_element_type=jnp.float32)
            + jnp.dot(aud_ref[...], wa_ref[...],
                      preferred_element_type=jnp.float32)
        )

    # Mean-pool + text projection fused into one lane-major matmul:
    # text_ref is [tb, ts*Dt], wt_ref is Wt_eff tiled ts times, pre-scaled 1/S.
    out_ref[...] += jnp.dot(text_ref[...], wt_ref[...],
                            preferred_element_type=jnp.float32)


def multimodal_classifier_head(text_hidden, image_feat, audio_feat, params,
                               *, batch_block=None, seq_block=8,
                               vmem_budget_bytes=24 * 1024 * 1024):
    """Fused Pallas kernel for the MultiModalClassifier forward head.

    text_hidden : [B, S, 768]  (BART last_hidden_state), f32 or bf16
    image_feat  : [B, 512]     (ResNet18 penultimate features)
    audio_feat  : [B, 128]
    returns logits [B, 8] in float32.

    Compute dtype follows the text input dtype (no wrapper-side cast pass);
    feed bf16 from the producers to halve the DMA volume.
    """
    B, S, Dt = text_hidden.shape
    Di = image_feat.shape[-1]
    Da = audio_feat.shape[-1]

    compute_dtype = text_hidden.dtype
    image_feat = image_feat.astype(compute_dtype)
    audio_feat = audio_feat.astype(compute_dtype)

    wt, bt = params["text_fc"]
    wi, bi = params["image_fc"]
    wa, ba = params["audio_fc"]
    wc, bc = params["classifier"]
    C = wc.shape[-1]
    C_pad = _round_up(max(C, LANE), LANE)   # lane-padded output / weights

    # ---- host-side algebraic fusion of the four Linears (f32), lane-padded ----
    def pad_c(w):
        return jnp.pad(w, ((0, 0), (0, C_pad - C)))

    wt_eff = pad_c((wt @ wc) * (1.0 / 3.0))                       # [Dt, C_pad]
    wi_eff = pad_c((wi @ wc) * (1.0 / 3.0)).astype(compute_dtype)  # [Di, C_pad]
    wa_eff = pad_c((wa @ wc) * (1.0 / 3.0)).astype(compute_dtype)  # [Da, C_pad]
    b_eff = pad_c(((bt + bi + ba) * (1.0 / 3.0)) @ wc + bc).astype(jnp.float32)

    # ---- sequence tiling: cap the per-step text block independent of S ----
    ts = S if S <= seq_block else seq_block
    while S % ts:            # TODO(synk): pad/mask ragged S instead of shrinking
        ts -= 1
    n_s = S // ts

    # Replicate the text weight ts times and fold the 1/S mean-pool scale in,
    # so pooling happens on the (otherwise idle) MXU.
    wt_rep = (jnp.tile(wt_eff, (ts, 1)) * (1.0 / S)).astype(compute_dtype)

    # Flatten text so each grid step sees a lane-major [tb, ts*Dt] slab.
    # (Merging trailing contiguous dims — no data movement.)
    text2d = text_hidden.reshape(B, S * Dt)

    in_bytes = text_hidden.dtype.itemsize
    bytes_per_row = 2 * ((ts * Dt + Di + Da) * in_bytes + C_pad * 4)
    tb = _pick_batch_tile(B, bytes_per_row, vmem_budget_bytes, batch_block)
    grid = (pl.cdiv(B, tb), n_s)

    out = pl.pallas_call(
        _mm_head_kernel,
        out_shape=jax.ShapeDtypeStruct((B, C_pad), jnp.float32),
        grid=grid,
        in_specs=[
            pl.BlockSpec((tb, ts * Dt), lambda i, s: (i, s)),   # text slab tile
            pl.BlockSpec((tb, Di), lambda i, s: (i, 0)),        # image tile
            pl.BlockSpec((tb, Da), lambda i, s: (i, 0)),        # audio tile
            pl.BlockSpec((ts * Dt, C_pad), lambda i, s: (0, 0)),  # W_text rep (resident)
            pl.BlockSpec((Di, C_pad), lambda i, s: (0, 0)),       # W_img (resident)
            pl.BlockSpec((Da, C_pad), lambda i, s: (0, 0)),       # W_aud (resident)
            pl.BlockSpec((1, C_pad), lambda i, s: (0, 0)),        # bias (resident)
        ],
        out_specs=pl.BlockSpec((tb, C_pad), lambda i, s: (i, 0)),
        compiler_params=pltpu.CompilerParams(
            dimension_semantics=("parallel", "arbitrary")),
    )(text2d, image_feat, audio_feat, wt_rep, wi_eff, wa_eff, b_eff)

    return out[:, :C]


def init_params(key):
    """Deterministic parameter init (shapes match the nn.Linear layers)."""
    ks = jax.random.split(key, 8)

    def linear(kw, kb, din, dout):
        # PyTorch default: U(-1/sqrt(din), 1/sqrt(din))
        bound = 1.0 / jnp.sqrt(jnp.float32(din))
        w = jax.random.uniform(kw, (din, dout), jnp.float32, -bound, bound)
        b = jax.random.uniform(kb, (1, dout), jnp.float32, -bound, bound)
        return w, b

    return {
        "text_fc":    linear(ks[0], ks[1], TEXT_FEAT_DIM, HIDDEN_DIM),
        "image_fc":   linear(ks[2], ks[3], IMAGE_FEAT_DIM, HIDDEN_DIM),
        "audio_fc":   linear(ks[4], ks[5], AUDIO_FEAT_DIM, HIDDEN_DIM),
        "classifier": linear(ks[6], ks[7], HIDDEN_DIM, NUM_CLASSES),
    }


def reference_head(text_hidden, image_feat, audio_feat, params):
    """Unfused f32 reference matching the PyTorch forward."""
    wt, bt = params["text_fc"]
    wi, bi = params["image_fc"]
    wa, ba = params["audio_fc"]
    wc, bc = params["classifier"]
    tf = text_hidden.mean(axis=1) @ wt + bt
    imf = image_feat @ wi + bi
    auf = audio_feat @ wa + ba
    feats = (tf + imf + auf) / 3.0
    return feats @ wc + bc


if __name__ == "__main__":
    key = jax.random.PRNGKey(0)
    k_p, k_t, k_i, k_a = jax.random.split(key, 4)

    params = init_params(k_p)

    # --- small-shape check (B=2, S=8): f32 inputs -> f32 compute path ---
    B, S = 2, 8
    text_hidden = jax.random.normal(k_t, (B, S, TEXT_FEAT_DIM), jnp.float32)
    image_feat = jax.random.normal(k_i, (B, IMAGE_FEAT_DIM), jnp.float32)
    audio_feat = jax.random.normal(k_a, (B, AUDIO_FEAT_DIM), jnp.float32)

    ref = reference_head(text_hidden, image_feat, audio_feat, params)

    logits_f32 = multimodal_classifier_head(
        text_hidden, image_feat, audio_feat, params)
    logits_f32 = jax.block_until_ready(logits_f32)
    assert logits_f32.shape == (B, NUM_CLASSES)
    assert jnp.allclose(logits_f32, ref, atol=1e-3, rtol=1e-3), "f32 mismatch"

    # --- bf16 producer path: inputs arrive bf16, no wrapper cast pass ---
    logits_bf16 = multimodal_classifier_head(
        text_hidden.astype(jnp.bfloat16),
        image_feat.astype(jnp.bfloat16),
        audio_feat.astype(jnp.bfloat16),
        params)
    logits_bf16 = jax.block_until_ready(logits_bf16)
    assert logits_bf16.shape == (B, NUM_CLASSES)
    assert jnp.allclose(logits_bf16, ref, atol=3e-2, rtol=3e-2), "bf16 mismatch"

    # --- ragged batch + multi-step sequence accumulation check ---
    # B=10 (not a multiple of the 8-row tile), S=16 with seq_block=8 -> grid (2, 2)
    kt2, ki2, ka2 = jax.random.split(jax.random.PRNGKey(1), 3)
    B2, S2 = 10, 16
    th2 = jax.random.normal(kt2, (B2, S2, TEXT_FEAT_DIM), jnp.float32)
    im2 = jax.random.normal(ki2, (B2, IMAGE_FEAT_DIM), jnp.float32)
    au2 = jax.random.normal(ka2, (B2, AUDIO_FEAT_DIM), jnp.float32)
    ref2 = reference_head(th2, im2, au2, params)
    out2 = multimodal_classifier_head(th2, im2, au2, params,
                                      batch_block=8, seq_block=8)
    out2 = jax.block_until_ready(out2)
    assert out2.shape == (B2, NUM_CLASSES)
    assert jnp.allclose(out2, ref2, atol=1e-3, rtol=1e-3), "grid-tiled mismatch"

    print("KERNEL_OK")
</pallas_src>

<mosaic_0001>
module attributes {stable_mosaic.version = 11 : i64} {
  func.func @_mm_head_kernel(%arg0: i32, %arg1: i32, %arg2: memref<2x6144xf32, #tpu.memory_space<vmem>>, %arg3: memref<2x512xf32, #tpu.memory_space<vmem>>, %arg4: memref<2x128xf32, #tpu.memory_space<vmem>>, %arg5: memref<6144x128xf32, #tpu.memory_space<vmem>>, %arg6: memref<512x128xf32, #tpu.memory_space<vmem>>, %arg7: memref<128x128xf32, #tpu.memory_space<vmem>>, %arg8: memref<1x128xf32, #tpu.memory_space<vmem>>, %arg9: memref<2x128xf32, #tpu.memory_space<vmem>>) attributes {dimension_semantics = [#tpu.dimension_semantics<parallel>, #tpu.dimension_semantics<arbitrary>], iteration_bounds = array<i64: 1, 1>, scalar_prefetch = 0 : i64, scratch_operands = 0 : i64, tpu.core_type = #tpu.core_type<tc>, window_params = [{transform_indices = @transform_0, window_bounds = array<i64: 2, 6144>}, {transform_indices = @transform_1, window_bounds = array<i64: 2, 512>}, {transform_indices = @transform_2, window_bounds = array<i64: 2, 128>}, {pipeline_mode = #tpu.pipeline_mode<synchronous>, transform_indices = @transform_3, window_bounds = array<i64: 6144, 128>}, {pipeline_mode = #tpu.pipeline_mode<synchronous>, transform_indices = @transform_4, window_bounds = array<i64: 512, 128>}, {pipeline_mode = #tpu.pipeline_mode<synchronous>, transform_indices = @transform_5, window_bounds = array<i64: 128, 128>}, {pipeline_mode = #tpu.pipeline_mode<synchronous>, transform_indices = @transform_6, window_bounds = array<i64: 1, 128>}, {transform_indices = @transform_7, window_bounds = array<i64: 2, 128>}]} {
    %c0_i32 = arith.constant 0 : i32
    %0 = arith.cmpi eq, %arg1, %c0_i32 : i32
    %1 = arith.extui %0 : i1 to i32
    %c0_i32_0 = arith.constant 0 : i32
    %2 = arith.cmpi ne, %1, %c0_i32_0 : i32
    scf.if %2 {
      %c0_8 = arith.constant 0 : index
      %c0_9 = arith.constant 0 : index
      %9 = vector.load %arg8[%c0_8, %c0_9] : memref<1x128xf32, #tpu.memory_space<vmem>>, vector<1x128xf32>
      %c0_10 = arith.constant 0 : index
      %c0_11 = arith.constant 0 : index
      %10 = vector.load %arg3[%c0_10, %c0_11] : memref<2x512xf32, #tpu.memory_space<vmem>>, vector<2x512xf32>
      %c0_12 = arith.constant 0 : index
      %c0_13 = arith.constant 0 : index
      %11 = vector.load %arg6[%c0_12, %c0_13] : memref<512x128xf32, #tpu.memory_space<vmem>>, vector<512x128xf32>
      %cst_14 = arith.constant dense<0.000000e+00> : vector<2x128xf32>
      %12 = tpu.matmul %10, %11, %cst_14 {dimension_numbers = #tpu.dot_dimension_numbers<[1], [0], [0], [1], [0, 0, 1, 1], [], []>} : vector<2x512xf32>, vector<512x128xf32>, vector<2x128xf32> -> vector<2x128xf32>
      %13 = vector.broadcast %9 : vector<1x128xf32> to vector<2x128xf32>
      %14 = arith.addf %13, %12 : vector<2x128xf32>
      %c0_15 = arith.constant 0 : index
      %c0_16 = arith.constant 0 : index
      %15 = vector.load %arg4[%c0_15, %c0_16] : memref<2x128xf32, #tpu.memory_space<vmem>>, vector<2x128xf32>
      %c0_17 = arith.constant 0 : index
      %c0_18 = arith.constant 0 : index
      %16 = vector.load %arg7[%c0_17, %c0_18] : memref<128x128xf32, #tpu.memory_space<vmem>>, vector<128x128xf32>
      %cst_19 = arith.constant dense<0.000000e+00> : vector<2x128xf32>
      %17 = tpu.matmul %15, %16, %cst_19 {dimension_numbers = #tpu.dot_dimension_numbers<[1], [0], [0], [1], [0, 0, 1, 1], [], []>} : vector<2x128xf32>, vector<128x128xf32>, vector<2x128xf32> -> vector<2x128xf32>
      %18 = arith.addf %14, %17 : vector<2x128xf32>
      %c0_20 = arith.constant 0 : index
      %c0_21 = arith.constant 0 : index
      %19 = vector.load %arg9[%c0_20, %c0_21] : memref<2x128xf32, #tpu.memory_space<vmem>>, vector<2x128xf32>
      tpu.vector_store %arg9[%c0_20, %c0_21], %18 {strides = array<i32>} : memref<2x128xf32, #tpu.memory_space<vmem>>, vector<2x128xf32>,
    } else {
    }
    %c0 = arith.constant 0 : index
    %c0_1 = arith.constant 0 : index
    %3 = vector.load %arg9[%c0, %c0_1] : memref<2x128xf32, #tpu.memory_space<vmem>>, vector<2x128xf32>
    %c0_2 = arith.constant 0 : index
    %c0_3 = arith.constant 0 : index
    %4 = vector.load %arg2[%c0_2, %c0_3] : memref<2x6144xf32, #tpu.memory_space<vmem>>, vector<2x6144xf32>
    %c0_4 = arith.constant 0 : index
    %c0_5 = arith.constant 0 : index
    %5 = vector.load %arg5[%c0_4, %c0_5] : memref<6144x128xf32, #tpu.memory_space<vmem>>, vector<6144x128xf32>
    %cst = arith.constant dense<0.000000e+00> : vector<2x128xf32>
    %6 = tpu.matmul %4, %5, %cst {dimension_numbers = #tpu.dot_dimension_numbers<[1], [0], [0], [1], [0, 0, 1, 1], [], []>} : vector<2x6144xf32>, vector<6144x128xf32>, vector<2x128xf32> -> vector<2x128xf32>
    %7 = arith.addf %3, %6 : vector<2x128xf32>
    %c0_6 = arith.constant 0 : index
    %c0_7 = arith.constant 0 : index
    %8 = vector.load %arg9[%c0_6, %c0_7] : memref<2x128xf32, #tpu.memory_space<vmem>>, vector<2x128xf32>
    tpu.vector_store %arg9[%c0_6, %c0_7], %7 {strides = array<i32>} : memref<2x128xf32, #tpu.memory_space<vmem>>, vector<2x128xf32>,
    return
  }
  func.func @transform_0(%arg0: i32, %arg1: i32) -> (i32, i32) {
    %c0_i32 = arith.constant 0 : i32
    return %arg0, %arg1 : i32, i32
  }
  func.func @transform_1(%arg0: i32, %arg1: i32) -> (i32, i32) {
    %c0_i32 = arith.constant 0 : i32
    %c0_i32_0 = arith.constant 0 : i32
    return %arg0, %c0_i32 : i32, i32
  }
  func.func @transform_2(%arg0: i32, %arg1: i32) -> (i32, i32) {
    %c0_i32 = arith.constant 0 : i32
    %c0_i32_0 = arith.constant 0 : i32
    return %arg0, %c0_i32 : i32, i32
  }
  func.func @transform_3(%arg0: i32, %arg1: i32) -> (i32, i32) {
    %c0_i32 = arith.constant 0 : i32
    %c0_i32_0 = arith.constant 0 : i32
    %c0_i32_1 = arith.constant 0 : i32
    return %c0_i32, %c0_i32_0 : i32, i32
  }
  func.func @transform_4(%arg0: i32, %arg1: i32) -> (i32, i32) {
    %c0_i32 = arith.constant 0 : i32
    %c0_i32_0 = arith.constant 0 : i32
    %c0_i32_1 = arith.constant 0 : i32
    return %c0_i32, %c0_i32_0 : i32, i32
  }
  func.func @transform_5(%arg0: i32, %arg1: i32) -> (i32, i32) {
    %c0_i32 = arith.constant 0 : i32
    %c0_i32_0 = arith.constant 0 : i32
    %c0_i32_1 = arith.constant 0 : i32
    return %c0_i32, %c0_i32_0 : i32, i32
  }
  func.func @transform_6(%arg0: i32, %arg1: i32) -> (i32, i32) {
    %c0_i32 = arith.constant 0 : i32
    %c0_i32_0 = arith.constant 0 : i32
    %c0_i32_1 = arith.constant 0 : i32
    return %c0_i32, %c0_i32_0 : i32, i32
  }
  func.func @transform_7(%arg0: i32, %arg1: i32) -> (i32, i32) {
    %c0_i32 = arith.constant 0 : i32
    %c0_i32_0 = arith.constant 0 : i32
    return %arg0, %c0_i32 : i32, i32
  }
}

</mosaic_0001>

<llo_original>
// kernel: tpu_custom_call.1
$region0: #{tpu_custom_call.1}
  #allocation0 [shape = 'u32[]', space=smem, size = 0x4, offset = 0x4, fixed_abs, tag = 'smem constant byte address 0x4 - core index']
  #allocation1 [shape = 'u32[144,128]{1,0:T(1,128)}', space=vmem, size = 0x12000, scoped, tag = 'internal scratch']
  %s0 = inlined_call_operand.hbm [shape: f32[2,6144], index: 0, kind: input, shape index: {}]
  %s1 = inlined_call_operand.hbm [shape: f32[2,512], index: 1, kind: input, shape index: {}]
  %s2 = inlined_call_operand.hbm [shape: f32[2,128], index: 2, kind: input, shape index: {}]
  %s3 = inlined_call_operand.hbm [shape: f32[6144,128], index: 3, kind: input, shape index: {}]
  %s4 = inlined_call_operand.hbm [shape: f32[512,128], index: 4, kind: input, shape index: {}]
  %s5 = inlined_call_operand.hbm [shape: f32[128,128], index: 5, kind: input, shape index: {}]
  %s6 = inlined_call_operand.hbm [shape: f32[1,128], index: 6, kind: input, shape index: {}]
  %s7 = inlined_call_operand.hbm [shape: f32[2,128], index: 7, kind: output, shape index: {}]
  %s8 = sld [smem:[#allocation0]]
  $region70: #{tpu_custom_call.1} parent=0
    _
  %s10 = ssub.s32 1, %s8
  %s11 = scalar_select 0, %s10, %s8
  $region1: #{tpu_custom_call.1} parent=0
    #allocation2 [shape = 'u8[49152]{0}', space=vmem, size = 0xc000, scoped, tag = 'input window, operand 0, single buffered']
    #allocation3 [shape = 's32[1]{0}', space=sflag, size = 0x4, scoped, tag = 'scoped memory for tpu_custom_call.1']
    #allocation4 [shape = 's32[1]{0}', space=sflag, size = 0x4, scoped, tag = 'scoped memory for tpu_custom_call.1']
    #allocation5 [shape = 'u8[4096]{0}', space=vmem, size = 0x1000, scoped, tag = 'input window, operand 1, single buffered']
    #allocation6 [shape = 's32[1]{0}', space=sflag, size = 0x4, scoped, tag = 'scoped memory for tpu_custom_call.1']
    #allocation7 [shape = 'u8[1024]{0}', space=vmem, size = 0x400, scoped, tag = 'input window, operand 2, single buffered']
    #allocation8 [shape = 'u8[3145728]{0}', space=vmem, size = 0x300000, scoped, tag = 'input window, operand 3, single buffered']
    #allocation9 [shape = 's32[1]{0}', space=sflag, size = 0x4, scoped, tag = 'scoped memory for tpu_custom_call.1']
    #allocation10 [shape = 'u8[262144]{0}', space=vmem, size = 0x40000, scoped, tag = 'input window, operand 4, single buffered']
    #allocation11 [shape = 'u8[65536]{0}', space=vmem, size = 0x10000, scoped, tag = 'input window, operand 5, single buffered']
    #allocation12 [shape = 's32[1]{0}', space=sflag, size = 0x4, scoped, tag = 'scoped memory for tpu_custom_call.1']
    #allocation13 [shape = 'u8[512]{0}', space=vmem, size = 0x400, scoped, tag = 'input window, operand 6, single buffered']
    #allocation14 [shape = 'u8[1024]{0}', space=vmem, size = 0x400, scoped, tag = 'output window, operand 0, single buffered']
    %12 = vsyncpa [#allocation3], 0
    %13 = vsyncpa [#allocation6], 0
    %14 = vsyncpa [#allocation9], 0
    %15 = vsyncpa [#allocation12], 0
    %16 = vsyncpa [#allocation4], 0
    // Predicated region
    $region2: #{tpu_custom_call.1} parent=1 // pred_check
      _
    $region3: #{tpu_custom_call.1} parent=1 // pred_check_branch
      %18 = sbr.rel (0) target = $region5
    $region4: #{tpu_custom_call.1} parent=1 // pred_region
      %s20 = ssub.s32 1536, 1536
      %21 = vsyncadd [#allocation3], %s20
      %s23 = sshll.u32 [#allocation2], 4
      %s24 = int_to_ptr.vmem [resolvable:$true] %s23
      %26 = dma.hbm_to_vmem [thread:$0]  %s0, 1536, %s24, [#allocation3]
    $region5: #{tpu_custom_call.1} parent=1 // pred_fallthru
      _
    // Predicated region
    $region6: #{tpu_custom_call.1} parent=1 // pred_check
      _
    $region7: #{tpu_custom_call.1} parent=1 // pred_check_branch
      %28 = sbr.rel (0) target = $region9
    $region8: #{tpu_custom_call.1} parent=1 // pred_region
      %s30 = ssub.s32 128, 128
      %31 = vsyncadd [#allocation6], %s30
      %s33 = sshll.u32 [#allocation5], 4
      %s34 = int_to_ptr.vmem [resolvable:$true] %s33
      %36 = dma.hbm_to_vmem [thread:$0]  %s1, 128, %s34, [#allocation6]
    $region9: #{tpu_custom_call.1} parent=1 // pred_fallthru
      _
    // Predicated region
    $region10: #{tpu_custom_call.1} parent=1 // pred_check
      _
    $region11: #{tpu_custom_call.1} parent=1 // pred_check_branch
      %38 = sbr.rel (0) target = $region13
    $region12: #{tpu_custom_call.1} parent=1 // pred_region
      %s40 = ssub.s32 32, 32
      %41 = vsyncadd [#allocation6], %s40
      %s43 = sshll.u32 [#allocation7], 4
      %s44 = int_to_ptr.vmem [resolvable:$true] %s43
      %46 = dma.hbm_to_vmem [thread:$0]  %s2, 32, %s44, [#allocation6]
    $region13: #{tpu_custom_call.1} parent=1 // pred_fallthru
      _
    // Predicated region
    $region14: #{tpu_custom_call.1} parent=1 // pred_check
      _
    $region15: #{tpu_custom_call.1} parent=1 // pred_check_branch
      %48 = sbr.rel (0) target = $region17
    $region16: #{tpu_custom_call.1} parent=1 // pred_region
      %s50 = ssub.s32 98304, 98304
      %51 = vsyncadd [#allocation9], %s50
      %s52 = sshll.u32 [#allocation8], 4
      %s53 = int_to_ptr.vmem [resolvable:$true] %s52
      %58 = dma.hbm_to_vmem [thread:$0]  %s3, 98304, %s53, [#allocation9], 128, 128, 8
    $region17: #{tpu_custom_call.1} parent=1 // pred_fallthru
      _
    // Predicated region
    $region18: #{tpu_custom_call.1} parent=1 // pred_check
      _
    $region19: #{tpu_custom_call.1} parent=1 // pred_check_branch
      %60 = sbr.rel (0) target = $region21
    $region20: #{tpu_custom_call.1} parent=1 // pred_region
      %s62 = ssub.s32 8192, 8192
      %63 = vsyncadd [#allocation9], %s62
      %s64 = sshll.u32 [#allocation10], 4
      %s65 = int_to_ptr.vmem [resolvable:$true] %s64
      %70 = dma.hbm_to_vmem [thread:$0]  %s4, 8192, %s65, [#allocation9], 128, 128, 8
    $region21: #{tpu_custom_call.1} parent=1 // pred_fallthru
      _
    // Predicated region
    $region22: #{tpu_custom_call.1} parent=1 // pred_check
      _
    $region23: #{tpu_custom_call.1} parent=1 // pred_check_branch
      %72 = sbr.rel (0) target = $region25
    $region24: #{tpu_custom_call.1} parent=1 // pred_region
      %s74 = ssub.s32 2048, 2048
      %75 = vsyncadd [#allocation12], %s74
      %s76 = sshll.u32 [#allocation11], 4
      %s77 = int_to_ptr.vmem [resolvable:$true] %s76
      %82 = dma.hbm_to_vmem [thread:$0]  %s5, 2048, %s77, [#allocation12], 128, 128, 8
    $region25: #{tpu_custom_call.1} parent=1 // pred_fallthru
      _
    // Predicated region
    $region26: #{tpu_custom_call.1} parent=1 // pred_check
      _
    $region27: #{tpu_custom_call.1} parent=1 // pred_check_branch
      %84 = sbr.rel (0) target = $region29
    $region28: #{tpu_custom_call.1} parent=1 // pred_region
      %s86 = ssub.s32 16, 16
      %87 = vsyncadd [#allocation12], %s86
      %s89 = sshll.u32 [#allocation13], 4
      %s90 = int_to_ptr.vmem [resolvable:$true] %s89
      %92 = dma.hbm_to_vmem [thread:$0]  %s6, 16, %s90, [#allocation12]
    $region29: #{tpu_custom_call.1} parent=1 // pred_fallthru
      _
    // Predicated region
    $region30: #{tpu_custom_call.1} parent=1 // pred_check
      _
    $region31: #{tpu_custom_call.1} parent=1 // pred_check_branch
      %94 = sbr.rel (0) target = $region33
    $region32: #{tpu_custom_call.1} parent=1 // pred_region
      %95 = dma.done [#allocation3], 1536
    $region33: #{tpu_custom_call.1} parent=1 // pred_fallthru
      _
    // Predicated region
    $region34: #{tpu_custom_call.1} parent=1 // pred_check
      _
    $region35: #{tpu_custom_call.1} parent=1 // pred_check_branch
      %97 = sbr.rel (0) target = $region37
    $region36: #{tpu_custom_call.1} parent=1 // pred_region
      %98 = dma.done [#allocation6], 128
    $region37: #{tpu_custom_call.1} parent=1 // pred_fallthru
      _
    // Predicated region
    $region38: #{tpu_custom_call.1} parent=1 // pred_check
      _
    $region39: #{tpu_custom_call.1} parent=1 // pred_check_branch
      %100 = sbr.rel (0) target = $region41
    $region40: #{tpu_custom_call.1} parent=1 // pred_region
      %101 = dma.done [#allocation6], 32
    $region41: #{tpu_custom_call.1} parent=1 // pred_fallthru
      _
    // Predicated region
    $region42: #{tpu_custom_call.1} parent=1 // pred_check
      _
    $region43: #{tpu_custom_call.1} parent=1 // pred_check_branch
      %103 = sbr.rel (0) target = $region45
    $region44: #{tpu_custom_call.1} parent=1 // pred_region
      %104 = dma.done [#allocation9], 98304
    $region45: #{tpu_custom_call.1} parent=1 // pred_fallthru
      _
    // Predicated region
    $region46: #{tpu_custom_call.1} parent=1 // pred_check
      _
    $region47: #{tpu_custom_call.1} parent=1 // pred_check_branch
      %106 = sbr.rel (0) target = $region49
    $region48: #{tpu_custom_call.1} parent=1 // pred_region
      %107 = dma.done [#allocation9], 8192
    $region49: #{tpu_custom_call.1} parent=1 // pred_fallthru
      _
    // Predicated region
    $region50: #{tpu_custom_call.1} parent=1 // pred_check
      _
    $region51: #{tpu_custom_call.1} parent=1 // pred_check_branch
      %109 = sbr.rel (0) target = $region53
    $region52: #{tpu_custom_call.1} parent=1 // pred_region
      %110 = dma.done [#allocation12], 2048
    $region53: #{tpu_custom_call.1} parent=1 // pred_fallthru
      _
    // Predicated region
    $region54: #{tpu_custom_call.1} parent=1 // pred_check
      _
    $region55: #{tpu_custom_call.1} parent=1 // pred_check_branch
      %112 = sbr.rel (0) target = $region57
    $region56: #{tpu_custom_call.1} parent=1 // pred_region
      %113 = dma.done [#allocation12], 16
    $region57: #{tpu_custom_call.1} parent=1 // pred_fallthru
      _
    %p114 = scmp.eq.s32.totalorder 0, 0
    // Predicated region
    $region58: #{tpu_custom_call.1} parent=1 // pred_check
      %p115 = pneg %p114
    $region59: #{tpu_custom_call.1} parent=1 // pred_check_branch
      %117 = sbr.rel (%p115) target = $region61
    $region60: #{tpu_custom_call.1} parent=1 // pred_region
      %v118 = vld [vmem:[#allocation13] sm:$0x1]
      %v119 = vld [vmem:[#allocation5] sm:$0xff]
      %v120 = vld [vmem:[#allocation10] sm:$0xff]
      %v121 = vld [vmem:[#allocation10 + $0x8] sm:$0xff]
      %v122 = vld [vmem:[#allocation10 + $0x10] sm:$0xff]
      %v123 = vld [vmem:[#allocation10 + $0x18] sm:$0xff]
      %v124 = vld [vmem:[#allocation10 + $0x20] sm:$0xff]
      %v125 = vld [vmem:[#allocation10 + $0x28] sm:$0xff]
      %v126 = vld [vmem:[#allocation10 + $0x30] sm:$0xff]
      %v127 = vld [vmem:[#allocation10 + $0x38] sm:$0xff]
      %v128 = vld [vmem:[#allocation10 + $0x40] sm:$0xff]
      %v129 = vld [vmem:[#allocation10 + $0x48] sm:$0xff]
      %v130 = vld [vmem:[#allocation10 + $0x50] sm:$0xff]
      %v131 = vld [vmem:[#allocation10 + $0x58] sm:$0xff]
      %v132 = vld [vmem:[#allocation10 + $0x60] sm:$0xff]
      %v133 = vld [vmem:[#allocation10 + $0x68] sm:$0xff]
      %v134 = vld [vmem:[#allocation10 + $0x70] sm:$0xff]
      %v135 = vld [vmem:[#allocation10 + $0x78] sm:$0xff]
      %v136 = vld [vmem:[#allocation10 + $0x80] sm:$0xff]
      %v137 = vld [vmem:[#allocation10 + $0x88] sm:$0xff]
      %v138 = vld [vmem:[#allocation10 + $0x90] sm:$0xff]
      %v139 = vld [vmem:[#allocation10 + $0x98] sm:$0xff]
      %v140 = vld [vmem:[#allocation10 + $0xa0] sm:$0xff]
      %v141 = vld [vmem:[#allocation10 + $0xa8] sm:$0xff]
      %v142 = vld [vmem:[#allocation10 + $0xb0] sm:$0xff]
      %v143 = vld [vmem:[#allocation10 + $0xb8] sm:$0xff]
      %v144 = vld [vmem:[#allocation10 + $0xc0] sm:$0xff]
      %v145 = vld [vmem:[#allocation10 + $0xc8] sm:$0xff]
      %v146 = vld [vmem:[#allocation10 + $0xd0] sm:$0xff]
      %v147 = vld [vmem:[#allocation10 + $0xd8] sm:$0xff]
      %v148 = vld [vmem:[#allocation10 + $0xe0] sm:$0xff]
      %v149 = vld [vmem:[#allocation10 + $0xe8] sm:$0xff]
      %v150 = vld [vmem:[#allocation10 + $0xf0] sm:$0xff]
      %v151 = vld [vmem:[#allocation10 + $0xf8] sm:$0xff]
      %v152 = vld [vmem:[#allocation10 + $0x100] sm:$0xff]
      %v153 = vld [vmem:[#allocation10 + $0x108] sm:$0xff]
      %v154 = vld [vmem:[#allocation10 + $0x110] sm:$0xff]
      %v155 = vld [vmem:[#allocation10 + $0x118] sm:$0xff]
      %v156 = vld [vmem:[#allocation10 + $0x120] sm:$0xff]
      %v157 = vld [vmem:[#allocation10 + $0x128] sm:$0xff]
      %v158 = vld [vmem:[#allocation10 + $0x130] sm:$0xff]
      %v159 = vld [vmem:[#allocation10 + $0x138] sm:$0xff]
      %v160 = vld [vmem:[#allocation10 + $0x140] sm:$0xff]
      %v161 = vld [vmem:[#allocation10 + $0x148] sm:$0xff]
      %v162 = vld [vmem:[#allocation10 + $0x150] sm:$0xff]
      %v163 = vld [vmem:[#allocation10 + $0x158] sm:$0xff]
      %v164 = vld [vmem:[#allocation10 + $0x160] sm:$0xff]
      %v165 = vld [vmem:[#allocation10 + $0x168] sm:$0xff]
      %v166 = vld [vmem:[#allocation10 + $0x170] sm:$0xff]
      %v167 = vld [vmem:[#allocation10 + $0x178] sm:$0xff]
      %v168 = vld [vmem:[#allocation10 + $0x180] sm:$0xff]
      %v169 = vld [vmem:[#allocation10 + $0x188] sm:$0xff]
      %v170 = vld [vmem:[#allocation10 + $0x190] sm:$0xff]
      %v171 = vld [vmem:[#allocation10 + $0x198] sm:$0xff]
      %v172 = vld [vmem:[#allocation10 + $0x1a0] sm:$0xff]
      %v173 = vld [vmem:[#allocation10 + $0x1a8] sm:$0xff]
      %v174 = vld [vmem:[#allocation10 + $0x1b0] sm:$0xff]
      %v175 = vld [vmem:[#allocation10 + $0x1b8] sm:$0xff]
      %v176 = vld [vmem:[#allocation10 + $0x1c0] sm:$0xff]
      %v177 = vld [vmem:[#allocation10 + $0x1c8] sm:$0xff]
      %v178 = vld [vmem:[#allocation10 + $0x1d0] sm:$0xff]
      %v179 = vld [vmem:[#allocation10 + $0x1d8] sm:$0xff]
      %v180 = vld [vmem:[#allocation10 + $0x1e0] sm:$0xff]
      %v181 = vld [vmem:[#allocation10 + $0x1e8] sm:$0xff]
      %v182 = vld [vmem:[#allocation10 + $0x1f0] sm:$0xff]
      %v183 = vld [vmem:[#allocation10 + $0x1f8] sm:$0xff]
      %v185 = vcombine.high %v119, %v119
      %v187 = vunpack.c.l.s4 1983009808
      %v188 = vunpack.c.0.s8 %v187
      %v189 = vlaneseq
      %v190 = vshrl.u32 %v189, 7
      %v191 = vsub.s32 %v188, %v190
      %v192 = vrot.slane %v119, %v191
      %v194 = vunpack.c.l.s4 1983009808
      %v195 = vunpack.c.0.s8 %v194
      %v196 = vlaneseq
      %v197 = vshrl.u32 %v196, 7
      %v198 = vsub.s32 %v195, %v197
      %v199 = vrot.slane %v185, %v198
      %v200 = vcombine.high %v192, %v192
      %v201 = vcombine.high %v199, %v199
      %206 = vmatprep.subr.mxu0 0.0
      %207 = vmatpush1.msra.mxu0 %v120
      %208 = vmatprep.subr.mxu0 0.0
      %209 = vmatpush1.msra.mxu0 %v121
      %210 = vmatprep.subr.mxu0 0.0
      %211 = vmatpush1.msra.mxu0 %v122
      %212 = vmatprep.subr.mxu0 0.0
      %213 = vmatpush1.msra.mxu0 %v123
      %214 = vmatprep.subr.mxu0 0.0
      %215 = vmatpush1.msra.mxu0 %v124
      %216 = vmatprep.subr.mxu0 0.0
      %217 = vmatpush1.msra.mxu0 %v125
      %218 = vmatprep.subr.mxu0 0.0
      %219 = vmatpush1.msra.mxu0 %v126
      %220 = vmatprep.subr.mxu0 0.0
      %221 = vmatpush1.msra.mxu0 %v127
      %222 = vmatprep.subr.mxu0 0.0
      %223 = vmatpush1.msra.mxu0 %v128
      %224 = vmatprep.subr.mxu0 0.0
      %225 = vmatpush1.msra.mxu0 %v129
      %226 = vmatprep.subr.mxu0 0.0
      %227 = vmatpush1.msra.mxu0 %v130
      %228 = vmatprep.subr.mxu0 0.0
      %229 = vmatpush1.msra.mxu0 %v131
      %230 = vmatprep.subr.mxu0 0.0
      %231 = vmatpush1.msra.mxu0 %v132
      %232 = vmatprep.subr.mxu0 0.0
      %233 = vmatpush1.msra.mxu0 %v133
      %234 = vmatprep.subr.mxu0 0.0
      %235 = vmatpush1.msra.mxu0 %v134
      %236 = vmatprep.subr.mxu0 0.0
      %237 = vmatpush1.msra.mxu0 %v135
      %238 = vmatprep.subr.mxu0 0.0
      %239 = vmatpush1.msra.mxu0 %v136
      %240 = vmatprep.subr.mxu0 0.0
      %241 = vmatpush1.msra.mxu0 %v137
      %242 = vmatprep.subr.mxu0 0.0
      %243 = vmatpush1.msra.mxu0 %v138
      %244 = vmatprep.subr.mxu0 0.0
      %245 = vmatpush1.msra.mxu0 %v139
      %246 = vmatprep.subr.mxu0 0.0
      %247 = vmatpush1.msra.mxu0 %v140
      %248 = vmatprep.subr.mxu0 0.0
      %249 = vmatpush1.msra.mxu0 %v141
      %250 = vmatprep.subr.mxu0 0.0
      %251 = vmatpush1.msra.mxu0 %v142
      %252 = vmatprep.subr.mxu0 0.0
      %253 = vmatpush1.msra.mxu0 %v143
      %254 = vmatprep.subr.mxu0 0.0
      %255 = vmatpush1.msra.mxu0 %v144
      %256 = vmatprep.subr.mxu0 0.0
      %257 = vmatpush1.msra.mxu0 %v145
      %258 = vmatprep.subr.mxu0 0.0
      %259 = vmatpush1.msra.mxu0 %v146
      %260 = vmatprep.subr.mxu0 0.0
      %261 = vmatpush1.msra.mxu0 %v147
      %262 = vmatprep.subr.mxu0 0.0
      %263 = vmatpush1.msra.mxu0 %v148
      %264 = vmatprep.subr.mxu0 0.0
      %265 = vmatpush1.msra.mxu0 %v149
      %266 = vmatprep.subr.mxu0 0.0
      %267 = vmatpush1.msra.mxu0 %v150
      %268 = vmatprep.subr.mxu0 0.0
      %269 = vmatpush1.msra.mxu0 %v151
      %270 = vmatprep.mubr.f32.mxu0 %v200
      %271 = vmatmul.mubr.f32.gmra.mrb[0].mxu0 %v192
      %v272 = vpop.f32.mrb[0].mxu0
      %v273 = vadd.f32 0.0, %v272
      %v274 = vpop.f32.mrb[0].mxu0
      %275 = vdwg.mxu0
      %276 = vmatprep.subr.mxu0 0.0
      %277 = vmatpush1.msra.mxu0 %v152
      %278 = vmatprep.subr.mxu0 0.0
      %279 = vmatpush1.msra.mxu0 %v153
      %280 = vmatprep.subr.mxu0 0.0
      %281 = vmatpush1.msra.mxu0 %v154
      %282 = vmatprep.subr.mxu0 0.0
      %283 = vmatpush1.msra.mxu0 %v155
      %284 = vmatprep.subr.mxu0 0.0
      %285 = vmatpush1.msra.mxu0 %v156
      %286 = vmatprep.subr.mxu0 0.0
      %287 = vmatpush1.msra.mxu0 %v157
      %288 = vmatprep.subr.mxu0 0.0
      %289 = vmatpush1.msra.mxu0 %v158
      %290 = vmatprep.subr.mxu0 0.0
      %291 = vmatpush1.msra.mxu0 %v159
      %292 = vmatprep.subr.mxu0 0.0
      %293 = vmatpush1.msra.mxu0 %v160
      %294 = vmatprep.subr.mxu0 0.0
      %295 = vmatpush1.msra.mxu0 %v161
      %296 = vmatprep.subr.mxu0 0.0
      %297 = vmatpush1.msra.mxu0 %v162
      %298 = vmatprep.subr.mxu0 0.0
      %299 = vmatpush1.msra.mxu0 %v163
      %300 = vmatprep.subr.mxu0 0.0
      %301 = vmatpush1.msra.mxu0 %v164
      %302 = vmatprep.subr.mxu0 0.0
      %303 = vmatpush1.msra.mxu0 %v165
      %304 = vmatprep.subr.mxu0 0.0
      %305 = vmatpush1.msra.mxu0 %v166
      %306 = vmatprep.subr.mxu0 0.0
      %307 = vmatpush1.msra.mxu0 %v167
      %308 = vmatprep.subr.mxu0 0.0
      %309 = vmatpush1.msra.mxu0 %v168
      %310 = vmatprep.subr.mxu0 0.0
      %311 = vmatpush1.msra.mxu0 %v169
      %312 = vmatprep.subr.mxu0 0.0
      %313 = vmatpush1.msra.mxu0 %v170
      %314 = vmatprep.subr.mxu0 0.0
      %315 = vmatpush1.msra.mxu0 %v171
      %316 = vmatprep.subr.mxu0 0.0
      %317 = vmatpush1.msra.mxu0 %v172
      %318 = vmatprep.subr.mxu0 0.0
      %319 = vmatpush1.msra.mxu0 %v173
      %320 = vmatprep.subr.mxu0 0.0
      %321 = vmatpush1.msra.mxu0 %v174
      %322 = vmatprep.subr.mxu0 0.0
      %323 = vmatpush1.msra.mxu0 %v175
      %324 = vmatprep.subr.mxu0 0.0
      %325 = vmatpush1.msra.mxu0 %v176
      %326 = vmatprep.subr.mxu0 0.0
      %327 = vmatpush1.msra.mxu0 %v177
      %328 = vmatprep.subr.mxu0 0.0
      %329 = vmatpush1.msra.mxu0 %v178
      %330 = vmatprep.subr.mxu0 0.0
      %331 = vmatpush1.msra.mxu0 %v179
      %332 = vmatprep.subr.mxu0 0.0
      %333 = vmatpush1.msra.mxu0 %v180
      %334 = vmatprep.subr.mxu0 0.0
      %335 = vmatpush1.msra.mxu0 %v181
      %336 = vmatprep.subr.mxu0 0.0
      %337 = vmatpush1.msra.mxu0 %v182
      %338 = vmatprep.subr.mxu0 0.0
      %339 = vmatpush1.msra.mxu0 %v183
      %340 = vmatprep.mubr.f32.mxu0 %v201
      %341 = vmatmul.mubr.f32.gmra.mrb[0].mxu0 %v199
      %v342 = vpop.f32.mrb[0].mxu0
      %v343 = vadd.f32 %v273, %v342
      %v344 = vpop.f32.mrb[0].mxu0
      %345 = vdwg.mxu0
      %v347 = vlaneseq
      %v348 = vshrl.u32 %v347, 7
      %v349 = vsub.s32 0, %v348
      %v350 = vrot.slane %v118, %v349
      %v352 = vadd.f32 %v350, %v343
      %v353 = vld [vmem:[#allocation7] sm:$0x3]
      %v354 = vld [vmem:[#allocation11] sm:$0xff]
      %v355 = vld [vmem:[#allocation11 + $0x8] sm:$0xff]
      %v356 = vld [vmem:[#allocation11 + $0x10] sm:$0xff]
      %v357 = vld [vmem:[#allocation11 + $0x18] sm:$0xff]
      %v358 = vld [vmem:[#allocation11 + $0x20] sm:$0xff]
      %v359 = vld [vmem:[#allocation11 + $0x28] sm:$0xff]
      %v360 = vld [vmem:[#allocation11 + $0x30] sm:$0xff]
      %v361 = vld [vmem:[#allocation11 + $0x38] sm:$0xff]
      %v362 = vld [vmem:[#allocation11 + $0x40] sm:$0xff]
      %v363 = vld [vmem:[#allocation11 + $0x48] sm:$0xff]
      %v364 = vld [vmem:[#allocation11 + $0x50] sm:$0xff]
      %v365 = vld [vmem:[#allocation11 + $0x58] sm:$0xff]
      %v366 = vld [vmem:[#allocation11 + $0x60] sm:$0xff]
      %v367 = vld [vmem:[#allocation11 + $0x68] sm:$0xff]
      %v368 = vld [vmem:[#allocation11 + $0x70] sm:$0xff]
      %v369 = vld [vmem:[#allocation11 + $0x78] sm:$0xff]
      %370 = vmatprep.subr.mxu0 0.0
      %371 = vmatpush1.msra.mxu0 %v354
      %372 = vmatprep.subr.mxu0 0.0
      %373 = vmatpush1.msra.mxu0 %v355
      %374 = vmatprep.subr.mxu0 0.0
      %375 = vmatpush1.msra.mxu0 %v356
      %376 = vmatprep.subr.mxu0 0.0
      %377 = vmatpush1.msra.mxu0 %v357
      %378 = vmatprep.subr.mxu0 0.0
      %379 = vmatpush1.msra.mxu0 %v358
      %380 = vmatprep.subr.mxu0 0.0
      %381 = vmatpush1.msra.mxu0 %v359
      %382 = vmatprep.subr.mxu0 0.0
      %383 = vmatpush1.msra.mxu0 %v360
      %384 = vmatprep.subr.mxu0 0.0
      %385 = vmatpush1.msra.mxu0 %v361
      %386 = vmatprep.subr.mxu0 0.0
      %387 = vmatpush1.msra.mxu0 %v362
      %388 = vmatprep.subr.mxu0 0.0
      %389 = vmatpush1.msra.mxu0 %v363
      %390 = vmatprep.subr.mxu0 0.0
      %391 = vmatpush1.msra.mxu0 %v364
      %392 = vmatprep.subr.mxu0 0.0
      %393 = vmatpush1.msra.mxu0 %v365
      %394 = vmatprep.subr.mxu0 0.0
      %395 = vmatpush1.msra.mxu0 %v366
      %396 = vmatprep.subr.mxu0 0.0
      %397 = vmatpush1.msra.mxu0 %v367
      %398 = vmatprep.subr.mxu0 0.0
      %399 = vmatpush1.msra.mxu0 %v368
      %400 = vmatprep.subr.mxu0 0.0
      %401 = vmatpush1.msra.mxu0 %v369
      %402 = vmatprep.subr.mxu0 0.0
      %403 = vmatpush1.msra.mxu0 0.0
      %404 = vmatprep.subr.mxu0 0.0
      %405 = vmatpush1.msra.mxu0 0.0
      %406 = vmatprep.subr.mxu0 0.0
      %407 = vmatpush1.msra.mxu0 0.0
      %408 = vmatprep.subr.mxu0 0.0
      %409 = vmatpush1.msra.mxu0 0.0
      %410 = vmatprep.subr.mxu0 0.0
      %411 = vmatpush1.msra.mxu0 0.0
      %412 = vmatprep.subr.mxu0 0.0
      %413 = vmatpush1.msra.mxu0 0.0
      %414 = vmatprep.subr.mxu0 0.0
      %415 = vmatpush1.msra.mxu0 0.0
      %416 = vmatprep.subr.mxu0 0.0
      %417 = vmatpush1.msra.mxu0 0.0
      %418 = vmatprep.subr.mxu0 0.0
      %419 = vmatpush1.msra.mxu0 0.0
      %420 = vmatprep.subr.mxu0 0.0
      %421 = vmatpush1.msra.mxu0 0.0
      %422 = vmatprep.subr.mxu0 0.0
      %423 = vmatpush1.msra.mxu0 0.0
      %424 = vmatprep.subr.mxu0 0.0
      %425 = vmatpush1.msra.mxu0 0.0
      %426 = vmatprep.subr.mxu0 0.0
      %427 = vmatpush1.msra.mxu0 0.0
      %428 = vmatprep.subr.mxu0 0.0
      %429 = vmatpush1.msra.mxu0 0.0
      %430 = vmatprep.subr.mxu0 0.0
      %431 = vmatpush1.msra.mxu0 0.0
      %432 = vmatprep.subr.mxu0 0.0
      %433 = vmatpush1.msra.mxu0 0.0
      %434 = vmatprep.mubr.f32.mxu0 0.0
      %435 = vmatmul.mubr.f32.gmra.mrb[0].mxu0 %v353
      %v436 = vpop.f32.mrb[0].mxu0
      %v437 = vadd.f32 0.0, %v436
      %v438 = vpop.f32.mrb[0].mxu0
      %439 = vdwg.mxu0
      %v440 = vadd.f32 %v352, %v437
      %441 = vst [vmem:[#allocation14] sm:$0x3] %v440
    $region61: #{tpu_custom_call.1} parent=1 // pred_fallthru
      _
    %v442 = vld [vmem:[#allocation14] sm:$0x3]
    %v443 = vld [vmem:[#allocation2] sm:$0xff]
    %v444 = vld [vmem:[#allocation2 + $0x8] sm:$0xff]
    %v445 = vld [vmem:[#allocation2 + $0x10] sm:$0xff]
    %v446 = vld [vmem:[#allocation2 + $0x18] sm:$0xff]
    %v447 = vld [vmem:[#allocation2 + $0x20] sm:$0xff]
    %v448 = vld [vmem:[#allocation2 + $0x28] sm:$0xff]
    %v449 = vld [vmem:[#allocation2 + $0x30] sm:$0xff]
    %v450 = vld [vmem:[#allocation2 + $0x38] sm:$0xff]
    %v451 = vld [vmem:[#allocation2 + $0x40] sm:$0xff]
    %v452 = vld [vmem:[#allocation2 + $0x48] sm:$0xff]
    %v453 = vld [vmem:[#allocation2 + $0x50] sm:$0xff]
    %v454 = vld [vmem:[#allocation2 + $0x58] sm:$0xff]
    %v455 = vld [vmem:[#allocation8] sm:$0xff]
    %v456 = vld [vmem:[#allocation8 + $0x8] sm:$0xff]
    %v457 = vld [vmem:[#allocation8 + $0x10] sm:$0xff]
    %v458 = vld [vmem:[#allocation8 + $0x18] sm:$0xff]
    %v459 = vld [vmem:[#allocation8 + $0x20] sm:$0xff]
    %v460 = vld [vmem:[#allocation8 + $0x28] sm:$0xff]
    %v461 = vld [vmem:[#allocation8 + $0x30] sm:$0xff]
    %v462 = vld [vmem:[#allocation8 + $0x38] sm:$0xff]
    %v463 = vld [vmem:[#allocation8 + $0x40] sm:$0xff]
    %v464 = vld [vmem:[#allocation8 + $0x48] sm:$0xff]
    %v465 = vld [vmem:[#allocation8 + $0x50] sm:$0xff]
    %v466 = vld [vmem:[#allocation8 + $0x58] sm:$0xff]
    %v467 = vld [vmem:[#allocation8 + $0x60] sm:$0xff]
    %v468 = vld [vmem:[#allocation8 + $0x68] sm:$0xff]
    %v469 = vld [vmem:[#allocation8 + $0x70] sm:$0xff]
    %v470 = vld [vmem:[#allocation8 + $0x78] sm:$0xff]
    %v471 = vld [vmem:[#allocation8 + $0x80] sm:$0xff]
    %v472 = vld [vmem:[#allocation8 + $0x88] sm:$0xff]
    %v473 = vld [vmem:[#allocation8 + $0x90] sm:$0xff]
    %v474 = vld [vmem:[#allocation8 + $0x98] sm:$0xff]
    %v475 = vld [vmem:[#allocation8 + $0xa0] sm:$0xff]
    %v476 = vld [vmem:[#allocation8 + $0xa8] sm:$0xff]
    %v477 = vld [vmem:[#allocation8 + $0xb0] sm:$0xff]
    %v478 = vld [vmem:[#allocation8 + $0xb8] sm:$0xff]
    %v479 = vld [vmem:[#allocation8 + $0xc0] sm:$0xff]
    %v480 = vld [vmem:[#allocation8 + $0xc8] sm:$0xff]
    %v481 = vld [vmem:[#allocation8 + $0xd0] sm:$0xff]
    %v482 = vld [vmem:[#allocation8 + $0xd8] sm:$0xff]
    %v483 = vld [vmem:[#allocation8 + $0xe0] sm:$0xff]
    %v484 = vld [vmem:[#allocation8 + $0xe8] sm:$0xff]
    %v485 = vld [vmem:[#allocation8 + $0xf0] sm:$0xff]
    %v486 = vld [vmem:[#allocation8 + $0xf8] sm:$0xff]
    %v487 = vld [vmem:[#allocation8 + $0x100] sm:$0xff]
    %v488 = vld [vmem:[#allocation8 + $0x108] sm:$0xff]
    %v489 = vld [vmem:[#allocation8 + $0x110] sm:$0xff]
    %v490 = vld [vmem:[#allocation8 + $0x118] sm:$0xff]
    %v491 = vld [vmem:[#allocation8 + $0x120] sm:$0xff]
    %v492 = vld [vmem:[#allocation8 + $0x128] sm:$0xff]
    %v493 = vld [vmem:[#allocation8 + $0x130] sm:$0xff]
    %v494 = vld [vmem:[#allocation8 + $0x138] sm:$0xff]
    %v495 = vld [vmem:[#allocation8 + $0x140] sm:$0xff]
    %v496 = vld [vmem:[#allocation8 + $0x148] sm:$0xff]
    %v497 = vld [vmem:[#allocation8 + $0x150] sm:$0xff]
    %v498 = vld [vmem:[#allocation8 + $0x158] sm:$0xff]
    %v499 = vld [vmem:[#allocation8 + $0x160] sm:$0xff]
    %v500 = vld [vmem:[#allocation8 + $0x168] sm:$0xff]
    %v501 = vld [vmem:[#allocation8 + $0x170] sm:$0xff]
    %v502 = vld [vmem:[#allocation8 + $0x178] sm:$0xff]
    %v503 = vld [vmem:[#allocation8 + $0x180] sm:$0xff]
    %v504 = vld [vmem:[#allocation8 + $0x188] sm:$0xff]
    %v505 = vld [vmem:[#allocation8 + $0x190] sm:$0xff]
    %v506 = vld [vmem:[#allocation8 + $0x198] sm:$0xff]
    %v507 = vld [vmem:[#allocation8 + $0x1a0] sm:$0xff]
    %v508 = vld [vmem:[#allocation8 + $0x1a8] sm:$0xff]
    %v509 = vld [vmem:[#allocation8 + $0x1b0] sm:$0xff]
    %v510 = vld [vmem:[#allocation8 + $0x1b8] sm:$0xff]
    %v511 = vld [vmem:[#allocation8 + $0x1c0] sm:$0xff]
    %v512 = vld [vmem:[#allocation8 + $0x1c8] sm:$0xff]
    %v513 = vld [vmem:[#allocation8 + $0x1d0] sm:$0xff]
    %v514 = vld [vmem:[#allocation8 + $0x1d8] sm:$0xff]
    %v515 = vld [vmem:[#allocation8 + $0x1e0] sm:$0xff]
    %v516 = vld [vmem:[#allocation8 + $0x1e8] sm:$0xff]
    %v517 = vld [vmem:[#allocation8 + $0x1f0] sm:$0xff]
    %v518 = vld [vmem:[#allocation8 + $0x1f8] sm:$0xff]
    %v519 = vld [vmem:[#allocation8 + $0x200] sm:$0xff]
    %v520 = vld [vmem:[#allocation8 + $0x208] sm:$0xff]
    %v521 = vld [vmem:[#allocation8 + $0x210] sm:$0xff]
    %v522 = vld [vmem:[#allocation8 + $0x218] sm:$0xff]
    %v523 = vld [vmem:[#allocation8 + $0x220] sm:$0xff]
    %v524 = vld [vmem:[#allocation8 + $0x228] sm:$0xff]
    %v525 = vld [vmem:[#allocation8 + $0x230] sm:$0xff]
    %v526 = vld [vmem:[#allocation8 + $0x238] sm:$0xff]
    %v527 = vld [vmem:[#allocation8 + $0x240] sm:$0xff]
    %v528 = vld [vmem:[#allocation8 + $0x248] sm:$0xff]
    %v529 = vld [vmem:[#allocation8 + $0x250] sm:$0xff]
    %v530 = vld [vmem:[#allocation8 + $0x258] sm:$0xff]
    %v531 = vld [vmem:[#allocation8 + $0x260] sm:$0xff]
    %v532 = vld [vmem:[#allocation8 + $0x268] sm:$0xff]
    %v533 = vld [vmem:[#allocation8 + $0x270] sm:$0xff]
    %v534 = vld [vmem:[#allocation8 + $0x278] sm:$0xff]
    %v535 = vld [vmem:[#allocation8 + $0x280] sm:$0xff]
    %v536 = vld [vmem:[#allocation8 + $0x288] sm:$0xff]
    %v537 = vld [vmem:[#allocation8 + $0x290] sm:$0xff]
    %v538 = vld [vmem:[#allocation8 + $0x298] sm:$0xff]
    %v539 = vld [vmem:[#allocation8 + $0x2a0] sm:$0xff]
    %v540 = vld [vmem:[#allocation8 + $0x2a8] sm:$0xff]
    %v541 = vld [vmem:[#allocation8 + $0x2b0] sm:$0xff]
    %v542 = vld [vmem:[#allocation8 + $0x2b8] sm:$0xff]
    %v543 = vld [vmem:[#allocation8 + $0x2c0] sm:$0xff]
    %v544 = vld [vmem:[#allocation8 + $0x2c8] sm:$0xff]
    %v545 = vld [vmem:[#allocation8 + $0x2d0] sm:$0xff]
    %v546 = vld [vmem:[#allocation8 + $0x2d8] sm:$0xff]
    %v547 = vld [vmem:[#allocation8 + $0x2e0] sm:$0xff]
    %v548 = vld [vmem:[#allocation8 + $0x2e8] sm:$0xff]
    %v549 = vld [vmem:[#allocation8 + $0x2f0] sm:$0xff]
    %v550 = vld [vmem:[#allocation8 + $0x2f8] sm:$0xff]
    %v551 = vld [vmem:[#allocation8 + $0x300] sm:$0xff]
    %v552 = vld [vmem:[#allocation8 + $0x308] sm:$0xff]
    %v553 = vld [vmem:[#allocation8 + $0x310] sm:$0xff]
    %v554 = vld [vmem:[#allocation8 + $0x318] sm:$0xff]
    %v555 = vld [vmem:[#allocation8 + $0x320] sm:$0xff]
    %v556 = vld [vmem:[#allocation8 + $0x328] sm:$0xff]
    %v557 = vld [vmem:[#allocation8 + $0x330] sm:$0xff]
    %v558 = vld [vmem:[#allocation8 + $0x338] sm:$0xff]
    %v559 = vld [vmem:[#allocation8 + $0x340] sm:$0xff]
    %v560 = vld [vmem:[#allocation8 + $0x348] sm:$0xff]
    %v561 = vld [vmem:[#allocation8 + $0x350] sm:$0xff]
    %v562 = vld [vmem:[#allocation8 + $0x358] sm:$0xff]
    %v563 = vld [vmem:[#allocation8 + $0x360] sm:$0xff]
    %v564 = vld [vmem:[#allocation8 + $0x368] sm:$0xff]
    %v565 = vld [vmem:[#allocation8 + $0x370] sm:$0xff]
    %v566 = vld [vmem:[#allocation8 + $0x378] sm:$0xff]
    %v567 = vld [vmem:[#allocation8 + $0x380] sm:$0xff]
    %v568 = vld [vmem:[#allocation8 + $0x388] sm:$0xff]
    %v569 = vld [vmem:[#allocation8 + $0x390] sm:$0xff]
    %v570 = vld [vmem:[#allocation8 + $0x398] sm:$0xff]
    %v571 = vld [vmem:[#allocation8 + $0x3a0] sm:$0xff]
    %v572 = vld [vmem:[#allocation8 + $0x3a8] sm:$0xff]
    %v573 = vld [vmem:[#allocation8 + $0x3b0] sm:$0xff]
    %v574 = vld [vmem:[#allocation8 + $0x3b8] sm:$0xff]
    %v575 = vld [vmem:[#allocation8 + $0x3c0] sm:$0xff]
    %v576 = vld [vmem:[#allocation8 + $0x3c8] sm:$0xff]
    %v577 = vld [vmem:[#allocation8 + $0x3d0] sm:$0xff]
    %v578 = vld [vmem:[#allocation8 + $0x3d8] sm:$0xff]
    %v579 = vld [vmem:[#allocation8 + $0x3e0] sm:$0xff]
    %v580 = vld [vmem:[#allocation8 + $0x3e8] sm:$0xff]
    %v581 = vld [vmem:[#allocation8 + $0x3f0] sm:$0xff]
    %v582 = vld [vmem:[#allocation8 + $0x3f8] sm:$0xff]
    %v583 = vld [vmem:[#allocation8 + $0x400] sm:$0xff]
    %v584 = vld [vmem:[#allocation8 + $0x408] sm:$0xff]
    %v585 = vld [vmem:[#allocation8 + $0x410] sm:$0xff]
    %v586 = vld [vmem:[#allocation8 + $0x418] sm:$0xff]
    %v587 = vld [vmem:[#allocation8 + $0x420] sm:$0xff]
    %v588 = vld [vmem:[#allocation8 + $0x428] sm:$0xff]
    %v589 = vld [vmem:[#allocation8 + $0x430] sm:$0xff]
    %v590 = vld [vmem:[#allocation8 + $0x438] sm:$0xff]
    %v591 = vld [vmem:[#allocation8 + $0x440] sm:$0xff]
    %v592 = vld [vmem:[#allocation8 + $0x448] sm:$0xff]
    %v593 = vld [vmem:[#allocation8 + $0x450] sm:$0xff]
    %v594 = vld [vmem:[#allocation8 + $0x458] sm:$0xff]
    %v595 = vld [vmem:[#allocation8 + $0x460] sm:$0xff]
    %v596 = vld [vmem:[#allocation8 + $0x468] sm:$0xff]
    %v597 = vld [vmem:[#allocation8 + $0x470] sm:$0xff]
    %v598 = vld [vmem:[#allocation8 + $0x478] sm:$0xff]
    %v599 = vld [vmem:[#allocation8 + $0x480] sm:$0xff]
    %v600 = vld [vmem:[#allocation8 + $0x488] sm:$0xff]
    %v601 = vld [vmem:[#allocation8 + $0x490] sm:$0xff]
    %v602 = vld [vmem:[#allocation8 + $0x498] sm:$0xff]
    %v603 = vld [vmem:[#allocation8 + $0x4a0] sm:$0xff]
    %v604 = vld [vmem:[#allocation8 + $0x4a8] sm:$0xff]
    %v605 = vld [vmem:[#allocation8 + $0x4b0] sm:$0xff]
    %v606 = vld [vmem:[#allocation8 + $0x4b8] sm:$0xff]
    %v607 = vld [vmem:[#allocation8 + $0x4c0] sm:$0xff]
    %v608 = vld [vmem:[#allocation8 + $0x4c8] sm:$0xff]
    %v609 = vld [vmem:[#allocation8 + $0x4d0] sm:$0xff]
    %v610 = vld [vmem:[#allocation8 + $0x4d8] sm:$0xff]
    %v611 = vld [vmem:[#allocation8 + $0x4e0] sm:$0xff]
    %v612 = vld [vmem:[#allocation8 + $0x4e8] sm:$0xff]
    %v613 = vld [vmem:[#allocation8 + $0x4f0] sm:$0xff]
    %v614 = vld [vmem:[#allocation8 + $0x4f8] sm:$0xff]
    %v615 = vld [vmem:[#allocation8 + $0x500] sm:$0xff]
    %v616 = vld [vmem:[#allocation8 + $0x508] sm:$0xff]
    %v617 = vld [vmem:[#allocation8 + $0x510] sm:$0xff]
    %v618 = vld [vmem:[#allocation8 + $0x518] sm:$0xff]
    %v619 = vld [vmem:[#allocation8 + $0x520] sm:$0xff]
    %v620 = vld [vmem:[#allocation8 + $0x528] sm:$0xff]
    %v621 = vld [vmem:[#allocation8 + $0x530] sm:$0xff]
    %v622 = vld [vmem:[#allocation8 + $0x538] sm:$0xff]
    %v623 = vld [vmem:[#allocation8 + $0x540] sm:$0xff]
    %v624 = vld [vmem:[#allocation8 + $0x548] sm:$0xff]
    %v625 = vld [vmem:[#allocation8 + $0x550] sm:$0xff]
    %v626 = vld [vmem:[#allocation8 + $0x558] sm:$0xff]
    %v627 = vld [vmem:[#allocation8 + $0x560] sm:$0xff]
    %v628 = vld [vmem:[#allocation8 + $0x568] sm:$0xff]
    %v629 = vld [vmem:[#allocation8 + $0x570] sm:$0xff]
    %v630 = vld [vmem:[#allocation8 + $0x578] sm:$0xff]
    %v631 = vld [vmem:[#allocation8 + $0x580] sm:$0xff]
    %v632 = vld [vmem:[#allocation8 + $0x588] sm:$0xff]
    %v633 = vld [vmem:[#allocation8 + $0x590] sm:$0xff]
    %v634 = vld [vmem:[#allocation8 + $0x598] sm:$0xff]
    %v635 = vld [vmem:[#allocation8 + $0x5a0] sm:$0xff]
    %v636 = vld [vmem:[#allocation8 + $0x5a8] sm:$0xff]
    %v637 = vld [vmem:[#allocation8 + $0x5b0] sm:$0xff]
    %v638 = vld [vmem:[#allocation8 + $0x5b8] sm:$0xff]
    %v639 = vld [vmem:[#allocation8 + $0x5c0] sm:$0xff]
    %v640 = vld [vmem:[#allocation8 + $0x5c8] sm:$0xff]
    %v641 = vld [vmem:[#allocation8 + $0x5d0] sm:$0xff]
    %v642 = vld [vmem:[#allocation8 + $0x5d8] sm:$0xff]
    %v643 = vld [vmem:[#allocation8 + $0x5e0] sm:$0xff]
    %v644 = vld [vmem:[#allocation8 + $0x5e8] sm:$0xff]
    %v645 = vld [vmem:[#allocation8 + $0x5f0] sm:$0xff]
    %v646 = vld [vmem:[#allocation8 + $0x5f8] sm:$0xff]
    %v647 = vld [vmem:[#allocation8 + $0x600] sm:$0xff]
    %v648 = vld [vmem:[#allocation8 + $0x608] sm:$0xff]
    %v649 = vld [vmem:[#allocation8 + $0x610] sm:$0xff]
    %v650 = vld [vmem:[#allocation8 + $0x618] sm:$0xff]
    %v651 = vld [vmem:[#allocation8 + $0x620] sm:$0xff]
    %v652 = vld [vmem:[#allocation8 + $0x628] sm:$0xff]
    %v653 = vld [vmem:[#allocation8 + $0x630] sm:$0xff]
    %v654 = vld [vmem:[#allocation8 + $0x638] sm:$0xff]
    %v655 = vld [vmem:[#allocation8 + $0x640] sm:$0xff]
    %v656 = vld [vmem:[#allocation8 + $0x648] sm:$0xff]
    %v657 = vld [vmem:[#allocation8 + $0x650] sm:$0xff]
    %v658 = vld [vmem:[#allocation8 + $0x658] sm:$0xff]
    %v659 = vld [vmem:[#allocation8 + $0x660] sm:$0xff]
    %v660 = vld [vmem:[#allocation8 + $0x668] sm:$0xff]
    %v661 = vld [vmem:[#allocation8 + $0x670] sm:$0xff]
    %v662 = vld [vmem:[#allocation8 + $0x678] sm:$0xff]
    %v663 = vld [vmem:[#allocation8 + $0x680] sm:$0xff]
    %v664 = vld [vmem:[#allocation8 + $0x688] sm:$0xff]
    %v665 = vld [vmem:[#allocation8 + $0x690] sm:$0xff]
    %v666 = vld [vmem:[#allocation8 + $0x698] sm:$0xff]
    %v667 = vld [vmem:[#allocation8 + $0x6a0] sm:$0xff]
    %v668 = vld [vmem:[#allocation8 + $0x6a8] sm:$0xff]
    %v669 = vld [vmem:[#allocation8 + $0x6b0] sm:$0xff]
    %v670 = vld [vmem:[#allocation8 + $0x6b8] sm:$0xff]
    %v671 = vld [vmem:[#allocation8 + $0x6c0] sm:$0xff]
    %v672 = vld [vmem:[#allocation8 + $0x6c8] sm:$0xff]
    %v673 = vld [vmem:[#allocation8 + $0x6d0] sm:$0xff]
    %v674 = vld [vmem:[#allocation8 + $0x6d8] sm:$0xff]
    %v675 = vld [vmem:[#allocation8 + $0x6e0] sm:$0xff]
    %v676 = vld [vmem:[#allocation8 + $0x6e8] sm:$0xff]
    %v677 = vld [vmem:[#allocation8 + $0x6f0] sm:$0xff]
    %v678 = vld [vmem:[#allocation8 + $0x6f8] sm:$0xff]
    %v679 = vld [vmem:[#allocation8 + $0x700] sm:$0xff]
    %v680 = vld [vmem:[#allocation8 + $0x708] sm:$0xff]
    %v681 = vld [vmem:[#allocation8 + $0x710] sm:$0xff]
    %v682 = vld [vmem:[#allocation8 + $0x718] sm:$0xff]
    %v683 = vld [vmem:[#allocation8 + $0x720] sm:$0xff]
    %v684 = vld [vmem:[#allocation8 + $0x728] sm:$0xff]
    %v685 = vld [vmem:[#allocation8 + $0x730] sm:$0xff]
    %v686 = vld [vmem:[#allocation8 + $0x738] sm:$0xff]
    %v687 = vld [vmem:[#allocation8 + $0x740] sm:$0xff]
    %v688 = vld [vmem:[#allocation8 + $0x748] sm:$0xff]
    %v689 = vld [vmem:[#allocation8 + $0x750] sm:$0xff]
    %v690 = vld [vmem:[#allocation8 + $0x758] sm:$0xff]
    %v691 = vld [vmem:[#allocation8 + $0x760] sm:$0xff]
    %v692 = vld [vmem:[#allocation8 + $0x768] sm:$0xff]
    %v693 = vld [vmem:[#allocation8 + $0x770] sm:$0xff]
    %v694 = vld [vmem:[#allocation8 + $0x778] sm:$0xff]
    %v695 = vld [vmem:[#allocation8 + $0x780] sm:$0xff]
    %v696 = vld [vmem:[#allocation8 + $0x788] sm:$0xff]
    %v697 = vld [vmem:[#allocation8 + $0x790] sm:$0xff]
    %v698 = vld [vmem:[#allocation8 + $0x798] sm:$0xff]
    %v699 = vld [vmem:[#allocation8 + $0x7a0] sm:$0xff]
    %v700 = vld [vmem:[#allocation8 + $0x7a8] sm:$0xff]
    %v701 = vld [vmem:[#allocation8 + $0x7b0] sm:$0xff]
    %v702 = vld [vmem:[#allocation8 + $0x7b8] sm:$0xff]
    %v703 = vld [vmem:[#allocation8 + $0x7c0] sm:$0xff]
    %v704 = vld [vmem:[#allocation8 + $0x7c8] sm:$0xff]
    %v705 = vld [vmem:[#allocation8 + $0x7d0] sm:$0xff]
    %v706 = vld [vmem:[#allocation8 + $0x7d8] sm:$0xff]
    %v707 = vld [vmem:[#allocation8 + $0x7e0] sm:$0xff]
    %v708 = vld [vmem:[#allocation8 + $0x7e8] sm:$0xff]
    %v709 = vld [vmem:[#allocation8 + $0x7f0] sm:$0xff]
    %v710 = vld [vmem:[#allocation8 + $0x7f8] sm:$0xff]
    %v711 = vld [vmem:[#allocation8 + $0x800] sm:$0xff]
    %v712 = vld [vmem:[#allocation8 + $0x808] sm:$0xff]
    %v713 = vld [vmem:[#allocation8 + $0x810] sm:$0xff]
    %v714 = vld [vmem:[#allocation8 + $0x818] sm:$0xff]
    %v715 = vld [vmem:[#allocation8 + $0x820] sm:$0xff]
    %v716 = vld [vmem:[#allocation8 + $0x828] sm:$0xff]
    %v717 = vld [vmem:[#allocation8 + $0x830] sm:$0xff]
    %v718 = vld [vmem:[#allocation8 + $0x838] sm:$0xff]
    %v719 = vld [vmem:[#allocation8 + $0x840] sm:$0xff]
    %v720 = vld [vmem:[#allocation8 + $0x848] sm:$0xff]
    %v721 = vld [vmem:[#allocation8 + $0x850] sm:$0xff]
    %v722 = vld [vmem:[#allocation8 + $0x858] sm:$0xff]
    %v723 = vld [vmem:[#allocation8 + $0x860] sm:$0xff]
    %v724 = vld [vmem:[#allocation8 + $0x868] sm:$0xff]
    %v725 = vld [vmem:[#allocation8 + $0x870] sm:$0xff]
    %v726 = vld [vmem:[#allocation8 + $0x878] sm:$0xff]
    %v727 = vld [vmem:[#allocation8 + $0x880] sm:$0xff]
    %v728 = vld [vmem:[#allocation8 + $0x888] sm:$0xff]
    %v729 = vld [vmem:[#allocation8 + $0x890] sm:$0xff]
    %v730 = vld [vmem:[#allocation8 + $0x898] sm:$0xff]
    %v731 = vld [vmem:[#allocation8 + $0x8a0] sm:$0xff]
    %v732 = vld [vmem:[#allocation8 + $0x8a8] sm:$0xff]
    %v733 = vld [vmem:[#allocation8 + $0x8b0] sm:$0xff]
    %v734 = vld [vmem:[#allocation8 + $0x8b8] sm:$0xff]
    %v735 = vld [vmem:[#allocation8 + $0x8c0] sm:$0xff]
    %v736 = vld [vmem:[#allocation8 + $0x8c8] sm:$0xff]
    %v737 = vld [vmem:[#allocation8 + $0x8d0] sm:$0xff]
    %v738 = vld [vmem:[#allocation8 + $0x8d8] sm:$0xff]
    %v739 = vld [vmem:[#allocation8 + $0x8e0] sm:$0xff]
    %v740 = vld [vmem:[#allocation8 + $0x8e8] sm:$0xff]
    %v741 = vld [vmem:[#allocation8 + $0x8f0] sm:$0xff]
    %v742 = vld [vmem:[#allocation8 + $0x8f8] sm:$0xff]
    %v743 = vld [vmem:[#allocation8 + $0x900] sm:$0xff]
    %v744 = vld [vmem:[#allocation8 + $0x908] sm:$0xff]
    %v745 = vld [vmem:[#allocation8 + $0x910] sm:$0xff]
    %v746 = vld [vmem:[#allocation8 + $0x918] sm:$0xff]
    %v747 = vld [vmem:[#allocation8 + $0x920] sm:$0xff]
    %v748 = vld [vmem:[#allocation8 + $0x928] sm:$0xff]
    %v749 = vld [vmem:[#allocation8 + $0x930] sm:$0xff]
    %v750 = vld [vmem:[#allocation8 + $0x938] sm:$0xff]
    %v751 = vld [vmem:[#allocation8 + $0x940] sm:$0xff]
    %v752 = vld [vmem:[#allocation8 + $0x948] sm:$0xff]
    %v753 = vld [vmem:[#allocation8 + $0x950] sm:$0xff]
    %v754 = vld [vmem:[#allocation8 + $0x958] sm:$0xff]
    %v755 = vld [vmem:[#allocation8 + $0x960] sm:$0xff]
    %v756 = vld [vmem:[#allocation8 + $0x968] sm:$0xff]
    %v757 = vld [vmem:[#allocation8 + $0x970] sm:$0xff]
    %v758 = vld [vmem:[#allocation8 + $0x978] sm:$0xff]
    %v759 = vld [vmem:[#allocation8 + $0x980] sm:$0xff]
    %v760 = vld [vmem:[#allocation8 + $0x988] sm:$0xff]
    %v761 = vld [vmem:[#allocation8 + $0x990] sm:$0xff]
    %v762 = vld [vmem:[#allocation8 + $0x998] sm:$0xff]
    %v763 = vld [vmem:[#allocation8 + $0x9a0] sm:$0xff]
    %v764 = vld [vmem:[#allocation8 + $0x9a8] sm:$0xff]
    %v765 = vld [vmem:[#allocation8 + $0x9b0] sm:$0xff]
    %v766 = vld [vmem:[#allocation8 + $0x9b8] sm:$0xff]
    %v767 = vld [vmem:[#allocation8 + $0x9c0] sm:$0xff]
    %v768 = vld [vmem:[#allocation8 + $0x9c8] sm:$0xff]
    %v769 = vld [vmem:[#allocation8 + $0x9d0] sm:$0xff]
    %v770 = vld [vmem:[#allocation8 + $0x9d8] sm:$0xff]
    %v771 = vld [vmem:[#allocation8 + $0x9e0] sm:$0xff]
    %v772 = vld [vmem:[#allocation8 + $0x9e8] sm:$0xff]
    %v773 = vld [vmem:[#allocation8 + $0x9f0] sm:$0xff]
    %v774 = vld [vmem:[#allocation8 + $0x9f8] sm:$0xff]
    %v775 = vld [vmem:[#allocation8 + $0xa00] sm:$0xff]
    %v776 = vld [vmem:[#allocation8 + $0xa08] sm:$0xff]
    %v777 = vld [vmem:[#allocation8 + $0xa10] sm:$0xff]
    %v778 = vld [vmem:[#allocation8 + $0xa18] sm:$0xff]
    %v779 = vld [vmem:[#allocation8 + $0xa20] sm:$0xff]
    %v780 = vld [vmem:[#allocation8 + $0xa28] sm:$0xff]
    %v781 = vld [vmem:[#allocation8 + $0xa30] sm:$0xff]
    %v782 = vld [vmem:[#allocation8 + $0xa38] sm:$0xff]
    %v783 = vld [vmem:[#allocation8 + $0xa40] sm:$0xff]
    %v784 = vld [vmem:[#allocation8 + $0xa48] sm:$0xff]
    %v785 = vld [vmem:[#allocation8 + $0xa50] sm:$0xff]
    %v786 = vld [vmem:[#allocation8 + $0xa58] sm:$0xff]
    %v787 = vld [vmem:[#allocation8 + $0xa60] sm:$0xff]
    %v788 = vld [vmem:[#allocation8 + $0xa68] sm:$0xff]
    %v789 = vld [vmem:[#allocation8 + $0xa70] sm:$0xff]
    %v790 = vld [vmem:[#allocation8 + $0xa78] sm:$0xff]
    %v791 = vld [vmem:[#allocation8 + $0xa80] sm:$0xff]
    %v792 = vld [vmem:[#allocation8 + $0xa88] sm:$0xff]
    %v793 = vld [vmem:[#allocation8 + $0xa90] sm:$0xff]
    %v794 = vld [vmem:[#allocation8 + $0xa98] sm:$0xff]
    %v795 = vld [vmem:[#allocation8 + $0xaa0] sm:$0xff]
    %v796 = vld [vmem:[#allocation8 + $0xaa8] sm:$0xff]
    %v797 = vld [vmem:[#allocation8 + $0xab0] sm:$0xff]
    %v798 = vld [vmem:[#allocation8 + $0xab8] sm:$0xff]
    %v799 = vld [vmem:[#allocation8 + $0xac0] sm:$0xff]
    %v800 = vld [vmem:[#allocation8 + $0xac8] sm:$0xff]
    %v801 = vld [vmem:[#allocation8 + $0xad0] sm:$0xff]
    %v802 = vld [vmem:[#allocation8 + $0xad8] sm:$0xff]
    %v803 = vld [vmem:[#allocation8 + $0xae0] sm:$0xff]
    %v804 = vld [vmem:[#allocation8 + $0xae8] sm:$0xff]
    %v805 = vld [vmem:[#allocation8 + $0xaf0] sm:$0xff]
    %v806 = vld [vmem:[#allocation8 + $0xaf8] sm:$0xff]
    %v807 = vld [vmem:[#allocation8 + $0xb00] sm:$0xff]
    %v808 = vld [vmem:[#allocation8 + $0xb08] sm:$0xff]
    %v809 = vld [vmem:[#allocation8 + $0xb10] sm:$0xff]
    %v810 = vld [vmem:[#allocation8 + $0xb18] sm:$0xff]
    %v811 = vld [vmem:[#allocation8 + $0xb20] sm:$0xff]
    %v812 = vld [vmem:[#allocation8 + $0xb28] sm:$0xff]
    %v813 = vld [vmem:[#allocation8 + $0xb30] sm:$0xff]
    %v814 = vld [vmem:[#allocation8 + $0xb38] sm:$0xff]
    %v815 = vld [vmem:[#allocation8 + $0xb40] sm:$0xff]
    %v816 = vld [vmem:[#allocation8 + $0xb48] sm:$0xff]
    %v817 = vld [vmem:[#allocation8 + $0xb50] sm:$0xff]
    %v818 = vld [vmem:[#allocation8 + $0xb58] sm:$0xff]
    %v819 = vld [vmem:[#allocation8 + $0xb60] sm:$0xff]
    %v820 = vld [vmem:[#allocation8 + $0xb68] sm:$0xff]
    %v821 = vld [vmem:[#allocation8 + $0xb70] sm:$0xff]
    %v822 = vld [vmem:[#allocation8 + $0xb78] sm:$0xff]
    %v823 = vld [vmem:[#allocation8 + $0xb80] sm:$0xff]
    %v824 = vld [vmem:[#allocation8 + $0xb88] sm:$0xff]
    %v825 = vld [vmem:[#allocation8 + $0xb90] sm:$0xff]
    %v826 = vld [vmem:[#allocation8 + $0xb98] sm:$0xff]
    %v827 = vld [vmem:[#allocation8 + $0xba0] sm:$0xff]
    %v828 = vld [vmem:[#allocation8 + $0xba8] sm:$0xff]
    %v829 = vld [vmem:[#allocation8 + $0xbb0] sm:$0xff]
    %v830 = vld [vmem:[#allocation8 + $0xbb8] sm:$0xff]
    %v831 = vld [vmem:[#allocation8 + $0xbc0] sm:$0xff]
    %v832 = vld [vmem:[#allocation8 + $0xbc8] sm:$0xff]
    %v833 = vld [vmem:[#allocation8 + $0xbd0] sm:$0xff]
    %v834 = vld [vmem:[#allocation8 + $0xbd8] sm:$0xff]
    %v835 = vld [vmem:[#allocation8 + $0xbe0] sm:$0xff]
    %v836 = vld [vmem:[#allocation8 + $0xbe8] sm:$0xff]
    %v837 = vld [vmem:[#allocation8 + $0xbf0] sm:$0xff]
    %v838 = vld [vmem:[#allocation8 + $0xbf8] sm:$0xff]
    %v839 = vld [vmem:[#allocation8 + $0xc00] sm:$0xff]
    %v840 = vld [vmem:[#allocation8 + $0xc08] sm:$0xff]
    %v841 = vld [vmem:[#allocation8 + $0xc10] sm:$0xff]
    %v842 = vld [vmem:[#allocation8 + $0xc18] sm:$0xff]
    %v843 = vld [vmem:[#allocation8 + $0xc20] sm:$0xff]
    %v844 = vld [vmem:[#allocation8 + $0xc28] sm:$0xff]
    %v845 = vld [vmem:[#allocation8 + $0xc30] sm:$0xff]
    %v846 = vld [vmem:[#allocation8 + $0xc38] sm:$0xff]
    %v847 = vld [vmem:[#allocation8 + $0xc40] sm:$0xff]
    %v848 = vld [vmem:[#allocation8 + $0xc48] sm:$0xff]
    %v849 = vld [vmem:[#allocation8 + $0xc50] sm:$0xff]
    %v850 = vld [vmem:[#allocation8 + $0xc58] sm:$0xff]
    %v851 = vld [vmem:[#allocation8 + $0xc60] sm:$0xff]
    %v852 = vld [vmem:[#allocation8 + $0xc68] sm:$0xff]
    %v853 = vld [vmem:[#allocation8 + $0xc70] sm:$0xff]
    %v854 = vld [vmem:[#allocation8 + $0xc78] sm:$0xff]
    %v855 = vld [vmem:[#allocation8 + $0xc80] sm:$0xff]
    %v856 = vld [vmem:[#allocation8 + $0xc88] sm:$0xff]
    %v857 = vld [vmem:[#allocation8 + $0xc90] sm:$0xff]
    %v858 = vld [vmem:[#allocation8 + $0xc98] sm:$0xff]
    %v859 = vld [vmem:[#allocation8 + $0xca0] sm:$0xff]
    %v860 = vld [vmem:[#allocation8 + $0xca8] sm:$0xff]
    %v861 = vld [vmem:[#allocation8 + $0xcb0] sm:$0xff]
    %v862 = vld [vmem:[#allocation8 + $0xcb8] sm:$0xff]
    %v863 = vld [vmem:[#allocation8 + $0xcc0] sm:$0xff]
    %v864 = vld [vmem:[#allocation8 + $0xcc8] sm:$0xff]
    %v865 = vld [vmem:[#allocation8 + $0xcd0] sm:$0xff]
    %v866 = vld [vmem:[#allocation8 + $0xcd8] sm:$0xff]
    %v867 = vld [vmem:[#allocation8 + $0xce0] sm:$0xff]
    %v868 = vld [vmem:[#allocation8 + $0xce8] sm:$0xff]
    %v869 = vld [vmem:[#allocation8 + $0xcf0] sm:$0xff]
    %v870 = vld [vmem:[#allocation8 + $0xcf8] sm:$0xff]
    %v871 = vld [vmem:[#allocation8 + $0xd00] sm:$0xff]
    %v872 = vld [vmem:[#allocation8 + $0xd08] sm:$0xff]
    %v873 = vld [vmem:[#allocation8 + $0xd10] sm:$0xff]
    %v874 = vld [vmem:[#allocation8 + $0xd18] sm:$0xff]
    %v875 = vld [vmem:[#allocation8 + $0xd20] sm:$0xff]
    %v876 = vld [vmem:[#allocation8 + $0xd28] sm:$0xff]
    %v877 = vld [vmem:[#allocation8 + $0xd30] sm:$0xff]
    %v878 = vld [vmem:[#allocation8 + $0xd38] sm:$0xff]
    %v879 = vld [vmem:[#allocation8 + $0xd40] sm:$0xff]
    %v880 = vld [vmem:[#allocation8 + $0xd48] sm:$0xff]
    %v881 = vld [vmem:[#allocation8 + $0xd50] sm:$0xff]
    %v882 = vld [vmem:[#allocation8 + $0xd58] sm:$0xff]
    %v883 = vld [vmem:[#allocation8 + $0xd60] sm:$0xff]
    %v884 = vld [vmem:[#allocation8 + $0xd68] sm:$0xff]
    %v885 = vld [vmem:[#allocation8 + $0xd70] sm:$0xff]
    %v886 = vld [vmem:[#allocation8 + $0xd78] sm:$0xff]
    %v887 = vld [vmem:[#allocation8 + $0xd80] sm:$0xff]
    %v888 = vld [vmem:[#allocation8 + $0xd88] sm:$0xff]
    %v889 = vld [vmem:[#allocation8 + $0xd90] sm:$0xff]
    %v890 = vld [vmem:[#allocation8 + $0xd98] sm:$0xff]
    %v891 = vld [vmem:[#allocation8 + $0xda0] sm:$0xff]
    %v892 = vld [vmem:[#allocation8 + $0xda8] sm:$0xff]
    %v893 = vld [vmem:[#allocation8 + $0xdb0] sm:$0xff]
    %v894 = vld [vmem:[#allocation8 + $0xdb8] sm:$0xff]
    %v895 = vld [vmem:[#allocation8 + $0xdc0] sm:$0xff]
    %v896 = vld [vmem:[#allocation8 + $0xdc8] sm:$0xff]
    %v897 = vld [vmem:[#allocation8 + $0xdd0] sm:$0xff]
    %v898 = vld [vmem:[#allocation8 + $0xdd8] sm:$0xff]
    %v899 = vld [vmem:[#allocation8 + $0xde0] sm:$0xff]
    %v900 = vld [vmem:[#allocation8 + $0xde8] sm:$0xff]
    %v901 = vld [vmem:[#allocation8 + $0xdf0] sm:$0xff]
    %v902 = vld [vmem:[#allocation8 + $0xdf8] sm:$0xff]
    %v903 = vld [vmem:[#allocation8 + $0xe00] sm:$0xff]
    %v904 = vld [vmem:[#allocation8 + $0xe08] sm:$0xff]
    %v905 = vld [vmem:[#allocation8 + $0xe10] sm:$0xff]
    %v906 = vld [vmem:[#allocation8 + $0xe18] sm:$0xff]
    %v907 = vld [vmem:[#allocation8 + $0xe20] sm:$0xff]
    %v908 = vld [vmem:[#allocation8 + $0xe28] sm:$0xff]
    %v909 = vld [vmem:[#allocation8 + $0xe30] sm:$0xff]
    %v910 = vld [vmem:[#allocation8 + $0xe38] sm:$0xff]
    %v911 = vld [vmem:[#allocation8 + $0xe40] sm:$0xff]
    %v912 = vld [vmem:[#allocation8 + $0xe48] sm:$0xff]
    %v913 = vld [vmem:[#allocation8 + $0xe50] sm:$0xff]
    %v914 = vld [vmem:[#allocation8 + $0xe58] sm:$0xff]
    %v915 = vld [vmem:[#allocation8 + $0xe60] sm:$0xff]
    %v916 = vld [vmem:[#allocation8 + $0xe68] sm:$0xff]
    %v917 = vld [vmem:[#allocation8 + $0xe70] sm:$0xff]
    %v918 = vld [vmem:[#allocation8 + $0xe78] sm:$0xff]
    %v919 = vld [vmem:[#allocation8 + $0xe80] sm:$0xff]
    %v920 = vld [vmem:[#allocation8 + $0xe88] sm:$0xff]
    %v921 = vld [vmem:[#allocation8 + $0xe90] sm:$0xff]
    %v922 = vld [vmem:[#allocation8 + $0xe98] sm:$0xff]
    %v923 = vld [vmem:[#allocation8 + $0xea0] sm:$0xff]
    %v924 = vld [vmem:[#allocation8 + $0xea8] sm:$0xff]
    %v925 = vld [vmem:[#allocation8 + $0xeb0] sm:$0xff]
    %v926 = vld [vmem:[#allocation8 + $0xeb8] sm:$0xff]
    %v927 = vld [vmem:[#allocation8 + $0xec0] sm:$0xff]
    %v928 = vld [vmem:[#allocation8 + $0xec8] sm:$0xff]
    %v929 = vld [vmem:[#allocation8 + $0xed0] sm:$0xff]
    %v930 = vld [vmem:[#allocation8 + $0xed8] sm:$0xff]
    %v931 = vld [vmem:[#allocation8 + $0xee0] sm:$0xff]
    %v932 = vld [vmem:[#allocation8 + $0xee8] sm:$0xff]
    %v933 = vld [vmem:[#allocation8 + $0xef0] sm:$0xff]
    %v934 = vld [vmem:[#allocation8 + $0xef8] sm:$0xff]
    %v935 = vld [vmem:[#allocation8 + $0xf00] sm:$0xff]
    %v936 = vld [vmem:[#allocation8 + $0xf08] sm:$0xff]
    %v937 = vld [vmem:[#allocation8 + $0xf10] sm:$0xff]
    %v938 = vld [vmem:[#allocation8 + $0xf18] sm:$0xff]
    %v939 = vld [vmem:[#allocation8 + $0xf20] sm:$0xff]
    %v940 = vld [vmem:[#allocation8 + $0xf28] sm:$0xff]
    %v941 = vld [vmem:[#allocation8 + $0xf30] sm:$0xff]
    %v942 = vld [vmem:[#allocation8 + $0xf38] sm:$0xff]
    %v943 = vld [vmem:[#allocation8 + $0xf40] sm:$0xff]
    %v944 = vld [vmem:[#allocation8 + $0xf48] sm:$0xff]
    %v945 = vld [vmem:[#allocation8 + $0xf50] sm:$0xff]
    %v946 = vld [vmem:[#allocation8 + $0xf58] sm:$0xff]
    %v947 = vld [vmem:[#allocation8 + $0xf60] sm:$0xff]
    %v948 = vld [vmem:[#allocation8 + $0xf68] sm:$0xff]
    %v949 = vld [vmem:[#allocation8 + $0xf70] sm:$0xff]
    %v950 = vld [vmem:[#allocation8 + $0xf78] sm:$0xff]
    %v951 = vld [vmem:[#allocation8 + $0xf80] sm:$0xff]
    %v952 = vld [vmem:[#allocation8 + $0xf88] sm:$0xff]
    %v953 = vld [vmem:[#allocation8 + $0xf90] sm:$0xff]
    %v954 = vld [vmem:[#allocation8 + $0xf98] sm:$0xff]
    %v955 = vld [vmem:[#allocation8 + $0xfa0] sm:$0xff]
    %v956 = vld [vmem:[#allocation8 + $0xfa8] sm:$0xff]
    %v957 = vld [vmem:[#allocation8 + $0xfb0] sm:$0xff]
    %v958 = vld [vmem:[#allocation8 + $0xfb8] sm:$0xff]
    %v959 = vld [vmem:[#allocation8 + $0xfc0] sm:$0xff]
    %v960 = vld [vmem:[#allocation8 + $0xfc8] sm:$0xff]
    %v961 = vld [vmem:[#allocation8 + $0xfd0] sm:$0xff]
    %v962 = vld [vmem:[#allocation8 + $0xfd8] sm:$0xff]
    %v963 = vld [vmem:[#allocation8 + $0xfe0] sm:$0xff]
    %v964 = vld [vmem:[#allocation8 + $0xfe8] sm:$0xff]
    %v965 = vld [vmem:[#allocation8 + $0xff0] sm:$0xff]
    %v966 = vld [vmem:[#allocation8 + $0xff8] sm:$0xff]
    %v967 = vld [vmem:[#allocation8 + $0x1000] sm:$0xff]
    %v968 = vld [vmem:[#allocation8 + $0x1008] sm:$0xff]
    %v969 = vld [vmem:[#allocation8 + $0x1010] sm:$0xff]
    %v970 = vld [vmem:[#allocation8 + $0x1018] sm:$0xff]
    %v971 = vld [vmem:[#allocation8 + $0x1020] sm:$0xff]
    %v972 = vld [vmem:[#allocation8 + $0x1028] sm:$0xff]
    %v973 = vld [vmem:[#allocation8 + $0x1030] sm:$0xff]
    %v974 = vld [vmem:[#allocation8 + $0x1038] sm:$0xff]
    %v975 = vld [vmem:[#allocation8 + $0x1040] sm:$0xff]
    %v976 = vld [vmem:[#allocation8 + $0x1048] sm:$0xff]
    %v977 = vld [vmem:[#allocation8 + $0x1050] sm:$0xff]
    %v978 = vld [vmem:[#allocation8 + $0x1058] sm:$0xff]
    %v979 = vld [vmem:[#allocation8 + $0x1060] sm:$0xff]
    %v980 = vld [vmem:[#allocation8 + $0x1068] sm:$0xff]
    %v981 = vld [vmem:[#allocation8 + $0x1070] sm:$0xff]
    %v982 = vld [vmem:[#allocation8 + $0x1078] sm:$0xff]
    %v983 = vld [vmem:[#allocation8 + $0x1080] sm:$0xff]
    %v984 = vld [vmem:[#allocation8 + $0x1088] sm:$0xff]
    %v985 = vld [vmem:[#allocation8 + $0x1090] sm:$0xff]
    %v986 = vld [vmem:[#allocation8 + $0x1098] sm:$0xff]
    %v987 = vld [vmem:[#allocation8 + $0x10a0] sm:$0xff]
    %v988 = vld [vmem:[#allocation8 + $0x10a8] sm:$0xff]
    %v989 = vld [vmem:[#allocation8 + $0x10b0] sm:$0xff]
    %v990 = vld [vmem:[#allocation8 + $0x10b8] sm:$0xff]
    %v991 = vld [vmem:[#allocation8 + $0x10c0] sm:$0xff]
    %v992 = vld [vmem:[#allocation8 + $0x10c8] sm:$0xff]
    %v993 = vld [vmem:[#allocation8 + $0x10d0] sm:$0xff]
    %v994 = vld [vmem:[#allocation8 + $0x10d8] sm:$0xff]
    %v995 = vld [vmem:[#allocation8 + $0x10e0] sm:$0xff]
    %v996 = vld [vmem:[#allocation8 + $0x10e8] sm:$0xff]
    %v997 = vld [vmem:[#allocation8 + $0x10f0] sm:$0xff]
    %v998 = vld [vmem:[#allocation8 + $0x10f8] sm:$0xff]
    %v999 = vld [vmem:[#allocation8 + $0x1100] sm:$0xff]
    %v1000 = vld [vmem:[#allocation8 + $0x1108] sm:$0xff]
    %v1001 = vld [vmem:[#allocation8 + $0x1110] sm:$0xff]
    %v1002 = vld [vmem:[#allocation8 + $0x1118] sm:$0xff]
    %v1003 = vld [vmem:[#allocation8 + $0x1120] sm:$0xff]
    %v1004 = vld [vmem:[#allocation8 + $0x1128] sm:$0xff]
    %v1005 = vld [vmem:[#allocation8 + $0x1130] sm:$0xff]
    %v1006 = vld [vmem:[#allocation8 + $0x1138] sm:$0xff]
    %v1007 = vld [vmem:[#allocation8 + $0x1140] sm:$0xff]
    %v1008 = vld [vmem:[#allocation8 + $0x1148] sm:$0xff]
    %v1009 = vld [vmem:[#allocation8 + $0x1150] sm:$0xff]
    %v1010 = vld [vmem:[#allocation8 + $0x1158] sm:$0xff]
    %v1011 = vld [vmem:[#allocation8 + $0x1160] sm:$0xff]
    %v1012 = vld [vmem:[#allocation8 + $0x1168] sm:$0xff]
    %v1013 = vld [vmem:[#allocation8 + $0x1170] sm:$0xff]
    %v1014 = vld [vmem:[#allocation8 + $0x1178] sm:$0xff]
    %v1015 = vld [vmem:[#allocation8 + $0x1180] sm:$0xff]
    %v1016 = vld [vmem:[#allocation8 + $0x1188] sm:$0xff]
    %v1017 = vld [vmem:[#allocation8 + $0x1190] sm:$0xff]
    %v1018 = vld [vmem:[#allocation8 + $0x1198] sm:$0xff]
    %v1019 = vld [vmem:[#allocation8 + $0x11a0] sm:$0xff]
    %v1020 = vld [vmem:[#allocation8 + $0x11a8] sm:$0xff]
    %v1021 = vld [vmem:[#allocation8 + $0x11b0] sm:$0xff]
    %v1022 = vld [vmem:[#allocation8 + $0x11b8] sm:$0xff]
    %v1023 = vld [vmem:[#allocation8 + $0x11c0] sm:$0xff]
    %v1024 = vld [vmem:[#allocation8 + $0x11c8] sm:$0xff]
    %v1025 = vld [vmem:[#allocation8 + $0x11d0] sm:$0xff]
    %v1026 = vld [vmem:[#allocation8 + $0x11d8] sm:$0xff]
    %v1027 = vld [vmem:[#allocation8 + $0x11e0] sm:$0xff]
    %v1028 = vld [vmem:[#allocation8 + $0x11e8] sm:$0xff]
    %v1029 = vld [vmem:[#allocation8 + $0x11f0] sm:$0xff]
    %v1030 = vld [vmem:[#allocation8 + $0x11f8] sm:$0xff]
    %v1031 = vld [vmem:[#allocation8 + $0x1200] sm:$0xff]
    %v1032 = vld [vmem:[#allocation8 + $0x1208] sm:$0xff]
    %v1033 = vld [vmem:[#allocation8 + $0x1210] sm:$0xff]
    %v1034 = vld [vmem:[#allocation8 + $0x1218] sm:$0xff]
    %v1035 = vld [vmem:[#allocation8 + $0x1220] sm:$0xff]
    %v1036 = vld [vmem:[#allocation8 + $0x1228] sm:$0xff]
    %v1037 = vld [vmem:[#allocation8 + $0x1230] sm:$0xff]
    %v1038 = vld [vmem:[#allocation8 + $0x1238] sm:$0xff]
    %v1039 = vld [vmem:[#allocation8 + $0x1240] sm:$0xff]
    %v1040 = vld [vmem:[#allocation8 + $0x1248] sm:$0xff]
    %v1041 = vld [vmem:[#allocation8 + $0x1250] sm:$0xff]
    %v1042 = vld [vmem:[#allocation8 + $0x1258] sm:$0xff]
    %v1043 = vld [vmem:[#allocation8 + $0x1260] sm:$0xff]
    %v1044 = vld [vmem:[#allocation8 + $0x1268] sm:$0xff]
    %v1045 = vld [vmem:[#allocation8 + $0x1270] sm:$0xff]
    %v1046 = vld [vmem:[#allocation8 + $0x1278] sm:$0xff]
    %v1047 = vld [vmem:[#allocation8 + $0x1280] sm:$0xff]
    %v1048 = vld [vmem:[#allocation8 + $0x1288] sm:$0xff]
    %v1049 = vld [vmem:[#allocation8 + $0x1290] sm:$0xff]
    %v1050 = vld [vmem:[#allocation8 + $0x1298] sm:$0xff]
    %v1051 = vld [vmem:[#allocation8 + $0x12a0] sm:$0xff]
    %v1052 = vld [vmem:[#allocation8 + $0x12a8] sm:$0xff]
    %v1053 = vld [vmem:[#allocation8 + $0x12b0] sm:$0xff]
    %v1054 = vld [vmem:[#allocation8 + $0x12b8] sm:$0xff]
    %v1055 = vld [vmem:[#allocation8 + $0x12c0] sm:$0xff]
    %v1056 = vld [vmem:[#allocation8 + $0x12c8] sm:$0xff]
    %v1057 = vld [vmem:[#allocation8 + $0x12d0] sm:$0xff]
    %v1058 = vld [vmem:[#allocation8 + $0x12d8] sm:$0xff]
    %v1059 = vld [vmem:[#allocation8 + $0x12e0] sm:$0xff]
    %v1060 = vld [vmem:[#allocation8 + $0x12e8] sm:$0xff]
    %v1061 = vld [vmem:[#allocation8 + $0x12f0] sm:$0xff]
    %v1062 = vld [vmem:[#allocation8 + $0x12f8] sm:$0xff]
    %v1063 = vld [vmem:[#allocation8 + $0x1300] sm:$0xff]
    %v1064 = vld [vmem:[#allocation8 + $0x1308] sm:$0xff]
    %v1065 = vld [vmem:[#allocation8 + $0x1310] sm:$0xff]
    %v1066 = vld [vmem:[#allocation8 + $0x1318] sm:$0xff]
    %v1067 = vld [vmem:[#allocation8 + $0x1320] sm:$0xff]
    %v1068 = vld [vmem:[#allocation8 + $0x1328] sm:$0xff]
    %v1069 = vld [vmem:[#allocation8 + $0x1330] sm:$0xff]
    %v1070 = vld [vmem:[#allocation8 + $0x1338] sm:$0xff]
    %v1071 = vld [vmem:[#allocation8 + $0x1340] sm:$0xff]
    %v1072 = vld [vmem:[#allocation8 + $0x1348] sm:$0xff]
    %v1073 = vld [vmem:[#allocation8 + $0x1350] sm:$0xff]
    %v1074 = vld [vmem:[#allocation8 + $0x1358] sm:$0xff]
    %v1075 = vld [vmem:[#allocation8 + $0x1360] sm:$0xff]
    %v1076 = vld [vmem:[#allocation8 + $0x1368] sm:$0xff]
    %v1077 = vld [vmem:[#allocation8 + $0x1370] sm:$0xff]
    %v1078 = vld [vmem:[#allocation8 + $0x1378] sm:$0xff]
    %v1079 = vld [vmem:[#allocation8 + $0x1380] sm:$0xff]
    %v1080 = vld [vmem:[#allocation8 + $0x1388] sm:$0xff]
    %v1081 = vld [vmem:[#allocation8 + $0x1390] sm:$0xff]
    %v1082 = vld [vmem:[#allocation8 + $0x1398] sm:$0xff]
    %v1083 = vld [vmem:[#allocation8 + $0x13a0] sm:$0xff]
    %v1084 = vld [vmem:[#allocation8 + $0x13a8] sm:$0xff]
    %v1085 = vld [vmem:[#allocation8 + $0x13b0] sm:$0xff]
    %v1086 = vld [vmem:[#allocation8 + $0x13b8] sm:$0xff]
    %v1087 = vld [vmem:[#allocation8 + $0x13c0] sm:$0xff]
    %v1088 = vld [vmem:[#allocation8 + $0x13c8] sm:$0xff]
    %v1089 = vld [vmem:[#allocation8 + $0x13d0] sm:$0xff]
    %v1090 = vld [vmem:[#allocation8 + $0x13d8] sm:$0xff]
    %v1091 = vld [vmem:[#allocation8 + $0x13e0] sm:$0xff]
    %v1092 = vld [vmem:[#allocation8 + $0x13e8] sm:$0xff]
    %v1093 = vld [vmem:[#allocation8 + $0x13f0] sm:$0xff]
    %v1094 = vld [vmem:[#allocation8 + $0x13f8] sm:$0xff]
    %v1095 = vld [vmem:[#allocation8 + $0x1400] sm:$0xff]
    %v1096 = vld [vmem:[#allocation8 + $0x1408] sm:$0xff]
    %v1097 = vld [vmem:[#allocation8 + $0x1410] sm:$0xff]
    %v1098 = vld [vmem:[#allocation8 + $0x1418] sm:$0xff]
    %v1099 = vld [vmem:[#allocation8 + $0x1420] sm:$0xff]
    %v1100 = vld [vmem:[#allocation8 + $0x1428] sm:$0xff]
    %v1101 = vld [vmem:[#allocation8 + $0x1430] sm:$0xff]
    %v1102 = vld [vmem:[#allocation8 + $0x1438] sm:$0xff]
    %v1103 = vld [vmem:[#allocation8 + $0x1440] sm:$0xff]
    %v1104 = vld [vmem:[#allocation8 + $0x1448] sm:$0xff]
    %v1105 = vld [vmem:[#allocation8 + $0x1450] sm:$0xff]
    %v1106 = vld [vmem:[#allocation8 + $0x1458] sm:$0xff]
    %v1107 = vld [vmem:[#allocation8 + $0x1460] sm:$0xff]
    %v1108 = vld [vmem:[#allocation8 + $0x1468] sm:$0xff]
    %v1109 = vld [vmem:[#allocation8 + $0x1470] sm:$0xff]
    %v1110 = vld [vmem:[#allocation8 + $0x1478] sm:$0xff]
    %v1111 = vld [vmem:[#allocation8 + $0x1480] sm:$0xff]
    %v1112 = vld [vmem:[#allocation8 + $0x1488] sm:$0xff]
    %v1113 = vld [vmem:[#allocation8 + $0x1490] sm:$0xff]
    %v1114 = vld [vmem:[#allocation8 + $0x1498] sm:$0xff]
    %v1115 = vld [vmem:[#allocation8 + $0x14a0] sm:$0xff]
    %v1116 = vld [vmem:[#allocation8 + $0x14a8] sm:$0xff]
    %v1117 = vld [vmem:[#allocation8 + $0x14b0] sm:$0xff]
    %v1118 = vld [vmem:[#allocation8 + $0x14b8] sm:$0xff]
    %v1119 = vld [vmem:[#allocation8 + $0x14c0] sm:$0xff]
    %v1120 = vld [vmem:[#allocation8 + $0x14c8] sm:$0xff]
    %v1121 = vld [vmem:[#allocation8 + $0x14d0] sm:$0xff]
    %v1122 = vld [vmem:[#allocation8 + $0x14d8] sm:$0xff]
    %v1123 = vld [vmem:[#allocation8 + $0x14e0] sm:$0xff]
    %v1124 = vld [vmem:[#allocation8 + $0x14e8] sm:$0xff]
    %v1125 = vld [vmem:[#allocation8 + $0x14f0] sm:$0xff]
    %v1126 = vld [vmem:[#allocation8 + $0x14f8] sm:$0xff]
    %v1127 = vld [vmem:[#allocation8 + $0x1500] sm:$0xff]
    %v1128 = vld [vmem:[#allocation8 + $0x1508] sm:$0xff]
    %v1129 = vld [vmem:[#allocation8 + $0x1510] sm:$0xff]
    %v1130 = vld [vmem:[#allocation8 + $0x1518] sm:$0xff]
    %v1131 = vld [vmem:[#allocation8 + $0x1520] sm:$0xff]
    %v1132 = vld [vmem:[#allocation8 + $0x1528] sm:$0xff]
    %v1133 = vld [vmem:[#allocation8 + $0x1530] sm:$0xff]
    %v1134 = vld [vmem:[#allocation8 + $0x1538] sm:$0xff]
    %v1135 = vld [vmem:[#allocation8 + $0x1540] sm:$0xff]
    %v1136 = vld [vmem:[#allocation8 + $0x1548] sm:$0xff]
    %v1137 = vld [vmem:[#allocation8 + $0x1550] sm:$0xff]
    %v1138 = vld [vmem:[#allocation8 + $0x1558] sm:$0xff]
    %v1139 = vld [vmem:[#allocation8 + $0x1560] sm:$0xff]
    %v1140 = vld [vmem:[#allocation8 + $0x1568] sm:$0xff]
    %v1141 = vld [vmem:[#allocation8 + $0x1570] sm:$0xff]
    %v1142 = vld [vmem:[#allocation8 + $0x1578] sm:$0xff]
    %v1143 = vld [vmem:[#allocation8 + $0x1580] sm:$0xff]
    %v1144 = vld [vmem:[#allocation8 + $0x1588] sm:$0xff]
    %v1145 = vld [vmem:[#allocation8 + $0x1590] sm:$0xff]
    %v1146 = vld [vmem:[#allocation8 + $0x1598] sm:$0xff]
    %v1147 = vld [vmem:[#allocation8 + $0x15a0] sm:$0xff]
    %v1148 = vld [vmem:[#allocation8 + $0x15a8] sm:$0xff]
    %v1149 = vld [vmem:[#allocation8 + $0x15b0] sm:$0xff]
    %v1150 = vld [vmem:[#allocation8 + $0x15b8] sm:$0xff]
    %v1151 = vld [vmem:[#allocation8 + $0x15c0] sm:$0xff]
    %v1152 = vld [vmem:[#allocation8 + $0x15c8] sm:$0xff]
    %v1153 = vld [vmem:[#allocation8 + $0x15d0] sm:$0xff]
    %v1154 = vld [vmem:[#allocation8 + $0x15d8] sm:$0xff]
    %v1155 = vld [vmem:[#allocation8 + $0x15e0] sm:$0xff]
    %v1156 = vld [vmem:[#allocation8 + $0x15e8] sm:$0xff]
    %v1157 = vld [vmem:[#allocation8 + $0x15f0] sm:$0xff]
    %v1158 = vld [vmem:[#allocation8 + $0x15f8] sm:$0xff]
    %v1159 = vld [vmem:[#allocation8 + $0x1600] sm:$0xff]
    %v1160 = vld [vmem:[#allocation8 + $0x1608] sm:$0xff]
    %v1161 = vld [vmem:[#allocation8 + $0x1610] sm:$0xff]
    %v1162 = vld [vmem:[#allocation8 + $0x1618] sm:$0xff]
    %v1163 = vld [vmem:[#allocation8 + $0x1620] sm:$0xff]
    %v1164 = vld [vmem:[#allocation8 + $0x1628] sm:$0xff]
    %v1165 = vld [vmem:[#allocation8 + $0x1630] sm:$0xff]
    %v1166 = vld [vmem:[#allocation8 + $0x1638] sm:$0xff]
    %v1167 = vld [vmem:[#allocation8 + $0x1640] sm:$0xff]
    %v1168 = vld [vmem:[#allocation8 + $0x1648] sm:$0xff]
    %v1169 = vld [vmem:[#allocation8 + $0x1650] sm:$0xff]
    %v1170 = vld [vmem:[#allocation8 + $0x1658] sm:$0xff]
    %v1171 = vld [vmem:[#allocation8 + $0x1660] sm:$0xff]
    %v1172 = vld [vmem:[#allocation8 + $0x1668] sm:$0xff]
    %v1173 = vld [vmem:[#allocation8 + $0x1670] sm:$0xff]
    %v1174 = vld [vmem:[#allocation8 + $0x1678] sm:$0xff]
    %v1175 = vld [vmem:[#allocation8 + $0x1680] sm:$0xff]
    %v1176 = vld [vmem:[#allocation8 + $0x1688] sm:$0xff]
    %v1177 = vld [vmem:[#allocation8 + $0x1690] sm:$0xff]
    %v1178 = vld [vmem:[#allocation8 + $0x1698] sm:$0xff]
    %v1179 = vld [vmem:[#allocation8 + $0x16a0] sm:$0xff]
    %v1180 = vld [vmem:[#allocation8 + $0x16a8] sm:$0xff]
    %v1181 = vld [vmem:[#allocation8 + $0x16b0] sm:$0xff]
    %v1182 = vld [vmem:[#allocation8 + $0x16b8] sm:$0xff]
    %v1183 = vld [vmem:[#allocation8 + $0x16c0] sm:$0xff]
    %v1184 = vld [vmem:[#allocation8 + $0x16c8] sm:$0xff]
    %v1185 = vld [vmem:[#allocation8 + $0x16d0] sm:$0xff]
    %v1186 = vld [vmem:[#allocation8 + $0x16d8] sm:$0xff]
    %v1187 = vld [vmem:[#allocation8 + $0x16e0] sm:$0xff]
    %v1188 = vld [vmem:[#allocation8 + $0x16e8] sm:$0xff]
    %v1189 = vld [vmem:[#allocation8 + $0x16f0] sm:$0xff]
    %v1190 = vld [vmem:[#allocation8 + $0x16f8] sm:$0xff]
    %v1191 = vld [vmem:[#allocation8 + $0x1700] sm:$0xff]
    %v1192 = vld [vmem:[#allocation8 + $0x1708] sm:$0xff]
    %v1193 = vld [vmem:[#allocation8 + $0x1710] sm:$0xff]
    %v1194 = vld [vmem:[#allocation8 + $0x1718] sm:$0xff]
    %v1195 = vld [vmem:[#allocation8 + $0x1720] sm:$0xff]
    %v1196 = vld [vmem:[#allocation8 + $0x1728] sm:$0xff]
    %v1197 = vld [vmem:[#allocation8 + $0x1730] sm:$0xff]
    %v1198 = vld [vmem:[#allocation8 + $0x1738] sm:$0xff]
    %v1199 = vld [vmem:[#allocation8 + $0x1740] sm:$0xff]
    %v1200 = vld [vmem:[#allocation8 + $0x1748] sm:$0xff]
    %v1201 = vld [vmem:[#allocation8 + $0x1750] sm:$0xff]
    %v1202 = vld [vmem:[#allocation8 + $0x1758] sm:$0xff]
    %v1203 = vld [vmem:[#allocation8 + $0x1760] sm:$0xff]
    %v1204 = vld [vmem:[#allocation8 + $0x1768] sm:$0xff]
    %v1205 = vld [vmem:[#allocation8 + $0x1770] sm:$0xff]
    %v1206 = vld [vmem:[#allocation8 + $0x1778] sm:$0xff]
    %v1207 = vld [vmem:[#allocation8 + $0x1780] sm:$0xff]
    %v1208 = vld [vmem:[#allocation8 + $0x1788] sm:$0xff]
    %v1209 = vld [vmem:[#allocation8 + $0x1790] sm:$0xff]
    %v1210 = vld [vmem:[#allocation8 + $0x1798] sm:$0xff]
    %v1211 = vld [vmem:[#allocation8 + $0x17a0] sm:$0xff]
    %v1212 = vld [vmem:[#allocation8 + $0x17a8] sm:$0xff]
    %v1213 = vld [vmem:[#allocation8 + $0x17b0] sm:$0xff]
    %v1214 = vld [vmem:[#allocation8 + $0x17b8] sm:$0xff]
    %v1215 = vld [vmem:[#allocation8 + $0x17c0] sm:$0xff]
    %v1216 = vld [vmem:[#allocation8 + $0x17c8] sm:$0xff]
    %v1217 = vld [vmem:[#allocation8 + $0x17d0] sm:$0xff]
    %v1218 = vld [vmem:[#allocation8 + $0x17d8] sm:$0xff]
    %v1219 = vld [vmem:[#allocation8 + $0x17e0] sm:$0xff]
    %v1220 = vld [vmem:[#allocation8 + $0x17e8] sm:$0xff]
    %v1221 = vld [vmem:[#allocation8 + $0x17f0] sm:$0xff]
    %v1222 = vld [vmem:[#allocation8 + $0x17f8] sm:$0xff]
    %v1235 = vcombine.high %v443, %v443
    %v1237 = vunpack.c.l.s4 1983009808
    %v1238 = vunpack.c.0.s8 %v1237
    %v1239 = vlaneseq
    %v1240 = vshrl.u32 %v1239, 7
    %v1241 = vsub.s32 %v1238, %v1240
    %v1242 = vrot.slane %v443, %v1241
    %v1244 = vunpack.c.l.s4 1983009808
    %v1245 = vunpack.c.0.s8 %v1244
    %v1246 = vlaneseq
    %v1247 = vshrl.u32 %v1246, 7
    %v1248 = vsub.s32 %v1245, %v1247
    %v1249 = vrot.slane %v1235, %v1248
    %v1250 = vcombine.high %v1242, %v1242
    %v1251 = vcombine.high %v1249, %v1249
    %v1252 = vcombine.high %v444, %v444
    %v1254 = vunpack.c.l.s4 1983009808
    %v1255 = vunpack.c.0.s8 %v1254
    %v1256 = vlaneseq
    %v1257 = vshrl.u32 %v1256, 7
    %v1258 = vsub.s32 %v1255, %v1257
    %v1259 = vrot.slane %v444, %v1258
    %v1261 = vunpack.c.l.s4 1983009808
    %v1262 = vunpack.c.0.s8 %v1261
    %v1263 = vlaneseq
    %v1264 = vshrl.u32 %v1263, 7
    %v1265 = vsub.s32 %v1262, %v1264
    %v1266 = vrot.slane %v1252, %v1265
    %v1267 = vcombine.high %v1259, %v1259
    %v1268 = vcombine.high %v1266, %v1266
    %v1269 = vcombine.high %v445, %v445
    %v1271 = vunpack.c.l.s4 1983009808
    %v1272 = vunpack.c.0.s8 %v1271
    %v1273 = vlaneseq
    %v1274 = vshrl.u32 %v1273, 7
    %v1275 = vsub.s32 %v1272, %v1274
    %v1276 = vrot.slane %v445, %v1275
    %v1278 = vunpack.c.l.s4 1983009808
    %v1279 = vunpack.c.0.s8 %v1278
    %v1280 = vlaneseq
    %v1281 = vshrl.u32 %v1280, 7
    %v1282 = vsub.s32 %v1279, %v1281
    %v1283 = vrot.slane %v1269, %v1282
    %v1284 = vcombine.high %v1276, %v1276
    %v1285 = vcombine.high %v1283, %v1283
    %v1286 = vcombine.high %v446, %v446
    %v1288 = vunpack.c.l.s4 1983009808
    %v1289 = vunpack.c.0.s8 %v1288
    %v1290 = vlaneseq
    %v1291 = vshrl.u32 %v1290, 7
    %v1292 = vsub.s32 %v1289, %v1291
    %v1293 = vrot.slane %v446, %v1292
    %v1295 = vunpack.c.l.s4 1983009808
    %v1296 = vunpack.c.0.s8 %v1295
    %v1297 = vlaneseq
    %v1298 = vshrl.u32 %v1297, 7
    %v1299 = vsub.s32 %v1296, %v1298
    %v1300 = vrot.slane %v1286, %v1299
    %v1301 = vcombine.high %v1293, %v1293
    %v1302 = vcombine.high %v1300, %v1300
    %v1303 = vcombine.high %v447, %v447
    %v1305 = vunpack.c.l.s4 1983009808
    %v1306 = vunpack.c.0.s8 %v1305
    %v1307 = vlaneseq
    %v1308 = vshrl.u32 %v1307, 7
    %v1309 = vsub.s32 %v1306, %v1308
    %v1310 = vrot.slane %v447, %v1309
    %v1312 = vunpack.c.l.s4 1983009808
    %v1313 = vunpack.c.0.s8 %v1312
    %v1314 = vlaneseq
    %v1315 = vshrl.u32 %v1314, 7
    %v1316 = vsub.s32 %v1313, %v1315
    %v1317 = vrot.slane %v1303, %v1316
    %v1318 = vcombine.high %v1310, %v1310
    %v1319 = vcombine.high %v1317, %v1317
    %v1320 = vcombine.high %v448, %v448
    %v1322 = vunpack.c.l.s4 1983009808
    %v1323 = vunpack.c.0.s8 %v1322
    %v1324 = vlaneseq
    %v1325 = vshrl.u32 %v1324, 7
    %v1326 = vsub.s32 %v1323, %v1325
    %v1327 = vrot.slane %v448, %v1326
    %v1329 = vunpack.c.l.s4 1983009808
    %v1330 = vunpack.c.0.s8 %v1329
    %v1331 = vlaneseq
    %v1332 = vshrl.u32 %v1331, 7
    %v1333 = vsub.s32 %v1330, %v1332
    %v1334 = vrot.slane %v1320, %v1333
    %v1335 = vcombine.high %v1327, %v1327
    %v1336 = vcombine.high %v1334, %v1334
    %v1337 = vcombine.high %v449, %v449
    %v1339 = vunpack.c.l.s4 1983009808
    %v1340 = vunpack.c.0.s8 %v1339
    %v1341 = vlaneseq
    %v1342 = vshrl.u32 %v1341, 7
    %v1343 = vsub.s32 %v1340, %v1342
    %v1344 = vrot.slane %v449, %v1343
    %v1346 = vunpack.c.l.s4 1983009808
    %v1347 = vunpack.c.0.s8 %v1346
    %v1348 = vlaneseq
    %v1349 = vshrl.u32 %v1348, 7
    %v1350 = vsub.s32 %v1347, %v1349
    %v1351 = vrot.slane %v1337, %v1350
    %v1352 = vcombine.high %v1344, %v1344
    %v1353 = vcombine.high %v1351, %v1351
    %v1354 = vcombine.high %v450, %v450
    %v1356 = vunpack.c.l.s4 1983009808
    %v1357 = vunpack.c.0.s8 %v1356
    %v1358 = vlaneseq
    %v1359 = vshrl.u32 %v1358, 7
    %v1360 = vsub.s32 %v1357, %v1359
    %v1361 = vrot.slane %v450, %v1360
    %v1363 = vunpack.c.l.s4 1983009808
    %v1364 = vunpack.c.0.s8 %v1363
    %v1365 = vlaneseq
    %v1366 = vshrl.u32 %v1365, 7
    %v1367 = vsub.s32 %v1364, %v1366
    %v1368 = vrot.slane %v1354, %v1367
    %v1369 = vcombine.high %v1361, %v1361
    %v1370 = vcombine.high %v1368, %v1368
    %v1371 = vcombine.high %v451, %v451
    %v1373 = vunpack.c.l.s4 1983009808
    %v1374 = vunpack.c.0.s8 %v1373
    %v1375 = vlaneseq
    %v1376 = vshrl.u32 %v1375, 7
    %v1377 = vsub.s32 %v1374, %v1376
    %v1378 = vrot.slane %v451, %v1377
    %v1380 = vunpack.c.l.s4 1983009808
    %v1381 = vunpack.c.0.s8 %v1380
    %v1382 = vlaneseq
    %v1383 = vshrl.u32 %v1382, 7
    %v1384 = vsub.s32 %v1381, %v1383
    %v1385 = vrot.slane %v1371, %v1384
    %v1386 = vcombine.high %v1378, %v1378
    %v1387 = vcombine.high %v1385, %v1385
    %v1388 = vcombine.high %v452, %v452
    %v1390 = vunpack.c.l.s4 1983009808
    %v1391 = vunpack.c.0.s8 %v1390
    %v1392 = vlaneseq
    %v1393 = vshrl.u32 %v1392, 7
    %v1394 = vsub.s32 %v1391, %v1393
    %v1395 = vrot.slane %v452, %v1394
    %v1397 = vunpack.c.l.s4 1983009808
    %v1398 = vunpack.c.0.s8 %v1397
    %v1399 = vlaneseq
    %v1400 = vshrl.u32 %v1399, 7
    %v1401 = vsub.s32 %v1398, %v1400
    %v1402 = vrot.slane %v1388, %v1401
    %v1403 = vcombine.high %v1395, %v1395
    %v1404 = vcombine.high %v1402, %v1402
    %v1405 = vcombine.high %v453, %v453
    %v1407 = vunpack.c.l.s4 1983009808
    %v1408 = vunpack.c.0.s8 %v1407
    %v1409 = vlaneseq
    %v1410 = vshrl.u32 %v1409, 7
    %v1411 = vsub.s32 %v1408, %v1410
    %v1412 = vrot.slane %v453, %v1411
    %v1414 = vunpack.c.l.s4 1983009808
    %v1415 = vunpack.c.0.s8 %v1414
    %v1416 = vlaneseq
    %v1417 = vshrl.u32 %v1416, 7
    %v1418 = vsub.s32 %v1415, %v1417
    %v1419 = vrot.slane %v1405, %v1418
    %v1420 = vcombine.high %v1412, %v1412
    %v1421 = vcombine.high %v1419, %v1419
    %v1422 = vcombine.high %v454, %v454
    %v1424 = vunpack.c.l.s4 1983009808
    %v1425 = vunpack.c.0.s8 %v1424
    %v1426 = vlaneseq
    %v1427 = vshrl.u32 %v1426, 7
    %v1428 = vsub.s32 %v1425, %v1427
    %v1429 = vrot.slane %v454, %v1428
    %v1431 = vunpack.c.l.s4 1983009808
    %v1432 = vunpack.c.0.s8 %v1431
    %v1433 = vlaneseq
    %v1434 = vshrl.u32 %v1433, 7
    %v1435 = vsub.s32 %v1432, %v1434
    %v1436 = vrot.slane %v1422, %v1435
    %v1437 = vcombine.high %v1429, %v1429
    %v1438 = vcombine.high %v1436, %v1436
    %1487 = vmatprep.subr.mxu0 0.0
    %1488 = vmatpush1.msra.mxu0 %v455
    %1489 = vmatprep.subr.mxu0 0.0
    %1490 = vmatpush1.msra.mxu0 %v456
    %1491 = vmatprep.subr.mxu0 0.0
    %1492 = vmatpush1.msra.mxu0 %v457
    %1493 = vmatprep.subr.mxu0 0.0
    %1494 = vmatpush1.msra.mxu0 %v458
    %1495 = vmatprep.subr.mxu0 0.0
    %1496 = vmatpush1.msra.mxu0 %v459
    %1497 = vmatprep.subr.mxu0 0.0
    %1498 = vmatpush1.msra.mxu0 %v460
    %1499 = vmatprep.subr.mxu0 0.0
    %1500 = vmatpush1.msra.mxu0 %v461
    %1501 = vmatprep.subr.mxu0 0.0
    %1502 = vmatpush1.msra.mxu0 %v462
    %1503 = vmatprep.subr.mxu0 0.0
    %1504 = vmatpush1.msra.mxu0 %v463
    %1505 = vmatprep.subr.mxu0 0.0
    %1506 = vmatpush1.msra.mxu0 %v464
    %1507 = vmatprep.subr.mxu0 0.0
    %1508 = vmatpush1.msra.mxu0 %v465
    %1509 = vmatprep.subr.mxu0 0.0
    %1510 = vmatpush1.msra.mxu0 %v466
    %1511 = vmatprep.subr.mxu0 0.0
    %1512 = vmatpush1.msra.mxu0 %v467
    %1513 = vmatprep.subr.mxu0 0.0
    %1514 = vmatpush1.msra.mxu0 %v468
    %1515 = vmatprep.subr.mxu0 0.0
    %1516 = vmatpush1.msra.mxu0 %v469
    %1517 = vmatprep.subr.mxu0 0.0
    %1518 = vmatpush1.msra.mxu0 %v470
    %1519 = vmatprep.subr.mxu0 0.0
    %1520 = vmatpush1.msra.mxu0 %v471
    %1521 = vmatprep.subr.mxu0 0.0
    %1522 = vmatpush1.msra.mxu0 %v472
    %1523 = vmatprep.subr.mxu0 0.0
    %1524 = vmatpush1.msra.mxu0 %v473
    %1525 = vmatprep.subr.mxu0 0.0
    %1526 = vmatpush1.msra.mxu0 %v474
    %1527 = vmatprep.subr.mxu0 0.0
    %1528 = vmatpush1.msra.mxu0 %v475
    %1529 = vmatprep.subr.mxu0 0.0
    %1530 = vmatpush1.msra.mxu0 %v476
    %1531 = vmatprep.subr.mxu0 0.0
    %1532 = vmatpush1.msra.mxu0 %v477
    %1533 = vmatprep.subr.mxu0 0.0
    %1534 = vmatpush1.msra.mxu0 %v478
    %1535 = vmatprep.subr.mxu0 0.0
    %1536 = vmatpush1.msra.mxu0 %v479
    %1537 = vmatprep.subr.mxu0 0.0
    %1538 = vmatpush1.msra.mxu0 %v480
    %1539 = vmatprep.subr.mxu0 0.0
    %1540 = vmatpush1.msra.mxu0 %v481
    %1541 = vmatprep.subr.mxu0 0.0
    %1542 = vmatpush1.msra.mxu0 %v482
    %1543 = vmatprep.subr.mxu0 0.0
    %1544 = vmatpush1.msra.mxu0 %v483
    %1545 = vmatprep.subr.mxu0 0.0
    %1546 = vmatpush1.msra.mxu0 %v484
    %1547 = vmatprep.subr.mxu0 0.0
    %1548 = vmatpush1.msra.mxu0 %v485
    %1549 = vmatprep.subr.mxu0 0.0
    %1550 = vmatpush1.msra.mxu0 %v486
    %1551 = vmatprep.mubr.f32.mxu0 %v1250
    %1552 = vmatmul.mubr.f32.gmra.mrb[0].mxu0 %v1242
    %v1553 = vpop.f32.mrb[0].mxu0
    %v1554 = vadd.f32 0.0, %v1553
    %v1555 = vpop.f32.mrb[0].mxu0
    %1556 = vdwg.mxu0
    %1557 = vmatprep.subr.mxu0 0.0
    %1558 = vmatpush1.msra.mxu0 %v487
    %1559 = vmatprep.subr.mxu0 0.0
    %1560 = vmatpush1.msra.mxu0 %v488
    %1561 = vmatprep.subr.mxu0 0.0
    %1562 = vmatpush1.msra.mxu0 %v489
    %1563 = vmatprep.subr.mxu0 0.0
    %1564 = vmatpush1.msra.mxu0 %v490
    %1565 = vmatprep.subr.mxu0 0.0
    %1566 = vmatpush1.msra.mxu0 %v491
    %1567 = vmatprep.subr.mxu0 0.0
    %1568 = vmatpush1.msra.mxu0 %v492
    %1569 = vmatprep.subr.mxu0 0.0
    %1570 = vmatpush1.msra.mxu0 %v493
    %1571 = vmatprep.subr.mxu0 0.0
    %1572 = vmatpush1.msra.mxu0 %v494
    %1573 = vmatprep.subr.mxu0 0.0
    %1574 = vmatpush1.msra.mxu0 %v495
    %1575 = vmatprep.subr.mxu0 0.0
    %1576 = vmatpush1.msra.mxu0 %v496
    %1577 = vmatprep.subr.mxu0 0.0
    %1578 = vmatpush1.msra.mxu0 %v497
    %1579 = vmatprep.subr.mxu0 0.0
    %1580 = vmatpush1.msra.mxu0 %v498
    %1581 = vmatprep.subr.mxu0 0.0
    %1582 = vmatpush1.msra.mxu0 %v499
    %1583 = vmatprep.subr.mxu0 0.0
    %1584 = vmatpush1.msra.mxu0 %v500
    %1585 = vmatprep.subr.mxu0 0.0
    %1586 = vmatpush1.msra.mxu0 %v501
    %1587 = vmatprep.subr.mxu0 0.0
    %1588 = vmatpush1.msra.mxu0 %v502
    %1589 = vmatprep.subr.mxu0 0.0
    %1590 = vmatpush1.msra.mxu0 %v503
    %1591 = vmatprep.subr.mxu0 0.0
    %1592 = vmatpush1.msra.mxu0 %v504
    %1593 = vmatprep.subr.mxu0 0.0
    %1594 = vmatpush1.msra.mxu0 %v505
    %1595 = vmatprep.subr.mxu0 0.0
    %1596 = vmatpush1.msra.mxu0 %v506
    %1597 = vmatprep.subr.mxu0 0.0
    %1598 = vmatpush1.msra.mxu0 %v507
    %1599 = vmatprep.subr.mxu0 0.0
    %1600 = vmatpush1.msra.mxu0 %v508
    %1601 = vmatprep.subr.mxu0 0.0
    %1602 = vmatpush1.msra.mxu0 %v509
    %1603 = vmatprep.subr.mxu0 0.0
    %1604 = vmatpush1.msra.mxu0 %v510
    %1605 = vmatprep.subr.mxu0 0.0
    %1606 = vmatpush1.msra.mxu0 %v511
    %1607 = vmatprep.subr.mxu0 0.0
    %1608 = vmatpush1.msra.mxu0 %v512
    %1609 = vmatprep.subr.mxu0 0.0
    %1610 = vmatpush1.msra.mxu0 %v513
    %1611 = vmatprep.subr.mxu0 0.0
    %1612 = vmatpush1.msra.mxu0 %v514
    %1613 = vmatprep.subr.mxu0 0.0
    %1614 = vmatpush1.msra.mxu0 %v515
    %1615 = vmatprep.subr.mxu0 0.0
    %1616 = vmatpush1.msra.mxu0 %v516
    %1617 = vmatprep.subr.mxu0 0.0
    %1618 = vmatpush1.msra.mxu0 %v517
    %1619 = vmatprep.subr.mxu0 0.0
    %1620 = vmatpush1.msra.mxu0 %v518
    %1621 = vmatprep.mubr.f32.mxu0 %v1251
    %1622 = vmatmul.mubr.f32.gmra.mrb[0].mxu0 %v1249
    %v1623 = vpop.f32.mrb[0].mxu0
    %v1624 = vadd.f32 %v1554, %v1623
    %v1625 = vpop.f32.mrb[0].mxu0
    %1626 = vdwg.mxu0
    %1627 = vmatprep.subr.mxu0 0.0
    %1628 = vmatpush1.msra.mxu0 %v519
    %1629 = vmatprep.subr.mxu0 0.0
    %1630 = vmatpush1.msra.mxu0 %v520
    %1631 = vmatprep.subr.mxu0 0.0
    %1632 = vmatpush1.msra.mxu0 %v521
    %1633 = vmatprep.subr.mxu0 0.0
    %1634 = vmatpush1.msra.mxu0 %v522
    %1635 = vmatprep.subr.mxu0 0.0
    %1636 = vmatpush1.msra.mxu0 %v523
    %1637 = vmatprep.subr.mxu0 0.0
    %1638 = vmatpush1.msra.mxu0 %v524
    %1639 = vmatprep.subr.mxu0 0.0
    %1640 = vmatpush1.msra.mxu0 %v525
    %1641 = vmatprep.subr.mxu0 0.0
    %1642 = vmatpush1.msra.mxu0 %v526
    %1643 = vmatprep.subr.mxu0 0.0
    %1644 = vmatpush1.msra.mxu0 %v527
    %1645 = vmatprep.subr.mxu0 0.0
    %1646 = vmatpush1.msra.mxu0 %v528
    %1647 = vmatprep.subr.mxu0 0.0
    %1648 = vmatpush1.msra.mxu0 %v529
    %1649 = vmatprep.subr.mxu0 0.0
    %1650 = vmatpush1.msra.mxu0 %v530
    %1651 = vmatprep.subr.mxu0 0.0
    %1652 = vmatpush1.msra.mxu0 %v531
    %1653 = vmatprep.subr.mxu0 0.0
    %1654 = vmatpush1.msra.mxu0 %v532
    %1655 = vmatprep.subr.mxu0 0.0
    %1656 = vmatpush1.msra.mxu0 %v533
    %1657 = vmatprep.subr.mxu0 0.0
    %1658 = vmatpush1.msra.mxu0 %v534
    %1659 = vmatprep.subr.mxu0 0.0
    %1660 = vmatpush1.msra.mxu0 %v535
    %1661 = vmatprep.subr.mxu0 0.0
    %1662 = vmatpush1.msra.mxu0 %v536
    %1663 = vmatprep.subr.mxu0 0.0
    %1664 = vmatpush1.msra.mxu0 %v537
    %1665 = vmatprep.subr.mxu0 0.0
    %1666 = vmatpush1.msra.mxu0 %v538
    %1667 = vmatprep.subr.mxu0 0.0
    %1668 = vmatpush1.msra.mxu0 %v539
    %1669 = vmatprep.subr.mxu0 0.0
    %1670 = vmatpush1.msra.mxu0 %v540
    %1671 = vmatprep.subr.mxu0 0.0
    %1672 = vmatpush1.msra.mxu0 %v541
    %1673 = vmatprep.subr.mxu0 0.0
    %1674 = vmatpush1.msra.mxu0 %v542
    %1675 = vmatprep.subr.mxu0 0.0
    %1676 = vmatpush1.msra.mxu0 %v543
    %1677 = vmatprep.subr.mxu0 0.0
    %1678 = vmatpush1.msra.mxu0 %v544
    %1679 = vmatprep.subr.mxu0 0.0
    %1680 = vmatpush1.msra.mxu0 %v545
    %1681 = vmatprep.subr.mxu0 0.0
    %1682 = vmatpush1.msra.mxu0 %v546
    %1683 = vmatprep.subr.mxu0 0.0
    %1684 = vmatpush1.msra.mxu0 %v547
    %1685 = vmatprep.subr.mxu0 0.0
    %1686 = vmatpush1.msra.mxu0 %v548
    %1687 = vmatprep.subr.mxu0 0.0
    %1688 = vmatpush1.msra.mxu0 %v549
    %1689 = vmatprep.subr.mxu0 0.0
    %1690 = vmatpush1.msra.mxu0 %v550
    %1691 = vmatprep.mubr.f32.mxu0 %v1267
    %1692 = vmatmul.mubr.f32.gmra.mrb[0].mxu0 %v1259
    %v1693 = vpop.f32.mrb[0].mxu0
    %v1694 = vadd.f32 %v1624, %v1693
    %v1695 = vpop.f32.mrb[0].mxu0
    %1696 = vdwg.mxu0
    %1697 = vmatprep.subr.mxu0 0.0
    %1698 = vmatpush1.msra.mxu0 %v551
    %1699 = vmatprep.subr.mxu0 0.0
    %1700 = vmatpush1.msra.mxu0 %v552
    %1701 = vmatprep.subr.mxu0 0.0
    %1702 = vmatpush1.msra.mxu0 %v553
    %1703 = vmatprep.subr.mxu0 0.0
    %1704 = vmatpush1.msra.mxu0 %v554
    %1705 = vmatprep.subr.mxu0 0.0
    %1706 = vmatpush1.msra.mxu0 %v555
    %1707 = vmatprep.subr.mxu0 0.0
    %1708 = vmatpush1.msra.mxu0 %v556
    %1709 = vmatprep.subr.mxu0 0.0
    %1710 = vmatpush1.msra.mxu0 %v557
    %1711 = vmatprep.subr.mxu0 0.0
    %1712 = vmatpush1.msra.mxu0 %v558
    %1713 = vmatprep.subr.mxu0 0.0
    %1714 = vmatpush1.msra.mxu0 %v559
    %1715 = vmatprep.subr.mxu0 0.0
    %1716 = vmatpush1.msra.mxu0 %v560
    %1717 = vmatprep.subr.mxu0 0.0
    %1718 = vmatpush1.msra.mxu0 %v561
    %1719 = vmatprep.subr.mxu0 0.0
    %1720 = vmatpush1.msra.mxu0 %v562
    %1721 = vmatprep.subr.mxu0 0.0
    %1722 = vmatpush1.msra.mxu0 %v563
    %1723 = vmatprep.subr.mxu0 0.0
    %1724 = vmatpush1.msra.mxu0 %v564
    %1725 = vmatprep.subr.mxu0 0.0
    %1726 = vmatpush1.msra.mxu0 %v565
    %1727 = vmatprep.subr.mxu0 0.0
    %1728 = vmatpush1.msra.mxu0 %v566
    %1729 = vmatprep.subr.mxu0 0.0
    %1730 = vmatpush1.msra.mxu0 %v567
    %1731 = vmatprep.subr.mxu0 0.0
    %1732 = vmatpush1.msra.mxu0 %v568
    %1733 = vmatprep.subr.mxu0 0.0
    %1734 = vmatpush1.msra.mxu0 %v569
    %1735 = vmatprep.subr.mxu0 0.0
    %1736 = vmatpush1.msra.mxu0 %v570
    %1737 = vmatprep.subr.mxu0 0.0
    %1738 = vmatpush1.msra.mxu0 %v571
    %1739 = vmatprep.subr.mxu0 0.0
    %1740 = vmatpush1.msra.mxu0 %v572
    %1741 = vmatprep.subr.mxu0 0.0
    %1742 = vmatpush1.msra.mxu0 %v573
    %1743 = vmatprep.subr.mxu0 0.0
    %1744 = vmatpush1.msra.mxu0 %v574
    %1745 = vmatprep.subr.mxu0 0.0
    %1746 = vmatpush1.msra.mxu0 %v575
    %1747 = vmatprep.subr.mxu0 0.0
    %1748 = vmatpush1.msra.mxu0 %v576
    %1749 = vmatprep.subr.mxu0 0.0
    %1750 = vmatpush1.msra.mxu0 %v577
    %1751 = vmatprep.subr.mxu0 0.0
    %1752 = vmatpush1.msra.mxu0 %v578
    %1753 = vmatprep.subr.mxu0 0.0
    %1754 = vmatpush1.msra.mxu0 %v579
    %1755 = vmatprep.subr.mxu0 0.0
    %1756 = vmatpush1.msra.mxu0 %v580
    %1757 = vmatprep.subr.mxu0 0.0
    %1758 = vmatpush1.msra.mxu0 %v581
    %1759 = vmatprep.subr.mxu0 0.0
    %1760 = vmatpush1.msra.mxu0 %v582
    %1761 = vmatprep.mubr.f32.mxu0 %v1268
    %1762 = vmatmul.mubr.f32.gmra.mrb[0].mxu0 %v1266
    %v1763 = vpop.f32.mrb[0].mxu0
    %v1764 = vadd.f32 %v1694, %v1763
    %v1765 = vpop.f32.mrb[0].mxu0
    %1766 = vdwg.mxu0
    %1767 = vmatprep.subr.mxu0 0.0
    %1768 = vmatpush1.msra.mxu0 %v583
    %1769 = vmatprep.subr.mxu0 0.0
    %1770 = vmatpush1.msra.mxu0 %v584
    %1771 = vmatprep.subr.mxu0 0.0
    %1772 = vmatpush1.msra.mxu0 %v585
    %1773 = vmatprep.subr.mxu0 0.0
    %1774 = vmatpush1.msra.mxu0 %v586
    %1775 = vmatprep.subr.mxu0 0.0
    %1776 = vmatpush1.msra.mxu0 %v587
    %1777 = vmatprep.subr.mxu0 0.0
    %1778 = vmatpush1.msra.mxu0 %v588
    %1779 = vmatprep.subr.mxu0 0.0
    %1780 = vmatpush1.msra.mxu0 %v589
    %1781 = vmatprep.subr.mxu0 0.0
    %1782 = vmatpush1.msra.mxu0 %v590
    %1783 = vmatprep.subr.mxu0 0.0
    %1784 = vmatpush1.msra.mxu0 %v591
    %1785 = vmatprep.subr.mxu0 0.0
    %1786 = vmatpush1.msra.mxu0 %v592
    %1787 = vmatprep.subr.mxu0 0.0
    %1788 = vmatpush1.msra.mxu0 %v593
    %1789 = vmatprep.subr.mxu0 0.0
    %1790 = vmatpush1.msra.mxu0 %v594
    %1791 = vmatprep.subr.mxu0 0.0
    %1792 = vmatpush1.msra.mxu0 %v595
    %1793 = vmatprep.subr.mxu0 0.0
    %1794 = vmatpush1.msra.mxu0 %v596
    %1795 = vmatprep.subr.mxu0 0.0
    %1796 = vmatpush1.msra.mxu0 %v597
    %1797 = vmatprep.subr.mxu0 0.0
    %1798 = vmatpush1.msra.mxu0 %v598
    %1799 = vmatprep.subr.mxu0 0.0
    %1800 = vmatpush1.msra.mxu0 %v599
    %1801 = vmatprep.subr.mxu0 0.0
    %1802 = vmatpush1.msra.mxu0 %v600
    %1803 = vmatprep.subr.mxu0 0.0
    %1804 = vmatpush1.msra.mxu0 %v601
    %1805 = vmatprep.subr.mxu0 0.0
    %1806 = vmatpush1.msra.mxu0 %v602
    %1807 = vmatprep.subr.mxu0 0.0
    %1808 = vmatpush1.msra.mxu0 %v603
    %1809 = vmatprep.subr.mxu0 0.0
    %1810 = vmatpush1.msra.mxu0 %v604
    %1811 = vmatprep.subr.mxu0 0.0
    %1812 = vmatpush1.msra.mxu0 %v605
    %1813 = vmatprep.subr.mxu0 0.0
    %1814 = vmatpush1.msra.mxu0 %v606
    %1815 = vmatprep.subr.mxu0 0.0
    %1816 = vmatpush1.msra.mxu0 %v607
    %1817 = vmatprep.subr.mxu0 0.0
    %1818 = vmatpush1.msra.mxu0 %v608
    %1819 = vmatprep.subr.mxu0 0.0
    %1820 = vmatpush1.msra.mxu0 %v609
    %1821 = vmatprep.subr.mxu0 0.0
    %1822 = vmatpush1.msra.mxu0 %v610
    %1823 = vmatprep.subr.mxu0 0.0
    %1824 = vmatpush1.msra.mxu0 %v611
    %1825 = vmatprep.subr.mxu0 0.0
    %1826 = vmatpush1.msra.mxu0 %v612
    %1827 = vmatprep.subr.mxu0 0.0
    %1828 = vmatpush1.msra.mxu0 %v613
    %1829 = vmatprep.subr.mxu0 0.0
    %1830 = vmatpush1.msra.mxu0 %v614
    %1831 = vmatprep.mubr.f32.mxu0 %v1284
    %1832 = vmatmul.mubr.f32.gmra.mrb[0].mxu0 %v1276
    %v1833 = vpop.f32.mrb[0].mxu0
    %v1834 = vadd.f32 %v1764, %v1833
    %v1835 = vpop.f32.mrb[0].mxu0
    %1836 = vdwg.mxu0
    %1837 = vmatprep.subr.mxu0 0.0
    %1838 = vmatpush1.msra.mxu0 %v615
    %1839 = vmatprep.subr.mxu0 0.0
    %1840 = vmatpush1.msra.mxu0 %v616
    %1841 = vmatprep.subr.mxu0 0.0
    %1842 = vmatpush1.msra.mxu0 %v617
    %1843 = vmatprep.subr.mxu0 0.0
    %1844 = vmatpush1.msra.mxu0 %v618
    %1845 = vmatprep.subr.mxu0 0.0
    %1846 = vmatpush1.msra.mxu0 %v619
    %1847 = vmatprep.subr.mxu0 0.0
    %1848 = vmatpush1.msra.mxu0 %v620
    %1849 = vmatprep.subr.mxu0 0.0
    %1850 = vmatpush1.msra.mxu0 %v621
    %1851 = vmatprep.subr.mxu0 0.0
    %1852 = vmatpush1.msra.mxu0 %v622
    %1853 = vmatprep.subr.mxu0 0.0
    %1854 = vmatpush1.msra.mxu0 %v623
    %1855 = vmatprep.subr.mxu0 0.0
    %1856 = vmatpush1.msra.mxu0 %v624
    %1857 = vmatprep.subr.mxu0 0.0
    %1858 = vmatpush1.msra.mxu0 %v625
    %1859 = vmatprep.subr.mxu0 0.0
    %1860 = vmatpush1.msra.mxu0 %v626
    %1861 = vmatprep.subr.mxu0 0.0
    %1862 = vmatpush1.msra.mxu0 %v627
    %1863 = vmatprep.subr.mxu0 0.0
    %1864 = vmatpush1.msra.mxu0 %v628
    %1865 = vmatprep.subr.mxu0 0.0
    %1866 = vmatpush1.msra.mxu0 %v629
    %1867 = vmatprep.subr.mxu0 0.0
    %1868 = vmatpush1.msra.mxu0 %v630
    %1869 = vmatprep.subr.mxu0 0.0
    %1870 = vmatpush1.msra.mxu0 %v631
    %1871 = vmatprep.subr.mxu0 0.0
    %1872 = vmatpush1.msra.mxu0 %v632
    %1873 = vmatprep.subr.mxu0 0.0
    %1874 = vmatpush1.msra.mxu0 %v633
    %1875 = vmatprep.subr.mxu0 0.0
    %1876 = vmatpush1.msra.mxu0 %v634
    %1877 = vmatprep.subr.mxu0 0.0
    %1878 = vmatpush1.msra.mxu0 %v635
    %1879 = vmatprep.subr.mxu0 0.0
    %1880 = vmatpush1.msra.mxu0 %v636
    %1881 = vmatprep.subr.mxu0 0.0
    %1882 = vmatpush1.msra.mxu0 %v637
    %1883 = vmatprep.subr.mxu0 0.0
    %1884 = vmatpush1.msra.mxu0 %v638
    %1885 = vmatprep.subr.mxu0 0.0
    %1886 = vmatpush1.msra.mxu0 %v639
    %1887 = vmatprep.subr.mxu0 0.0
    %1888 = vmatpush1.msra.mxu0 %v640
    %1889 = vmatprep.subr.mxu0 0.0
    %1890 = vmatpush1.msra.mxu0 %v641
    %1891 = vmatprep.subr.mxu0 0.0
    %1892 = vmatpush1.msra.mxu0 %v642
    %1893 = vmatprep.subr.mxu0 0.0
    %1894 = vmatpush1.msra.mxu0 %v643
    %1895 = vmatprep.subr.mxu0 0.0
    %1896 = vmatpush1.msra.mxu0 %v644
    %1897 = vmatprep.subr.mxu0 0.0
    %1898 = vmatpush1.msra.mxu0 %v645
    %1899 = vmatprep.subr.mxu0 0.0
    %1900 = vmatpush1.msra.mxu0 %v646
    %1901 = vmatprep.mubr.f32.mxu0 %v1285
    %1902 = vmatmul.mubr.f32.gmra.mrb[0].mxu0 %v1283
    %v1903 = vpop.f32.mrb[0].mxu0
    %v1904 = vadd.f32 %v1834, %v1903
    %v1905 = vpop.f32.mrb[0].mxu0
    %1906 = vdwg.mxu0
    %1907 = vmatprep.subr.mxu0 0.0
    %1908 = vmatpush1.msra.mxu0 %v647
    %1909 = vmatprep.subr.mxu0 0.0
    %1910 = vmatpush1.msra.mxu0 %v648
    %1911 = vmatprep.subr.mxu0 0.0
    %1912 = vmatpush1.msra.mxu0 %v649
    %1913 = vmatprep.subr.mxu0 0.0
    %1914 = vmatpush1.msra.mxu0 %v650
    %1915 = vmatprep.subr.mxu0 0.0
    %1916 = vmatpush1.msra.mxu0 %v651
    %1917 = vmatprep.subr.mxu0 0.0
    %1918 = vmatpush1.msra.mxu0 %v652
    %1919 = vmatprep.subr.mxu0 0.0
    %1920 = vmatpush1.msra.mxu0 %v653
    %1921 = vmatprep.subr.mxu0 0.0
    %1922 = vmatpush1.msra.mxu0 %v654
    %1923 = vmatprep.subr.mxu0 0.0
    %1924 = vmatpush1.msra.mxu0 %v655
    %1925 = vmatprep.subr.mxu0 0.0
    %1926 = vmatpush1.msra.mxu0 %v656
    %1927 = vmatprep.subr.mxu0 0.0
    %1928 = vmatpush1.msra.mxu0 %v657
    %1929 = vmatprep.subr.mxu0 0.0
    %1930 = vmatpush1.msra.mxu0 %v658
    %1931 = vmatprep.subr.mxu0 0.0
    %1932 = vmatpush1.msra.mxu0 %v659
    %1933 = vmatprep.subr.mxu0 0.0
    %1934 = vmatpush1.msra.mxu0 %v660
    %1935 = vmatprep.subr.mxu0 0.0
    %1936 = vmatpush1.msra.mxu0 %v661
    %1937 = vmatprep.subr.mxu0 0.0
    %1938 = vmatpush1.msra.mxu0 %v662
    %1939 = vmatprep.subr.mxu0 0.0
    %1940 = vmatpush1.msra.mxu0 %v663
    %1941 = vmatprep.subr.mxu0 0.0
    %1942 = vmatpush1.msra.mxu0 %v664
    %1943 = vmatprep.subr.mxu0 0.0
    %1944 = vmatpush1.msra.mxu0 %v665
    %1945 = vmatprep.subr.mxu0 0.0
    %1946 = vmatpush1.msra.mxu0 %v666
    %1947 = vmatprep.subr.mxu0 0.0
    %1948 = vmatpush1.msra.mxu0 %v667
    %1949 = vmatprep.subr.mxu0 0.0
    %1950 = vmatpush1.msra.mxu0 %v668
    %1951 = vmatprep.subr.mxu0 0.0
    %1952 = vmatpush1.msra.mxu0 %v669
    %1953 = vmatprep.subr.mxu0 0.0
    %1954 = vmatpush1.msra.mxu0 %v670
    %1955 = vmatprep.subr.mxu0 0.0
    %1956 = vmatpush1.msra.mxu0 %v671
    %1957 = vmatprep.subr.mxu0 0.0
    %1958 = vmatpush1.msra.mxu0 %v672
    %1959 = vmatprep.subr.mxu0 0.0
    %1960 = vmatpush1.msra.mxu0 %v673
    %1961 = vmatprep.subr.mxu0 0.0
    %1962 = vmatpush1.msra.mxu0 %v674
    %1963 = vmatprep.subr.mxu0 0.0
    %1964 = vmatpush1.msra.mxu0 %v675
    %1965 = vmatprep.subr.mxu0 0.0
    %1966 = vmatpush1.msra.mxu0 %v676
    %1967 = vmatprep.subr.mxu0 0.0
    %1968 = vmatpush1.msra.mxu0 %v677
    %1969 = vmatprep.subr.mxu0 0.0
    %1970 = vmatpush1.msra.mxu0 %v678
    %1971 = vmatprep.mubr.f32.mxu0 %v1301
    %1972 = vmatmul.mubr.f32.gmra.mrb[0].mxu0 %v1293
    %v1973 = vpop.f32.mrb[0].mxu0
    %v1974 = vadd.f32 %v1904, %v1973
    %v1975 = vpop.f32.mrb[0].mxu0
    %1976 = vdwg.mxu0
    %1977 = vmatprep.subr.mxu0 0.0
    %1978 = vmatpush1.msra.mxu0 %v679
    %1979 = vmatprep.subr.mxu0 0.0
    %1980 = vmatpush1.msra.mxu0 %v680
    %1981 = vmatprep.subr.mxu0 0.0
    %1982 = vmatpush1.msra.mxu0 %v681
    %1983 = vmatprep.subr.mxu0 0.0
    %1984 = vmatpush1.msra.mxu0 %v682
    %1985 = vmatprep.subr.mxu0 0.0
    %1986 = vmatpush1.msra.mxu0 %v683
    %1987 = vmatprep.subr.mxu0 0.0
    %1988 = vmatpush1.msra.mxu0 %v684
    %1989 = vmatprep.subr.mxu0 0.0
    %1990 = vmatpush1.msra.mxu0 %v685
    %1991 = vmatprep.subr.mxu0 0.0
    %1992 = vmatpush1.msra.mxu0 %v686
    %1993 = vmatprep.subr.mxu0 0.0
    %1994 = vmatpush1.msra.mxu0 %v687
    %1995 = vmatprep.subr.mxu0 0.0
    %1996 = vmatpush1.msra.mxu0 %v688
    %1997 = vmatprep.subr.mxu0 0.0
    %1998 = vmatpush1.msra.mxu0 %v689
    %1999 = vmatprep.subr.mxu0 0.0
    %2000 = vmatpush1.msra.mxu0 %v690
    %2001 = vmatprep.subr.mxu0 0.0
    %2002 = vmatpush1.msra.mxu0 %v691
    %2003 = vmatprep.subr.mxu0 0.0
    %2004 = vmatpush1.msra.mxu0 %v692
    %2005 = vmatprep.subr.mxu0 0.0
    %2006 = vmatpush1.msra.mxu0 %v693
    %2007 = vmatprep.subr.mxu0 0.0
    %2008 = vmatpush1.msra.mxu0 %v694
    %2009 = vmatprep.subr.mxu0 0.0
    %2010 = vmatpush1.msra.mxu0 %v695
    %2011 = vmatprep.subr.mxu0 0.0
    %2012 = vmatpush1.msra.mxu0 %v696
    %2013 = vmatprep.subr.mxu0 0.0
    %2014 = vmatpush1.msra.mxu0 %v697
    %2015 = vmatprep.subr.mxu0 0.0
    %2016 = vmatpush1.msra.mxu0 %v698
    %2017 = vmatprep.subr.mxu0 0.0
    %2018 = vmatpush1.msra.mxu0 %v699
    %2019 = vmatprep.subr.mxu0 0.0
    %2020 = vmatpush1.msra.mxu0 %v700
    %2021 = vmatprep.subr.mxu0 0.0
    %2022 = vmatpush1.msra.mxu0 %v701
    %2023 = vmatprep.subr.mxu0 0.0
    %2024 = vmatpush1.msra.mxu0 %v702
    %2025 = vmatprep.subr.mxu0 0.0
    %2026 = vmatpush1.msra.mxu0 %v703
    %2027 = vmatprep.subr.mxu0 0.0
    %2028 = vmatpush1.msra.mxu0 %v704
    %2029 = vmatprep.subr.mxu0 0.0
    %2030 = vmatpush1.msra.mxu0 %v705
    %2031 = vmatprep.subr.mxu0 0.0
    %2032 = vmatpush1.msra.mxu0 %v706
    %2033 = vmatprep.subr.mxu0 0.0
    %2034 = vmatpush1.msra.mxu0 %v707
    %2035 = vmatprep.subr.mxu0 0.0
    %2036 = vmatpush1.msra.mxu0 %v708
    %2037 = vmatprep.subr.mxu0 0.0
    %2038 = vmatpush1.msra.mxu0 %v709
    %2039 = vmatprep.subr.mxu0 0.0
    %2040 = vmatpush1.msra.mxu0 %v710
    %2041 = vmatprep.mubr.f32.mxu0 %v1302
    %2042 = vmatmul.mubr.f32.gmra.mrb[0].mxu0 %v1300
    %v2043 = vpop.f32.mrb[0].mxu0
    %v2044 = vadd.f32 %v1974, %v2043
    %v2045 = vpop.f32.mrb[0].mxu0
    %2046 = vdwg.mxu0
    %2047 = vmatprep.subr.mxu0 0.0
    %2048 = vmatpush1.msra.mxu0 %v711
    %2049 = vmatprep.subr.mxu0 0.0
    %2050 = vmatpush1.msra.mxu0 %v712
    %2051 = vmatprep.subr.mxu0 0.0
    %2052 = vmatpush1.msra.mxu0 %v713
    %2053 = vmatprep.subr.mxu0 0.0
    %2054 = vmatpush1.msra.mxu0 %v714
    %2055 = vmatprep.subr.mxu0 0.0
    %2056 = vmatpush1.msra.mxu0 %v715
    %2057 = vmatprep.subr.mxu0 0.0
    %2058 = vmatpush1.msra.mxu0 %v716
    %2059 = vmatprep.subr.mxu0 0.0
    %2060 = vmatpush1.msra.mxu0 %v717
    %2061 = vmatprep.subr.mxu0 0.0
    %2062 = vmatpush1.msra.mxu0 %v718
    %2063 = vmatprep.subr.mxu0 0.0
    %2064 = vmatpush1.msra.mxu0 %v719
    %2065 = vmatprep.subr.mxu0 0.0
    %2066 = vmatpush1.msra.mxu0 %v720
    %2067 = vmatprep.subr.mxu0 0.0
    %2068 = vmatpush1.msra.mxu0 %v721
    %2069 = vmatprep.subr.mxu0 0.0
    %2070 = vmatpush1.msra.mxu0 %v722
    %2071 = vmatprep.subr.mxu0 0.0
    %2072 = vmatpush1.msra.mxu0 %v723
    %2073 = vmatprep.subr.mxu0 0.0
    %2074 = vmatpush1.msra.mxu0 %v724
    %2075 = vmatprep.subr.mxu0 0.0
    %2076 = vmatpush1.msra.mxu0 %v725
    %2077 = vmatprep.subr.mxu0 0.0
    %2078 = vmatpush1.msra.mxu0 %v726
    %2079 = vmatprep.subr.mxu0 0.0
    %2080 = vmatpush1.msra.mxu0 %v727
    %2081 = vmatprep.subr.mxu0 0.0
    %2082 = vmatpush1.msra.mxu0 %v728
    %2083 = vmatprep.subr.mxu0 0.0
    %2084 = vmatpush1.msra.mxu0 %v729
    %2085 = vmatprep.subr.mxu0 0.0
    %2086 = vmatpush1.msra.mxu0 %v730
    %2087 = vmatprep.subr.mxu0 0.0
    %2088 = vmatpush1.msra.mxu0 %v731
    %2089 = vmatprep.subr.mxu0 0.0
    %2090 = vmatpush1.msra.mxu0 %v732
    %2091 = vmatprep.subr.mxu0 0.0
    %2092 = vmatpush1.msra.mxu0 %v733
    %2093 = vmatprep.subr.mxu0 0.0
    %2094 = vmatpush1.msra.mxu0 %v734
    %2095 = vmatprep.subr.mxu0 0.0
    %2096 = vmatpush1.msra.mxu0 %v735
    %2097 = vmatprep.subr.mxu0 0.0
    %2098 = vmatpush1.msra.mxu0 %v736
    %2099 = vmatprep.subr.mxu0 0.0
    %2100 = vmatpush1.msra.mxu0 %v737
    %2101 = vmatprep.subr.mxu0 0.0
    %2102 = vmatpush1.msra.mxu0 %v738
    %2103 = vmatprep.subr.mxu0 0.0
    %2104 = vmatpush1.msra.mxu0 %v739
    %2105 = vmatprep.subr.mxu0 0.0
    %2106 = vmatpush1.msra.mxu0 %v740
    %2107 = vmatprep.subr.mxu0 0.0
    %2108 = vmatpush1.msra.mxu0 %v741
    %2109 = vmatprep.subr.mxu0 0.0
    %2110 = vmatpush1.msra.mxu0 %v742
    %2111 = vmatprep.mubr.f32.mxu0 %v1318
    %2112 = vmatmul.mubr.f32.gmra.mrb[0].mxu0 %v1310
    %v2113 = vpop.f32.mrb[0].mxu0
    %v2114 = vadd.f32 %v2044, %v2113
    %v2115 = vpop.f32.mrb[0].mxu0
    %2116 = vdwg.mxu0
    %2117 = vmatprep.subr.mxu0 0.0
    %2118 = vmatpush1.msra.mxu0 %v743
    %2119 = vmatprep.subr.mxu0 0.0
    %2120 = vmatpush1.msra.mxu0 %v744
    %2121 = vmatprep.subr.mxu0 0.0
    %2122 = vmatpush1.msra.mxu0 %v745
    %2123 = vmatprep.subr.mxu0 0.0
    %2124 = vmatpush1.msra.mxu0 %v746
    %2125 = vmatprep.subr.mxu0 0.0
    %2126 = vmatpush1.msra.mxu0 %v747
    %2127 = vmatprep.subr.mxu0 0.0
    %2128 = vmatpush1.msra.mxu0 %v748
    %2129 = vmatprep.subr.mxu0 0.0
    %2130 = vmatpush1.msra.mxu0 %v749
    %2131 = vmatprep.subr.mxu0 0.0
    %2132 = vmatpush1.msra.mxu0 %v750
    %2133 = vmatprep.subr.mxu0 0.0
    %2134 = vmatpush1.msra.mxu0 %v751
    %2135 = vmatprep.subr.mxu0 0.0
    %2136 = vmatpush1.msra.mxu0 %v752
    %2137 = vmatprep.subr.mxu0 0.0
    %2138 = vmatpush1.msra.mxu0 %v753
    %2139 = vmatprep.subr.mxu0 0.0
    %2140 = vmatpush1.msra.mxu0 %v754
    %2141 = vmatprep.subr.mxu0 0.0
    %2142 = vmatpush1.msra.mxu0 %v755
    %2143 = vmatprep.subr.mxu0 0.0
    %2144 = vmatpush1.msra.mxu0 %v756
    %2145 = vmatprep.subr.mxu0 0.0
    %2146 = vmatpush1.msra.mxu0 %v757
    %2147 = vmatprep.subr.mxu0 0.0
    %2148 = vmatpush1.msra.mxu0 %v758
    %2149 = vmatprep.subr.mxu0 0.0
    %2150 = vmatpush1.msra.mxu0 %v759
    %2151 = vmatprep.subr.mxu0 0.0
    %2152 = vmatpush1.msra.mxu0 %v760
    %2153 = vmatprep.subr.mxu0 0.0
    %2154 = vmatpush1.msra.mxu0 %v761
    %2155 = vmatprep.subr.mxu0 0.0
    %2156 = vmatpush1.msra.mxu0 %v762
    %2157 = vmatprep.subr.mxu0 0.0
    %2158 = vmatpush1.msra.mxu0 %v763
    %2159 = vmatprep.subr.mxu0 0.0
    %2160 = vmatpush1.msra.mxu0 %v764
    %2161 = vmatprep.subr.mxu0 0.0
    %2162 = vmatpush1.msra.mxu0 %v765
    %2163 = vmatprep.subr.mxu0 0.0
    %2164 = vmatpush1.msra.mxu0 %v766
    %2165 = vmatprep.subr.mxu0 0.0
    %2166 = vmatpush1.msra.mxu0 %v767
    %2167 = vmatprep.subr.mxu0 0.0
    %2168 = vmatpush1.msra.mxu0 %v768
    %2169 = vmatprep.subr.mxu0 0.0
    %2170 = vmatpush1.msra.mxu0 %v769
    %2171 = vmatprep.subr.mxu0 0.0
    %2172 = vmatpush1.msra.mxu0 %v770
    %2173 = vmatprep.subr.mxu0 0.0
    %2174 = vmatpush1.msra.mxu0 %v771
    %2175 = vmatprep.subr.mxu0 0.0
    %2176 = vmatpush1.msra.mxu0 %v772
    %2177 = vmatprep.subr.mxu0 0.0
    %2178 = vmatpush1.msra.mxu0 %v773
    %2179 = vmatprep.subr.mxu0 0.0
    %2180 = vmatpush1.msra.mxu0 %v774
    %2181 = vmatprep.mubr.f32.mxu0 %v1319
    %2182 = vmatmul.mubr.f32.gmra.mrb[0].mxu0 %v1317
    %v2183 = vpop.f32.mrb[0].mxu0
    %v2184 = vadd.f32 %v2114, %v2183
    %v2185 = vpop.f32.mrb[0].mxu0
    %2186 = vdwg.mxu0
    %2187 = vmatprep.subr.mxu0 0.0
    %2188 = vmatpush1.msra.mxu0 %v775
    %2189 = vmatprep.subr.mxu0 0.0
    %2190 = vmatpush1.msra.mxu0 %v776
    %2191 = vmatprep.subr.mxu0 0.0
    %2192 = vmatpush1.msra.mxu0 %v777
    %2193 = vmatprep.subr.mxu0 0.0
    %2194 = vmatpush1.msra.mxu0 %v778
    %2195 = vmatprep.subr.mxu0 0.0
    %2196 = vmatpush1.msra.mxu0 %v779
    %2197 = vmatprep.subr.mxu0 0.0
    %2198 = vmatpush1.msra.mxu0 %v780
    %2199 = vmatprep.subr.mxu0 0.0
    %2200 = vmatpush1.msra.mxu0 %v781
    %2201 = vmatprep.subr.mxu0 0.0
    %2202 = vmatpush1.msra.mxu0 %v782
    %2203 = vmatprep.subr.mxu0 0.0
    %2204 = vmatpush1.msra.mxu0 %v783
    %2205 = vmatprep.subr.mxu0 0.0
    %2206 = vmatpush1.msra.mxu0 %v784
    %2207 = vmatprep.subr.mxu0 0.0
    %2208 = vmatpush1.msra.mxu0 %v785
    %2209 = vmatprep.subr.mxu0 0.0
    %2210 = vmatpush1.msra.mxu0 %v786
    %2211 = vmatprep.subr.mxu0 0.0
    %2212 = vmatpush1.msra.mxu0 %v787
    %2213 = vmatprep.subr.mxu0 0.0
    %2214 = vmatpush1.msra.mxu0 %v788
    %2215 = vmatprep.subr.mxu0 0.0
    %2216 = vmatpush1.msra.mxu0 %v789
    %2217 = vmatprep.subr.mxu0 0.0
    %2218 = vmatpush1.msra.mxu0 %v790
    %2219 = vmatprep.subr.mxu0 0.0
    %2220 = vmatpush1.msra.mxu0 %v791
    %2221 = vmatprep.subr.mxu0 0.0
    %2222 = vmatpush1.msra.mxu0 %v792
    %2223 = vmatprep.subr.mxu0 0.0
    %2224 = vmatpush1.msra.mxu0 %v793
    %2225 = vmatprep.subr.mxu0 0.0
    %2226 = vmatpush1.msra.mxu0 %v794
    %2227 = vmatprep.subr.mxu0 0.0
    %2228 = vmatpush1.msra.mxu0 %v795
    %2229 = vmatprep.subr.mxu0 0.0
    %2230 = vmatpush1.msra.mxu0 %v796
    %2231 = vmatprep.subr.mxu0 0.0
    %2232 = vmatpush1.msra.mxu0 %v797
    %2233 = vmatprep.subr.mxu0 0.0
    %2234 = vmatpush1.msra.mxu0 %v798
    %2235 = vmatprep.subr.mxu0 0.0
    %2236 = vmatpush1.msra.mxu0 %v799
    %2237 = vmatprep.subr.mxu0 0.0
    %2238 = vmatpush1.msra.mxu0 %v800
    %2239 = vmatprep.subr.mxu0 0.0
    %2240 = vmatpush1.msra.mxu0 %v801
    %2241 = vmatprep.subr.mxu0 0.0
    %2242 = vmatpush1.msra.mxu0 %v802
    %2243 = vmatprep.subr.mxu0 0.0
    %2244 = vmatpush1.msra.mxu0 %v803
    %2245 = vmatprep.subr.mxu0 0.0
    %2246 = vmatpush1.msra.mxu0 %v804
    %2247 = vmatprep.subr.mxu0 0.0
    %2248 = vmatpush1.msra.mxu0 %v805
    %2249 = vmatprep.subr.mxu0 0.0
    %2250 = vmatpush1.msra.mxu0 %v806
    %2251 = vmatprep.mubr.f32.mxu0 %v1335
    %2252 = vmatmul.mubr.f32.gmra.mrb[0].mxu0 %v1327
    %v2253 = vpop.f32.mrb[0].mxu0
    %v2254 = vadd.f32 %v2184, %v2253
    %v2255 = vpop.f32.mrb[0].mxu0
    %2256 = vdwg.mxu0
    %2257 = vmatprep.subr.mxu0 0.0
    %2258 = vmatpush1.msra.mxu0 %v807
    %2259 = vmatprep.subr.mxu0 0.0
    %2260 = vmatpush1.msra.mxu0 %v808
    %2261 = vmatprep.subr.mxu0 0.0
    %2262 = vmatpush1.msra.mxu0 %v809
    %2263 = vmatprep.subr.mxu0 0.0
    %2264 = vmatpush1.msra.mxu0 %v810
    %2265 = vmatprep.subr.mxu0 0.0
    %2266 = vmatpush1.msra.mxu0 %v811
    %2267 = vmatprep.subr.mxu0 0.0
    %2268 = vmatpush1.msra.mxu0 %v812
    %2269 = vmatprep.subr.mxu0 0.0
    %2270 = vmatpush1.msra.mxu0 %v813
    %2271 = vmatprep.subr.mxu0 0.0
    %2272 = vmatpush1.msra.mxu0 %v814
    %2273 = vmatprep.subr.mxu0 0.0
    %2274 = vmatpush1.msra.mxu0 %v815
    %2275 = vmatprep.subr.mxu0 0.0
    %2276 = vmatpush1.msra.mxu0 %v816
    %2277 = vmatprep.subr.mxu0 0.0
    %2278 = vmatpush1.msra.mxu0 %v817
    %2279 = vmatprep.subr.mxu0 0.0
    %2280 = vmatpush1.msra.mxu0 %v818
    %2281 = vmatprep.subr.mxu0 0.0
    %2282 = vmatpush1.msra.mxu0 %v819
    %2283 = vmatprep.subr.mxu0 0.0
    %2284 = vmatpush1.msra.mxu0 %v820
    %2285 = vmatprep.subr.mxu0 0.0
    %2286 = vmatpush1.msra.mxu0 %v821
    %2287 = vmatprep.subr.mxu0 0.0
    %2288 = vmatpush1.msra.mxu0 %v822
    %2289 = vmatprep.subr.mxu0 0.0
    %2290 = vmatpush1.msra.mxu0 %v823
    %2291 = vmatprep.subr.mxu0 0.0
    %2292 = vmatpush1.msra.mxu0 %v824
    %2293 = vmatprep.subr.mxu0 0.0
    %2294 = vmatpush1.msra.mxu0 %v825
    %2295 = vmatprep.subr.mxu0 0.0
    %2296 = vmatpush1.msra.mxu0 %v826
    %2297 = vmatprep.subr.mxu0 0.0
    %2298 = vmatpush1.msra.mxu0 %v827
    %2299 = vmatprep.subr.mxu0 0.0
    %2300 = vmatpush1.msra.mxu0 %v828
    %2301 = vmatprep.subr.mxu0 0.0
    %2302 = vmatpush1.msra.mxu0 %v829
    %2303 = vmatprep.subr.mxu0 0.0
    %2304 = vmatpush1.msra.mxu0 %v830
    %2305 = vmatprep.subr.mxu0 0.0
    %2306 = vmatpush1.msra.mxu0 %v831
    %2307 = vmatprep.subr.mxu0 0.0
    %2308 = vmatpush1.msra.mxu0 %v832
    %2309 = vmatprep.subr.mxu0 0.0
    %2310 = vmatpush1.msra.mxu0 %v833
    %2311 = vmatprep.subr.mxu0 0.0
    %2312 = vmatpush1.msra.mxu0 %v834
    %2313 = vmatprep.subr.mxu0 0.0
    %2314 = vmatpush1.msra.mxu0 %v835
    %2315 = vmatprep.subr.mxu0 0.0
    %2316 = vmatpush1.msra.mxu0 %v836
    %2317 = vmatprep.subr.mxu0 0.0
    %2318 = vmatpush1.msra.mxu0 %v837
    %2319 = vmatprep.subr.mxu0 0.0
    %2320 = vmatpush1.msra.mxu0 %v838
    %2321 = vmatprep.mubr.f32.mxu0 %v1336
    %2322 = vmatmul.mubr.f32.gmra.mrb[0].mxu0 %v1334
    %v2323 = vpop.f32.mrb[0].mxu0
    %v2324 = vadd.f32 %v2254, %v2323
    %v2325 = vpop.f32.mrb[0].mxu0
    %2326 = vdwg.mxu0
    %2327 = vmatprep.subr.mxu0 0.0
    %2328 = vmatpush1.msra.mxu0 %v839
    %2329 = vmatprep.subr.mxu0 0.0
    %2330 = vmatpush1.msra.mxu0 %v840
    %2331 = vmatprep.subr.mxu0 0.0
    %2332 = vmatpush1.msra.mxu0 %v841
    %2333 = vmatprep.subr.mxu0 0.0
    %2334 = vmatpush1.msra.mxu0 %v842
    %2335 = vmatprep.subr.mxu0 0.0
    %2336 = vmatpush1.msra.mxu0 %v843
    %2337 = vmatprep.subr.mxu0 0.0
    %2338 = vmatpush1.msra.mxu0 %v844
    %2339 = vmatprep.subr.mxu0 0.0
    %2340 = vmatpush1.msra.mxu0 %v845
    %2341 = vmatprep.subr.mxu0 0.0
    %2342 = vmatpush1.msra.mxu0 %v846
    %2343 = vmatprep.subr.mxu0 0.0
    %2344 = vmatpush1.msra.mxu0 %v847
    %2345 = vmatprep.subr.mxu0 0.0
    %2346 = vmatpush1.msra.mxu0 %v848
    %2347 = vmatprep.subr.mxu0 0.0
    %2348 = vmatpush1.msra.mxu0 %v849
    %2349 = vmatprep.subr.mxu0 0.0
    %2350 = vmatpush1.msra.mxu0 %v850
    %2351 = vmatprep.subr.mxu0 0.0
    %2352 = vmatpush1.msra.mxu0 %v851
    %2353 = vmatprep.subr.mxu0 0.0
    %2354 = vmatpush1.msra.mxu0 %v852
    %2355 = vmatprep.subr.mxu0 0.0
    %2356 = vmatpush1.msra.mxu0 %v853
    %2357 = vmatprep.subr.mxu0 0.0
    %2358 = vmatpush1.msra.mxu0 %v854
    %2359 = vmatprep.subr.mxu0 0.0
    %2360 = vmatpush1.msra.mxu0 %v855
    %2361 = vmatprep.subr.mxu0 0.0
    %2362 = vmatpush1.msra.mxu0 %v856
    %2363 = vmatprep.subr.mxu0 0.0
    %2364 = vmatpush1.msra.mxu0 %v857
    %2365 = vmatprep.subr.mxu0 0.0
    %2366 = vmatpush1.msra.mxu0 %v858
    %2367 = vmatprep.subr.mxu0 0.0
    %2368 = vmatpush1.msra.mxu0 %v859
    %2369 = vmatprep.subr.mxu0 0.0
    %2370 = vmatpush1.msra.mxu0 %v860
    %2371 = vmatprep.subr.mxu0 0.0
    %2372 = vmatpush1.msra.mxu0 %v861
    %2373 = vmatprep.subr.mxu0 0.0
    %2374 = vmatpush1.msra.mxu0 %v862
    %2375 = vmatprep.subr.mxu0 0.0
    %2376 = vmatpush1.msra.mxu0 %v863
    %2377 = vmatprep.subr.mxu0 0.0
    %2378 = vmatpush1.msra.mxu0 %v864
    %2379 = vmatprep.subr.mxu0 0.0
    %2380 = vmatpush1.msra.mxu0 %v865
    %2381 = vmatprep.subr.mxu0 0.0
    %2382 = vmatpush1.msra.mxu0 %v866
    %2383 = vmatprep.subr.mxu0 0.0
    %2384 = vmatpush1.msra.mxu0 %v867
    %2385 = vmatprep.subr.mxu0 0.0
    %2386 = vmatpush1.msra.mxu0 %v868
    %2387 = vmatprep.subr.mxu0 0.0
    %2388 = vmatpush1.msra.mxu0 %v869
    %2389 = vmatprep.subr.mxu0 0.0
    %2390 = vmatpush1.msra.mxu0 %v870
    %2391 = vmatprep.mubr.f32.mxu0 %v1352
    %2392 = vmatmul.mubr.f32.gmra.mrb[0].mxu0 %v1344
    %v2393 = vpop.f32.mrb[0].mxu0
    %v2394 = vadd.f32 %v2324, %v2393
    %v2395 = vpop.f32.mrb[0].mxu0
    %2396 = vdwg.mxu0
    %2397 = vmatprep.subr.mxu0 0.0
    %2398 = vmatpush1.msra.mxu0 %v871
    %2399 = vmatprep.subr.mxu0 0.0
    %2400 = vmatpush1.msra.mxu0 %v872
    %2401 = vmatprep.subr.mxu0 0.0
    %2402 = vmatpush1.msra.mxu0 %v873
    %2403 = vmatprep.subr.mxu0 0.0
    %2404 = vmatpush1.msra.mxu0 %v874
    %2405 = vmatprep.subr.mxu0 0.0
    %2406 = vmatpush1.msra.mxu0 %v875
    %2407 = vmatprep.subr.mxu0 0.0
    %2408 = vmatpush1.msra.mxu0 %v876
    %2409 = vmatprep.subr.mxu0 0.0
    %2410 = vmatpush1.msra.mxu0 %v877
    %2411 = vmatprep.subr.mxu0 0.0
    %2412 = vmatpush1.msra.mxu0 %v878
    %2413 = vmatprep.subr.mxu0 0.0
    %2414 = vmatpush1.msra.mxu0 %v879
    %2415 = vmatprep.subr.mxu0 0.0
    %2416 = vmatpush1.msra.mxu0 %v880
    %2417 = vmatprep.subr.mxu0 0.0
    %2418 = vmatpush1.msra.mxu0 %v881
    %2419 = vmatprep.subr.mxu0 0.0
    %2420 = vmatpush1.msra.mxu0 %v882
    %2421 = vmatprep.subr.mxu0 0.0
    %2422 = vmatpush1.msra.mxu0 %v883
    %2423 = vmatprep.subr.mxu0 0.0
    %2424 = vmatpush1.msra.mxu0 %v884
    %2425 = vmatprep.subr.mxu0 0.0
    %2426 = vmatpush1.msra.mxu0 %v885
    %2427 = vmatprep.subr.mxu0 0.0
    %2428 = vmatpush1.msra.mxu0 %v886
    %2429 = vmatprep.subr.mxu0 0.0
    %2430 = vmatpush1.msra.mxu0 %v887
    %2431 = vmatprep.subr.mxu0 0.0
    %2432 = vmatpush1.msra.mxu0 %v888
    %2433 = vmatprep.subr.mxu0 0.0
    %2434 = vmatpush1.msra.mxu0 %v889
    %2435 = vmatprep.subr.mxu0 0.0
    %2436 = vmatpush1.msra.mxu0 %v890
    %2437 = vmatprep.subr.mxu0 0.0
    %2438 = vmatpush1.msra.mxu0 %v891
    %2439 = vmatprep.subr.mxu0 0.0
    %2440 = vmatpush1.msra.mxu0 %v892
    %2441 = vmatprep.subr.mxu0 0.0
    %2442 = vmatpush1.msra.mxu0 %v893
    %2443 = vmatprep.subr.mxu0 0.0
    %2444 = vmatpush1.msra.mxu0 %v894
    %2445 = vmatprep.subr.mxu0 0.0
    %2446 = vmatpush1.msra.mxu0 %v895
    %2447 = vmatprep.subr.mxu0 0.0
    %2448 = vmatpush1.msra.mxu0 %v896
    %2449 = vmatprep.subr.mxu0 0.0
    %2450 = vmatpush1.msra.mxu0 %v897
    %2451 = vmatprep.subr.mxu0 0.0
    %2452 = vmatpush1.msra.mxu0 %v898
    %2453 = vmatprep.subr.mxu0 0.0
    %2454 = vmatpush1.msra.mxu0 %v899
    %2455 = vmatprep.subr.mxu0 0.0
    %2456 = vmatpush1.msra.mxu0 %v900
    %2457 = vmatprep.subr.mxu0 0.0
    %2458 = vmatpush1.msra.mxu0 %v901
    %2459 = vmatprep.subr.mxu0 0.0
    %2460 = vmatpush1.msra.mxu0 %v902
    %2461 = vmatprep.mubr.f32.mxu0 %v1353
    %2462 = vmatmul.mubr.f32.gmra.mrb[0].mxu0 %v1351
    %v2463 = vpop.f32.mrb[0].mxu0
    %v2464 = vadd.f32 %v2394, %v2463
    %v2465 = vpop.f32.mrb[0].mxu0
    %2466 = vdwg.mxu0
    %2467 = vmatprep.subr.mxu0 0.0
    %2468 = vmatpush1.msra.mxu0 %v903
    %2469 = vmatprep.subr.mxu0 0.0
    %2470 = vmatpush1.msra.mxu0 %v904
    %2471 = vmatprep.subr.mxu0 0.0
    %2472 = vmatpush1.msra.mxu0 %v905
    %2473 = vmatprep.subr.mxu0 0.0
    %2474 = vmatpush1.msra.mxu0 %v906
    %2475 = vmatprep.subr.mxu0 0.0
    %2476 = vmatpush1.msra.mxu0 %v907
    %2477 = vmatprep.subr.mxu0 0.0
    %2478 = vmatpush1.msra.mxu0 %v908
    %2479 = vmatprep.subr.mxu0 0.0
    %2480 = vmatpush1.msra.mxu0 %v909
    %2481 = vmatprep.subr.mxu0 0.0
    %2482 = vmatpush1.msra.mxu0 %v910
    %2483 = vmatprep.subr.mxu0 0.0
    %2484 = vmatpush1.msra.mxu0 %v911
    %2485 = vmatprep.subr.mxu0 0.0
    %2486 = vmatpush1.msra.mxu0 %v912
    %2487 = vmatprep.subr.mxu0 0.0
    %2488 = vmatpush1.msra.mxu0 %v913
    %2489 = vmatprep.subr.mxu0 0.0
    %2490 = vmatpush1.msra.mxu0 %v914
    %2491 = vmatprep.subr.mxu0 0.0
    %2492 = vmatpush1.msra.mxu0 %v915
    %2493 = vmatprep.subr.mxu0 0.0
    %2494 = vmatpush1.msra.mxu0 %v916
    %2495 = vmatprep.subr.mxu0 0.0
    %2496 = vmatpush1.msra.mxu0 %v917
    %2497 = vmatprep.subr.mxu0 0.0
    %2498 = vmatpush1.msra.mxu0 %v918
    %2499 = vmatprep.subr.mxu0 0.0
    %2500 = vmatpush1.msra.mxu0 %v919
    %2501 = vmatprep.subr.mxu0 0.0
    %2502 = vmatpush1.msra.mxu0 %v920
    %2503 = vmatprep.subr.mxu0 0.0
    %2504 = vmatpush1.msra.mxu0 %v921
    %2505 = vmatprep.subr.mxu0 0.0
    %2506 = vmatpush1.msra.mxu0 %v922
    %2507 = vmatprep.subr.mxu0 0.0
    %2508 = vmatpush1.msra.mxu0 %v923
    %2509 = vmatprep.subr.mxu0 0.0
    %2510 = vmatpush1.msra.mxu0 %v924
    %2511 = vmatprep.subr.mxu0 0.0
    %2512 = vmatpush1.msra.mxu0 %v925
    %2513 = vmatprep.subr.mxu0 0.0
    %2514 = vmatpush1.msra.mxu0 %v926
    %2515 = vmatprep.subr.mxu0 0.0
    %2516 = vmatpush1.msra.mxu0 %v927
    %2517 = vmatprep.subr.mxu0 0.0
    %2518 = vmatpush1.msra.mxu0 %v928
    %2519 = vmatprep.subr.mxu0 0.0
    %2520 = vmatpush1.msra.mxu0 %v929
    %2521 = vmatprep.subr.mxu0 0.0
    %2522 = vmatpush1.msra.mxu0 %v930
    %2523 = vmatprep.subr.mxu0 0.0
    %2524 = vmatpush1.msra.mxu0 %v931
    %2525 = vmatprep.subr.mxu0 0.0
    %2526 = vmatpush1.msra.mxu0 %v932
    %2527 = vmatprep.subr.mxu0 0.0
    %2528 = vmatpush1.msra.mxu0 %v933
    %2529 = vmatprep.subr.mxu0 0.0
    %2530 = vmatpush1.msra.mxu0 %v934
    %2531 = vmatprep.mubr.f32.mxu0 %v1369
    %2532 = vmatmul.mubr.f32.gmra.mrb[0].mxu0 %v1361
    %v2533 = vpop.f32.mrb[0].mxu0
    %v2534 = vadd.f32 %v2464, %v2533
    %v2535 = vpop.f32.mrb[0].mxu0
    %2536 = vdwg.mxu0
    %2537 = vmatprep.subr.mxu0 0.0
    %2538 = vmatpush1.msra.mxu0 %v935
    %2539 = vmatprep.subr.mxu0 0.0
    %2540 = vmatpush1.msra.mxu0 %v936
    %2541 = vmatprep.subr.mxu0 0.0
    %2542 = vmatpush1.msra.mxu0 %v937
    %2543 = vmatprep.subr.mxu0 0.0
    %2544 = vmatpush1.msra.mxu0 %v938
    %2545 = vmatprep.subr.mxu0 0.0
    %2546 = vmatpush1.msra.mxu0 %v939
    %2547 = vmatprep.subr.mxu0 0.0
    %2548 = vmatpush1.msra.mxu0 %v940
    %2549 = vmatprep.subr.mxu0 0.0
    %2550 = vmatpush1.msra.mxu0 %v941
    %2551 = vmatprep.subr.mxu0 0.0
    %2552 = vmatpush1.msra.mxu0 %v942
    %2553 = vmatprep.subr.mxu0 0.0
    %2554 = vmatpush1.msra.mxu0 %v943
    %2555 = vmatprep.subr.mxu0 0.0
    %2556 = vmatpush1.msra.mxu0 %v944
    %2557 = vmatprep.subr.mxu0 0.0
    %2558 = vmatpush1.msra.mxu0 %v945
    %2559 = vmatprep.subr.mxu0 0.0
    %2560 = vmatpush1.msra.mxu0 %v946
    %2561 = vmatprep.subr.mxu0 0.0
    %2562 = vmatpush1.msra.mxu0 %v947
    %2563 = vmatprep.subr.mxu0 0.0
    %2564 = vmatpush1.msra.mxu0 %v948
    %2565 = vmatprep.subr.mxu0 0.0
    %2566 = vmatpush1.msra.mxu0 %v949
    %2567 = vmatprep.subr.mxu0 0.0
    %2568 = vmatpush1.msra.mxu0 %v950
    %2569 = vmatprep.subr.mxu0 0.0
    %2570 = vmatpush1.msra.mxu0 %v951
    %2571 = vmatprep.subr.mxu0 0.0
    %2572 = vmatpush1.msra.mxu0 %v952
    %2573 = vmatprep.subr.mxu0 0.0
    %2574 = vmatpush1.msra.mxu0 %v953
    %2575 = vmatprep.subr.mxu0 0.0
    %2576 = vmatpush1.msra.mxu0 %v954
    %2577 = vmatprep.subr.mxu0 0.0
    %2578 = vmatpush1.msra.mxu0 %v955
    %2579 = vmatprep.subr.mxu0 0.0
    %2580 = vmatpush1.msra.mxu0 %v956
    %2581 = vmatprep.subr.mxu0 0.0
    %2582 = vmatpush1.msra.mxu0 %v957
    %2583 = vmatprep.subr.mxu0 0.0
    %2584 = vmatpush1.msra.mxu0 %v958
    %2585 = vmatprep.subr.mxu0 0.0
    %2586 = vmatpush1.msra.mxu0 %v959
    %2587 = vmatprep.subr.mxu0 0.0
    %2588 = vmatpush1.msra.mxu0 %v960
    %2589 = vmatprep.subr.mxu0 0.0
    %2590 = vmatpush1.msra.mxu0 %v961
    %2591 = vmatprep.subr.mxu0 0.0
    %2592 = vmatpush1.msra.mxu0 %v962
    %2593 = vmatprep.subr.mxu0 0.0
    %2594 = vmatpush1.msra.mxu0 %v963
    %2595 = vmatprep.subr.mxu0 0.0
    %2596 = vmatpush1.msra.mxu0 %v964
    %2597 = vmatprep.subr.mxu0 0.0
    %2598 = vmatpush1.msra.mxu0 %v965
    %2599 = vmatprep.subr.mxu0 0.0
    %2600 = vmatpush1.msra.mxu0 %v966
    %2601 = vmatprep.mubr.f32.mxu0 %v1370
    %2602 = vmatmul.mubr.f32.gmra.mrb[0].mxu0 %v1368
    %v2603 = vpop.f32.mrb[0].mxu0
    %v2604 = vadd.f32 %v2534, %v2603
    %v2605 = vpop.f32.mrb[0].mxu0
    %2606 = vdwg.mxu0
    %2607 = vmatprep.subr.mxu0 0.0
    %2608 = vmatpush1.msra.mxu0 %v967
    %2609 = vmatprep.subr.mxu0 0.0
    %2610 = vmatpush1.msra.mxu0 %v968
    %2611 = vmatprep.subr.mxu0 0.0
    %2612 = vmatpush1.msra.mxu0 %v969
    %2613 = vmatprep.subr.mxu0 0.0
    %2614 = vmatpush1.msra.mxu0 %v970
    %2615 = vmatprep.subr.mxu0 0.0
    %2616 = vmatpush1.msra.mxu0 %v971
    %2617 = vmatprep.subr.mxu0 0.0
    %2618 = vmatpush1.msra.mxu0 %v972
    %2619 = vmatprep.subr.mxu0 0.0
    %2620 = vmatpush1.msra.mxu0 %v973
    %2621 = vmatprep.subr.mxu0 0.0
    %2622 = vmatpush1.msra.mxu0 %v974
    %2623 = vmatprep.subr.mxu0 0.0
    %2624 = vmatpush1.msra.mxu0 %v975
    %2625 = vmatprep.subr.mxu0 0.0
    %2626 = vmatpush1.msra.mxu0 %v976
    %2627 = vmatprep.subr.mxu0 0.0
    %2628 = vmatpush1.msra.mxu0 %v977
    %2629 = vmatprep.subr.mxu0 0.0
    %2630 = vmatpush1.msra.mxu0 %v978
    %2631 = vmatprep.subr.mxu0 0.0
    %2632 = vmatpush1.msra.mxu0 %v979
    %2633 = vmatprep.subr.mxu0 0.0
    %2634 = vmatpush1.msra.mxu0 %v980
    %2635 = vmatprep.subr.mxu0 0.0
    %2636 = vmatpush1.msra.mxu0 %v981
    %2637 = vmatprep.subr.mxu0 0.0
    %2638 = vmatpush1.msra.mxu0 %v982
    %2639 = vmatprep.subr.mxu0 0.0
    %2640 = vmatpush1.msra.mxu0 %v983
    %2641 = vmatprep.subr.mxu0 0.0
    %2642 = vmatpush1.msra.mxu0 %v984
    %2643 = vmatprep.subr.mxu0 0.0
    %2644 = vmatpush1.msra.mxu0 %v985
    %2645 = vmatprep.subr.mxu0 0.0
    %2646 = vmatpush1.msra.mxu0 %v986
    %2647 = vmatprep.subr.mxu0 0.0
    %2648 = vmatpush1.msra.mxu0 %v987
    %2649 = vmatprep.subr.mxu0 0.0
    %2650 = vmatpush1.msra.mxu0 %v988
    %2651 = vmatprep.subr.mxu0 0.0
    %2652 = vmatpush1.msra.mxu0 %v989
    %2653 = vmatprep.subr.mxu0 0.0
    %2654 = vmatpush1.msra.mxu0 %v990
    %2655 = vmatprep.subr.mxu0 0.0
    %2656 = vmatpush1.msra.mxu0 %v991
    %2657 = vmatprep.subr.mxu0 0.0
    %2658 = vmatpush1.msra.mxu0 %v992
    %2659 = vmatprep.subr.mxu0 0.0
    %2660 = vmatpush1.msra.mxu0 %v993
    %2661 = vmatprep.subr.mxu0 0.0
    %2662 = vmatpush1.msra.mxu0 %v994
    %2663 = vmatprep.subr.mxu0 0.0
    %2664 = vmatpush1.msra.mxu0 %v995
    %2665 = vmatprep.subr.mxu0 0.0
    %2666 = vmatpush1.msra.mxu0 %v996
    %2667 = vmatprep.subr.mxu0 0.0
    %2668 = vmatpush1.msra.mxu0 %v997
    %2669 = vmatprep.subr.mxu0 0.0
    %2670 = vmatpush1.msra.mxu0 %v998
    %2671 = vmatprep.mubr.f32.mxu0 %v1386
    %2672 = vmatmul.mubr.f32.gmra.mrb[0].mxu0 %v1378
    %v2673 = vpop.f32.mrb[0].mxu0
    %v2674 = vadd.f32 %v2604, %v2673
    %v2675 = vpop.f32.mrb[0].mxu0
    %2676 = vdwg.mxu0
    %2677 = vmatprep.subr.mxu0 0.0
    %2678 = vmatpush1.msra.mxu0 %v999
    %2679 = vmatprep.subr.mxu0 0.0
    %2680 = vmatpush1.msra.mxu0 %v1000
    %2681 = vmatprep.subr.mxu0 0.0
    %2682 = vmatpush1.msra.mxu0 %v1001
    %2683 = vmatprep.subr.mxu0 0.0
    %2684 = vmatpush1.msra.mxu0 %v1002
    %2685 = vmatprep.subr.mxu0 0.0
    %2686 = vmatpush1.msra.mxu0 %v1003
    %2687 = vmatprep.subr.mxu0 0.0
    %2688 = vmatpush1.msra.mxu0 %v1004
    %2689 = vmatprep.subr.mxu0 0.0
    %2690 = vmatpush1.msra.mxu0 %v1005
    %2691 = vmatprep.subr.mxu0 0.0
    %2692 = vmatpush1.msra.mxu0 %v1006
    %2693 = vmatprep.subr.mxu0 0.0
    %2694 = vmatpush1.msra.mxu0 %v1007
    %2695 = vmatprep.subr.mxu0 0.0
    %2696 = vmatpush1.msra.mxu0 %v1008
    %2697 = vmatprep.subr.mxu0 0.0
    %2698 = vmatpush1.msra.mxu0 %v1009
    %2699 = vmatprep.subr.mxu0 0.0
    %2700 = vmatpush1.msra.mxu0 %v1010
    %2701 = vmatprep.subr.mxu0 0.0
    %2702 = vmatpush1.msra.mxu0 %v1011
    %2703 = vmatprep.subr.mxu0 0.0
    %2704 = vmatpush1.msra.mxu0 %v1012
    %2705 = vmatprep.subr.mxu0 0.0
    %2706 = vmatpush1.msra.mxu0 %v1013
    %2707 = vmatprep.subr.mxu0 0.0
    %2708 = vmatpush1.msra.mxu0 %v1014
    %2709 = vmatprep.subr.mxu0 0.0
    %2710 = vmatpush1.msra.mxu0 %v1015
    %2711 = vmatprep.subr.mxu0 0.0
    %2712 = vmatpush1.msra.mxu0 %v1016
    %2713 = vmatprep.subr.mxu0 0.0
    %2714 = vmatpush1.msra.mxu0 %v1017
    %2715 = vmatprep.subr.mxu0 0.0
    %2716 = vmatpush1.msra.mxu0 %v1018
    %2717 = vmatprep.subr.mxu0 0.0
    %2718 = vmatpush1.msra.mxu0 %v1019
    %2719 = vmatprep.subr.mxu0 0.0
    %2720 = vmatpush1.msra.mxu0 %v1020
    %2721 = vmatprep.subr.mxu0 0.0
    %2722 = vmatpush1.msra.mxu0 %v1021
    %2723 = vmatprep.subr.mxu0 0.0
    %2724 = vmatpush1.msra.mxu0 %v1022
    %2725 = vmatprep.subr.mxu0 0.0
    %2726 = vmatpush1.msra.mxu0 %v1023
    %2727 = vmatprep.subr.mxu0 0.0
    %2728 = vmatpush1.msra.mxu0 %v1024
    %2729 = vmatprep.subr.mxu0 0.0
    %2730 = vmatpush1.msra.mxu0 %v1025
    %2731 = vmatprep.subr.mxu0 0.0
    %2732 = vmatpush1.msra.mxu0 %v1026
    %2733 = vmatprep.subr.mxu0 0.0
    %2734 = vmatpush1.msra.mxu0 %v1027
    %2735 = vmatprep.subr.mxu0 0.0
    %2736 = vmatpush1.msra.mxu0 %v1028
    %2737 = vmatprep.subr.mxu0 0.0
    %2738 = vmatpush1.msra.mxu0 %v1029
    %2739 = vmatprep.subr.mxu0 0.0
    %2740 = vmatpush1.msra.mxu0 %v1030
    %2741 = vmatprep.mubr.f32.mxu0 %v1387
    %2742 = vmatmul.mubr.f32.gmra.mrb[0].mxu0 %v1385
    %v2743 = vpop.f32.mrb[0].mxu0
    %v2744 = vadd.f32 %v2674, %v2743
    %v2745 = vpop.f32.mrb[0].mxu0
    %2746 = vdwg.mxu0
    %2747 = vmatprep.subr.mxu0 0.0
    %2748 = vmatpush1.msra.mxu0 %v1031
    %2749 = vmatprep.subr.mxu0 0.0
    %2750 = vmatpush1.msra.mxu0 %v1032
    %2751 = vmatprep.subr.mxu0 0.0
    %2752 = vmatpush1.msra.mxu0 %v1033
    %2753 = vmatprep.subr.mxu0 0.0
    %2754 = vmatpush1.msra.mxu0 %v1034
    %2755 = vmatprep.subr.mxu0 0.0
    %2756 = vmatpush1.msra.mxu0 %v1035
    %2757 = vmatprep.subr.mxu0 0.0
    %2758 = vmatpush1.msra.mxu0 %v1036
    %2759 = vmatprep.subr.mxu0 0.0
    %2760 = vmatpush1.msra.mxu0 %v1037
    %2761 = vmatprep.subr.mxu0 0.0
    %2762 = vmatpush1.msra.mxu0 %v1038
    %2763 = vmatprep.subr.mxu0 0.0
    %2764 = vmatpush1.msra.mxu0 %v1039
    %2765 = vmatprep.subr.mxu0 0.0
    %2766 = vmatpush1.msra.mxu0 %v1040
    %2767 = vmatprep.subr.mxu0 0.0
    %2768 = vmatpush1.msra.mxu0 %v1041
    %2769 = vmatprep.subr.mxu0 0.0
    %2770 = vmatpush1.msra.mxu0 %v1042
    %2771 = vmatprep.subr.mxu0 0.0
    %2772 = vmatpush1.msra.mxu0 %v1043
    %2773 = vmatprep.subr.mxu0 0.0
    %2774 = vmatpush1.msra.mxu0 %v1044
    %2775 = vmatprep.subr.mxu0 0.0
    %2776 = vmatpush1.msra.mxu0 %v1045
    %2777 = vmatprep.subr.mxu0 0.0
    %2778 = vmatpush1.msra.mxu0 %v1046
    %2779 = vmatprep.subr.mxu0 0.0
    %2780 = vmatpush1.msra.mxu0 %v1047
    %2781 = vmatprep.subr.mxu0 0.0
    %2782 = vmatpush1.msra.mxu0 %v1048
    %2783 = vmatprep.subr.mxu0 0.0
    %2784 = vmatpush1.msra.mxu0 %v1049
    %2785 = vmatprep.subr.mxu0 0.0
    %2786 = vmatpush1.msra.mxu0 %v1050
    %2787 = vmatprep.subr.mxu0 0.0
    %2788 = vmatpush1.msra.mxu0 %v1051
    %2789 = vmatprep.subr.mxu0 0.0
    %2790 = vmatpush1.msra.mxu0 %v1052
    %2791 = vmatprep.subr.mxu0 0.0
    %2792 = vmatpush1.msra.mxu0 %v1053
    %2793 = vmatprep.subr.mxu0 0.0
    %2794 = vmatpush1.msra.mxu0 %v1054
    %2795 = vmatprep.subr.mxu0 0.0
    %2796 = vmatpush1.msra.mxu0 %v1055
    %2797 = vmatprep.subr.mxu0 0.0
    %2798 = vmatpush1.msra.mxu0 %v1056
    %2799 = vmatprep.subr.mxu0 0.0
    %2800 = vmatpush1.msra.mxu0 %v1057
    %2801 = vmatprep.subr.mxu0 0.0
    %2802 = vmatpush1.msra.mxu0 %v1058
    %2803 = vmatprep.subr.mxu0 0.0
    %2804 = vmatpush1.msra.mxu0 %v1059
    %2805 = vmatprep.subr.mxu0 0.0
    %2806 = vmatpush1.msra.mxu0 %v1060
    %2807 = vmatprep.subr.mxu0 0.0
    %2808 = vmatpush1.msra.mxu0 %v1061
    %2809 = vmatprep.subr.mxu0 0.0
    %2810 = vmatpush1.msra.mxu0 %v1062
    %2811 = vmatprep.mubr.f32.mxu0 %v1403
    %2812 = vmatmul.mubr.f32.gmra.mrb[0].mxu0 %v1395
    %v2813 = vpop.f32.mrb[0].mxu0
    %v2814 = vadd.f32 %v2744, %v2813
    %v2815 = vpop.f32.mrb[0].mxu0
    %2816 = vdwg.mxu0
    %2817 = vmatprep.subr.mxu0 0.0
    %2818 = vmatpush1.msra.mxu0 %v1063
    %2819 = vmatprep.subr.mxu0 0.0
    %2820 = vmatpush1.msra.mxu0 %v1064
    %2821 = vmatprep.subr.mxu0 0.0
    %2822 = vmatpush1.msra.mxu0 %v1065
    %2823 = vmatprep.subr.mxu0 0.0
    %2824 = vmatpush1.msra.mxu0 %v1066
    %2825 = vmatprep.subr.mxu0 0.0
    %2826 = vmatpush1.msra.mxu0 %v1067
    %2827 = vmatprep.subr.mxu0 0.0
    %2828 = vmatpush1.msra.mxu0 %v1068
    %2829 = vmatprep.subr.mxu0 0.0
    %2830 = vmatpush1.msra.mxu0 %v1069
    %2831 = vmatprep.subr.mxu0 0.0
    %2832 = vmatpush1.msra.mxu0 %v1070
    %2833 = vmatprep.subr.mxu0 0.0
    %2834 = vmatpush1.msra.mxu0 %v1071
    %2835 = vmatprep.subr.mxu0 0.0
    %2836 = vmatpush1.msra.mxu0 %v1072
    %2837 = vmatprep.subr.mxu0 0.0
    %2838 = vmatpush1.msra.mxu0 %v1073
    %2839 = vmatprep.subr.mxu0 0.0
    %2840 = vmatpush1.msra.mxu0 %v1074
    %2841 = vmatprep.subr.mxu0 0.0
    %2842 = vmatpush1.msra.mxu0 %v1075
    %2843 = vmatprep.subr.mxu0 0.0
    %2844 = vmatpush1.msra.mxu0 %v1076
    %2845 = vmatprep.subr.mxu0 0.0
    %2846 = vmatpush1.msra.mxu0 %v1077
    %2847 = vmatprep.subr.mxu0 0.0
    %2848 = vmatpush1.msra.mxu0 %v1078
    %2849 = vmatprep.subr.mxu0 0.0
    %2850 = vmatpush1.msra.mxu0 %v1079
    %2851 = vmatprep.subr.mxu0 0.0
    %2852 = vmatpush1.msra.mxu0 %v1080
    %2853 = vmatprep.subr.mxu0 0.0
    %2854 = vmatpush1.msra.mxu0 %v1081
    %2855 = vmatprep.subr.mxu0 0.0
    %2856 = vmatpush1.msra.mxu0 %v1082
    %2857 = vmatprep.subr.mxu0 0.0
    %2858 = vmatpush1.msra.mxu0 %v1083
    %2859 = vmatprep.subr.mxu0 0.0
    %2860 = vmatpush1.msra.mxu0 %v1084
    %2861 = vmatprep.subr.mxu0 0.0
    %2862 = vmatpush1.msra.mxu0 %v1085
    %2863 = vmatprep.subr.mxu0 0.0
    %2864 = vmatpush1.msra.mxu0 %v1086
    %2865 = vmatprep.subr.mxu0 0.0
    %2866 = vmatpush1.msra.mxu0 %v1087
    %2867 = vmatprep.subr.mxu0 0.0
    %2868 = vmatpush1.msra.mxu0 %v1088
    %2869 = vmatprep.subr.mxu0 0.0
    %2870 = vmatpush1.msra.mxu0 %v1089
    %2871 = vmatprep.subr.mxu0 0.0
    %2872 = vmatpush1.msra.mxu0 %v1090
    %2873 = vmatprep.subr.mxu0 0.0
    %2874 = vmatpush1.msra.mxu0 %v1091
    %2875 = vmatprep.subr.mxu0 0.0
    %2876 = vmatpush1.msra.mxu0 %v1092
    %2877 = vmatprep.subr.mxu0 0.0
    %2878 = vmatpush1.msra.mxu0 %v1093
    %2879 = vmatprep.subr.mxu0 0.0
    %2880 = vmatpush1.msra.mxu0 %v1094
    %2881 = vmatprep.mubr.f32.mxu0 %v1404
    %2882 = vmatmul.mubr.f32.gmra.mrb[0].mxu0 %v1402
    %v2883 = vpop.f32.mrb[0].mxu0
    %v2884 = vadd.f32 %v2814, %v2883
    %v2885 = vpop.f32.mrb[0].mxu0
    %2886 = vdwg.mxu0
    %2887 = vmatprep.subr.mxu0 0.0
    %2888 = vmatpush1.msra.mxu0 %v1095
    %2889 = vmatprep.subr.mxu0 0.0
    %2890 = vmatpush1.msra.mxu0 %v1096
    %2891 = vmatprep.subr.mxu0 0.0
    %2892 = vmatpush1.msra.mxu0 %v1097
    %2893 = vmatprep.subr.mxu0 0.0
    %2894 = vmatpush1.msra.mxu0 %v1098
    %2895 = vmatprep.subr.mxu0 0.0
    %2896 = vmatpush1.msra.mxu0 %v1099
    %2897 = vmatprep.subr.mxu0 0.0
    %2898 = vmatpush1.msra.mxu0 %v1100
    %2899 = vmatprep.subr.mxu0 0.0
    %2900 = vmatpush1.msra.mxu0 %v1101
    %2901 = vmatprep.subr.mxu0 0.0
    %2902 = vmatpush1.msra.mxu0 %v1102
    %2903 = vmatprep.subr.mxu0 0.0
    %2904 = vmatpush1.msra.mxu0 %v1103
    %2905 = vmatprep.subr.mxu0 0.0
    %2906 = vmatpush1.msra.mxu0 %v1104
    %2907 = vmatprep.subr.mxu0 0.0
    %2908 = vmatpush1.msra.mxu0 %v1105
    %2909 = vmatprep.subr.mxu0 0.0
    %2910 = vmatpush1.msra.mxu0 %v1106
    %2911 = vmatprep.subr.mxu0 0.0
    %2912 = vmatpush1.msra.mxu0 %v1107
    %2913 = vmatprep.subr.mxu0 0.0
    %2914 = vmatpush1.msra.mxu0 %v1108
    %2915 = vmatprep.subr.mxu0 0.0
    %2916 = vmatpush1.msra.mxu0 %v1109
    %2917 = vmatprep.subr.mxu0 0.0
    %2918 = vmatpush1.msra.mxu0 %v1110
    %2919 = vmatprep.subr.mxu0 0.0
    %2920 = vmatpush1.msra.mxu0 %v1111
    %2921 = vmatprep.subr.mxu0 0.0
    %2922 = vmatpush1.msra.mxu0 %v1112
    %2923 = vmatprep.subr.mxu0 0.0
    %2924 = vmatpush1.msra.mxu0 %v1113
    %2925 = vmatprep.subr.mxu0 0.0
    %2926 = vmatpush1.msra.mxu0 %v1114
    %2927 = vmatprep.subr.mxu0 0.0
    %2928 = vmatpush1.msra.mxu0 %v1115
    %2929 = vmatprep.subr.mxu0 0.0
    %2930 = vmatpush1.msra.mxu0 %v1116
    %2931 = vmatprep.subr.mxu0 0.0
    %2932 = vmatpush1.msra.mxu0 %v1117
    %2933 = vmatprep.subr.mxu0 0.0
    %2934 = vmatpush1.msra.mxu0 %v1118
    %2935 = vmatprep.subr.mxu0 0.0
    %2936 = vmatpush1.msra.mxu0 %v1119
    %2937 = vmatprep.subr.mxu0 0.0
    %2938 = vmatpush1.msra.mxu0 %v1120
    %2939 = vmatprep.subr.mxu0 0.0
    %2940 = vmatpush1.msra.mxu0 %v1121
    %2941 = vmatprep.subr.mxu0 0.0
    %2942 = vmatpush1.msra.mxu0 %v1122
    %2943 = vmatprep.subr.mxu0 0.0
    %2944 = vmatpush1.msra.mxu0 %v1123
    %2945 = vmatprep.subr.mxu0 0.0
    %2946 = vmatpush1.msra.mxu0 %v1124
    %2947 = vmatprep.subr.mxu0 0.0
    %2948 = vmatpush1.msra.mxu0 %v1125
    %2949 = vmatprep.subr.mxu0 0.0
    %2950 = vmatpush1.msra.mxu0 %v1126
    %2951 = vmatprep.mubr.f32.mxu0 %v1420
    %2952 = vmatmul.mubr.f32.gmra.mrb[0].mxu0 %v1412
    %v2953 = vpop.f32.mrb[0].mxu0
    %v2954 = vadd.f32 %v2884, %v2953
    %v2955 = vpop.f32.mrb[0].mxu0
    %2956 = vdwg.mxu0
    %2957 = vmatprep.subr.mxu0 0.0
    %2958 = vmatpush1.msra.mxu0 %v1127
    %2959 = vmatprep.subr.mxu0 0.0
    %2960 = vmatpush1.msra.mxu0 %v1128
    %2961 = vmatprep.subr.mxu0 0.0
    %2962 = vmatpush1.msra.mxu0 %v1129
    %2963 = vmatprep.subr.mxu0 0.0
    %2964 = vmatpush1.msra.mxu0 %v1130
    %2965 = vmatprep.subr.mxu0 0.0
    %2966 = vmatpush1.msra.mxu0 %v1131
    %2967 = vmatprep.subr.mxu0 0.0
    %2968 = vmatpush1.msra.mxu0 %v1132
    %2969 = vmatprep.subr.mxu0 0.0
    %2970 = vmatpush1.msra.mxu0 %v1133
    %2971 = vmatprep.subr.mxu0 0.0
    %2972 = vmatpush1.msra.mxu0 %v1134
    %2973 = vmatprep.subr.mxu0 0.0
    %2974 = vmatpush1.msra.mxu0 %v1135
    %2975 = vmatprep.subr.mxu0 0.0
    %2976 = vmatpush1.msra.mxu0 %v1136
    %2977 = vmatprep.subr.mxu0 0.0
    %2978 = vmatpush1.msra.mxu0 %v1137
    %2979 = vmatprep.subr.mxu0 0.0
    %2980 = vmatpush1.msra.mxu0 %v1138
    %2981 = vmatprep.subr.mxu0 0.0
    %2982 = vmatpush1.msra.mxu0 %v1139
    %2983 = vmatprep.subr.mxu0 0.0
    %2984 = vmatpush1.msra.mxu0 %v1140
    %2985 = vmatprep.subr.mxu0 0.0
    %2986 = vmatpush1.msra.mxu0 %v1141
    %2987 = vmatprep.subr.mxu0 0.0
    %2988 = vmatpush1.msra.mxu0 %v1142
    %2989 = vmatprep.subr.mxu0 0.0
    %2990 = vmatpush1.msra.mxu0 %v1143
    %2991 = vmatprep.subr.mxu0 0.0
    %2992 = vmatpush1.msra.mxu0 %v1144
    %2993 = vmatprep.subr.mxu0 0.0
    %2994 = vmatpush1.msra.mxu0 %v1145
    %2995 = vmatprep.subr.mxu0 0.0
    %2996 = vmatpush1.msra.mxu0 %v1146
    %2997 = vmatprep.subr.mxu0 0.0
    %2998 = vmatpush1.msra.mxu0 %v1147
    %2999 = vmatprep.subr.mxu0 0.0
    %3000 = vmatpush1.msra.mxu0 %v1148
    %3001 = vmatprep.subr.mxu0 0.0
    %3002 = vmatpush1.msra.mxu0 %v1149
    %3003 = vmatprep.subr.mxu0 0.0
    %3004 = vmatpush1.msra.mxu0 %v1150
    %3005 = vmatprep.subr.mxu0 0.0
    %3006 = vmatpush1.msra.mxu0 %v1151
    %3007 = vmatprep.subr.mxu0 0.0
    %3008 = vmatpush1.msra.mxu0 %v1152
    %3009 = vmatprep.subr.mxu0 0.0
    %3010 = vmatpush1.msra.mxu0 %v1153
    %3011 = vmatprep.subr.mxu0 0.0
    %3012 = vmatpush1.msra.mxu0 %v1154
    %3013 = vmatprep.subr.mxu0 0.0
    %3014 = vmatpush1.msra.mxu0 %v1155
    %3015 = vmatprep.subr.mxu0 0.0
    %3016 = vmatpush1.msra.mxu0 %v1156
    %3017 = vmatprep.subr.mxu0 0.0
    %3018 = vmatpush1.msra.mxu0 %v1157
    %3019 = vmatprep.subr.mxu0 0.0
    %3020 = vmatpush1.msra.mxu0 %v1158
    %3021 = vmatprep.mubr.f32.mxu0 %v1421
    %3022 = vmatmul.mubr.f32.gmra.mrb[0].mxu0 %v1419
    %v3023 = vpop.f32.mrb[0].mxu0
    %v3024 = vadd.f32 %v2954, %v3023
    %v3025 = vpop.f32.mrb[0].mxu0
    %3026 = vdwg.mxu0
    %3027 = vmatprep.subr.mxu0 0.0
    %3028 = vmatpush1.msra.mxu0 %v1159
    %3029 = vmatprep.subr.mxu0 0.0
    %3030 = vmatpush1.msra.mxu0 %v1160
    %3031 = vmatprep.subr.mxu0 0.0
    %3032 = vmatpush1.msra.mxu0 %v1161
    %3033 = vmatprep.subr.mxu0 0.0
    %3034 = vmatpush1.msra.mxu0 %v1162
    %3035 = vmatprep.subr.mxu0 0.0
    %3036 = vmatpush1.msra.mxu0 %v1163
    %3037 = vmatprep.subr.mxu0 0.0
    %3038 = vmatpush1.msra.mxu0 %v1164
    %3039 = vmatprep.subr.mxu0 0.0
    %3040 = vmatpush1.msra.mxu0 %v1165
    %3041 = vmatprep.subr.mxu0 0.0
    %3042 = vmatpush1.msra.mxu0 %v1166
    %3043 = vmatprep.subr.mxu0 0.0
    %3044 = vmatpush1.msra.mxu0 %v1167
    %3045 = vmatprep.subr.mxu0 0.0
    %3046 = vmatpush1.msra.mxu0 %v1168
    %3047 = vmatprep.subr.mxu0 0.0
    %3048 = vmatpush1.msra.mxu0 %v1169
    %3049 = vmatprep.subr.mxu0 0.0
    %3050 = vmatpush1.msra.mxu0 %v1170
    %3051 = vmatprep.subr.mxu0 0.0
    %3052 = vmatpush1.msra.mxu0 %v1171
    %3053 = vmatprep.subr.mxu0 0.0
    %3054 = vmatpush1.msra.mxu0 %v1172
    %3055 = vmatprep.subr.mxu0 0.0
    %3056 = vmatpush1.msra.mxu0 %v1173
    %3057 = vmatprep.subr.mxu0 0.0
    %3058 = vmatpush1.msra.mxu0 %v1174
    %3059 = vmatprep.subr.mxu0 0.0
    %3060 = vmatpush1.msra.mxu0 %v1175
    %3061 = vmatprep.subr.mxu0 0.0
    %3062 = vmatpush1.msra.mxu0 %v1176
    %3063 = vmatprep.subr.mxu0 0.0
    %3064 = vmatpush1.msra.mxu0 %v1177
    %3065 = vmatprep.subr.mxu0 0.0
    %3066 = vmatpush1.msra.mxu0 %v1178
    %3067 = vmatprep.subr.mxu0 0.0
    %3068 = vmatpush1.msra.mxu0 %v1179
    %3069 = vmatprep.subr.mxu0 0.0
    %3070 = vmatpush1.msra.mxu0 %v1180
    %3071 = vmatprep.subr.mxu0 0.0
    %3072 = vmatpush1.msra.mxu0 %v1181
    %3073 = vmatprep.subr.mxu0 0.0
    %3074 = vmatpush1.msra.mxu0 %v1182
    %3075 = vmatprep.subr.mxu0 0.0
    %3076 = vmatpush1.msra.mxu0 %v1183
    %3077 = vmatprep.subr.mxu0 0.0
    %3078 = vmatpush1.msra.mxu0 %v1184
    %3079 = vmatprep.subr.mxu0 0.0
    %3080 = vmatpush1.msra.mxu0 %v1185
    %3081 = vmatprep.subr.mxu0 0.0
    %3082 = vmatpush1.msra.mxu0 %v1186
    %3083 = vmatprep.subr.mxu0 0.0
    %3084 = vmatpush1.msra.mxu0 %v1187
    %3085 = vmatprep.subr.mxu0 0.0
    %3086 = vmatpush1.msra.mxu0 %v1188
    %3087 = vmatprep.subr.mxu0 0.0
    %3088 = vmatpush1.msra.mxu0 %v1189
    %3089 = vmatprep.subr.mxu0 0.0
    %3090 = vmatpush1.msra.mxu0 %v1190
    %3091 = vmatprep.mubr.f32.mxu0 %v1437
    %3092 = vmatmul.mubr.f32.gmra.mrb[0].mxu0 %v1429
    %v3093 = vpop.f32.mrb[0].mxu0
    %v3094 = vadd.f32 %v3024, %v3093
    %v3095 = vpop.f32.mrb[0].mxu0
    %3096 = vdwg.mxu0
    %3097 = vmatprep.subr.mxu0 0.0
    %3098 = vmatpush1.msra.mxu0 %v1191
    %3099 = vmatprep.subr.mxu0 0.0
    %3100 = vmatpush1.msra.mxu0 %v1192
    %3101 = vmatprep.subr.mxu0 0.0
    %3102 = vmatpush1.msra.mxu0 %v1193
    %3103 = vmatprep.subr.mxu0 0.0
    %3104 = vmatpush1.msra.mxu0 %v1194
    %3105 = vmatprep.subr.mxu0 0.0
    %3106 = vmatpush1.msra.mxu0 %v1195
    %3107 = vmatprep.subr.mxu0 0.0
    %3108 = vmatpush1.msra.mxu0 %v1196
    %3109 = vmatprep.subr.mxu0 0.0
    %3110 = vmatpush1.msra.mxu0 %v1197
    %3111 = vmatprep.subr.mxu0 0.0
    %3112 = vmatpush1.msra.mxu0 %v1198
    %3113 = vmatprep.subr.mxu0 0.0
    %3114 = vmatpush1.msra.mxu0 %v1199
    %3115 = vmatprep.subr.mxu0 0.0
    %3116 = vmatpush1.msra.mxu0 %v1200
    %3117 = vmatprep.subr.mxu0 0.0
    %3118 = vmatpush1.msra.mxu0 %v1201
    %3119 = vmatprep.subr.mxu0 0.0
    %3120 = vmatpush1.msra.mxu0 %v1202
    %3121 = vmatprep.subr.mxu0 0.0
    %3122 = vmatpush1.msra.mxu0 %v1203
    %3123 = vmatprep.subr.mxu0 0.0
    %3124 = vmatpush1.msra.mxu0 %v1204
    %3125 = vmatprep.subr.mxu0 0.0
    %3126 = vmatpush1.msra.mxu0 %v1205
    %3127 = vmatprep.subr.mxu0 0.0
    %3128 = vmatpush1.msra.mxu0 %v1206
    %3129 = vmatprep.subr.mxu0 0.0
    %3130 = vmatpush1.msra.mxu0 %v1207
    %3131 = vmatprep.subr.mxu0 0.0
    %3132 = vmatpush1.msra.mxu0 %v1208
    %3133 = vmatprep.subr.mxu0 0.0
    %3134 = vmatpush1.msra.mxu0 %v1209
    %3135 = vmatprep.subr.mxu0 0.0
    %3136 = vmatpush1.msra.mxu0 %v1210
    %3137 = vmatprep.subr.mxu0 0.0
    %3138 = vmatpush1.msra.mxu0 %v1211
    %3139 = vmatprep.subr.mxu0 0.0
    %3140 = vmatpush1.msra.mxu0 %v1212
    %3141 = vmatprep.subr.mxu0 0.0
    %3142 = vmatpush1.msra.mxu0 %v1213
    %3143 = vmatprep.subr.mxu0 0.0
    %3144 = vmatpush1.msra.mxu0 %v1214
    %3145 = vmatprep.subr.mxu0 0.0
    %3146 = vmatpush1.msra.mxu0 %v1215
    %3147 = vmatprep.subr.mxu0 0.0
    %3148 = vmatpush1.msra.mxu0 %v1216
    %3149 = vmatprep.subr.mxu0 0.0
    %3150 = vmatpush1.msra.mxu0 %v1217
    %3151 = vmatprep.subr.mxu0 0.0
    %3152 = vmatpush1.msra.mxu0 %v1218
    %3153 = vmatprep.subr.mxu0 0.0
    %3154 = vmatpush1.msra.mxu0 %v1219
    %3155 = vmatprep.subr.mxu0 0.0
    %3156 = vmatpush1.msra.mxu0 %v1220
    %3157 = vmatprep.subr.mxu0 0.0
    %3158 = vmatpush1.msra.mxu0 %v1221
    %3159 = vmatprep.subr.mxu0 0.0
    %3160 = vmatpush1.msra.mxu0 %v1222
    %3161 = vmatprep.mubr.f32.mxu0 %v1438
    %3162 = vmatmul.mubr.f32.gmra.mrb[0].mxu0 %v1436
    %v3163 = vpop.f32.mrb[0].mxu0
    %v3164 = vadd.f32 %v3094, %v3163
    %v3165 = vpop.f32.mrb[0].mxu0
    %3166 = vdwg.mxu0
    %v3167 = vadd.f32 %v442, %v3164
    %3168 = vst [vmem:[#allocation14] sm:$0x3] %v3167
    // Predicated region
    $region62: #{tpu_custom_call.1} parent=1 // pred_check
      _
    $region63: #{tpu_custom_call.1} parent=1 // pred_check_branch
      %3170 = sbr.rel (0) target = $region65
    $region64: #{tpu_custom_call.1} parent=1 // pred_region
      %s3172 = ssub.s32 32, 32
      %3173 = vsyncadd [#allocation4], %s3172
      %s3175 = sshll.u32 [#allocation14], 4
      %s3176 = int_to_ptr.vmem [resolvable:$true] %s3175
      %3178 = dma.vmem_to_hbm [thread:$0]  %s3176, 32, %s7, [#allocation4]
    $region65: #{tpu_custom_call.1} parent=1 // pred_fallthru
      _
    // Predicated region
    $region66: #{tpu_custom_call.1} parent=1 // pred_check
      _
    $region67: #{tpu_custom_call.1} parent=1 // pred_check_branch
      %3180 = sbr.rel (0) target = $region69
    $region68: #{tpu_custom_call.1} parent=1 // pred_region
      %3181 = dma.done [#allocation4], 32
    $region69: #{tpu_custom_call.1} parent=1 // pred_fallthru
      _
    %3182 = vsyncpa [#allocation3], 1
    %3183 = vsyncpa [#allocation6], 1
    %3184 = vsyncpa [#allocation9], 1
    %3185 = vsyncpa [#allocation12], 1
    %3186 = vsyncpa [#allocation4], 1

</llo_original>
